<compile_context>
chip_gen: v7x
topology: tpu7x:2x2x1
jax: 0.10.0
libtpu: 0.0.40
codegen_flags: <defaults>
</compile_context>

<pallas_src>
import functools

import jax
import jax.numpy as jnp
from jax import lax
from jax.experimental import pallas as pl
from jax.experimental.pallas import tpu as pltpu

_LANE = 128


def _round_up(x, m):
    return (x + m - 1) // m * m


def _pad_last(a, n):
    p = n - a.shape[-1]
    if p == 0:
        return a
    widths = [(0, 0)] * a.ndim
    widths[-1] = (0, p)
    return jnp.pad(a, widths)


def _pad_axis(a, axis, n):
    p = n - a.shape[axis]
    if p == 0:
        return a
    widths = [(0, 0)] * a.ndim
    widths[axis] = (0, p)
    return jnp.pad(a, widths)


def _upsample_nearest(t, s):
    """Nearest-neighbour x`s` upsample of an (H, W, C) tile, on-chip.

    Built only from broadcasts plus reshapes that keep the lane (C) dim fixed
    (merge/split of leading+sublane dims), which lower cleanly in Mosaic."""
    if s == 1:
        return t
    H, W, C = t.shape
    # interleave-repeat along W: (H, W, C) -> (H, W*s, C)
    t = jnp.broadcast_to(t[:, :, None, :], (H, W, s, C))
    t = t.reshape(H * W * s, C).reshape(H, W * s, C)
    # interleave-repeat along H: (H, W*s, C) -> (H*s, W*s, C)
    t = jnp.broadcast_to(t[:, None, :, :], (H, s, W * s, C))
    return t.reshape(H * s, W * s, C)


def _store_taps(col_ref, u16, TH, Ws, halo):
    """Scatter the 9 taps of a 3x3 'same' conv into the bf16 im2col scratch.

    `u16` holds bf16 activations for output rows [r0-halo, r0+TH+halo) with
    the H halo rows already zeroed at the image boundary, so every tap store
    is a full-height slab; only the 1-wide W halo strip of the W-shifted taps
    is zeroed explicitly (no full-buffer memset)."""
    C = u16.shape[-1]
    zstrip = jnp.zeros((TH, 1, C), jnp.bfloat16)
    for dh in range(3):
        rows = u16[halo - 1 + dh: halo - 1 + dh + TH]        # (TH, Ws, C)
        for dw in range(3):
            base = (dh * 3 + dw) * C
            if dw == 0:      # col[:, ow] = u[:, ow-1]; zero at ow = 0
                col_ref[:, 1:, base:base + C] = rows[:, :Ws - 1, :]
                col_ref[:, 0:1, base:base + C] = zstrip
            elif dw == 2:    # col[:, ow] = u[:, ow+1]; zero at ow = Ws-1
                col_ref[:, :Ws - 1, base:base + C] = rows[:, 1:, :]
                col_ref[:, Ws - 1:Ws, base:base + C] = zstrip
            else:
                col_ref[:, :, base:base + C] = rows


def _bn_relu_up_conv3_kernel(x_ref, scale_ref, shift_ref, w_ref, b_ref,
                             t1_ref, sum_ref, cssq_ref, col_ref):
    """relu(x*scale+shift) -> nearest-upsample -> 3x3 'same' conv (+bias) for
    one (TH x Ws) output-row block as a single bf16 im2col matmul; also emits
    the per-block sum and centred sum-of-squares of the conv output (for the
    following BatchNorm)."""
    H, W, Ci = x_ref.shape
    TH, Ws, Co = t1_ref.shape
    s = Ws // W
    SHc = TH // s
    r = pl.program_id(1)
    nrow = pl.num_programs(1)
    src0 = r * SHc

    def bn_relu(v):
        return jnp.maximum(v * scale_ref[...] + shift_ref[...], 0.0)

    # BN1+ReLU on the needed source rows plus a 1-source-row halo each side;
    # halo rows outside the image are zeroed (== the conv's 'same' zero
    # padding of the *upsampled* feature map).
    core = bn_relu(x_ref[pl.ds(src0, SHc)])
    top = bn_relu(x_ref[pl.ds(jnp.maximum(src0 - 1, 0), 1)])
    bot = bn_relu(x_ref[pl.ds(jnp.minimum(src0 + SHc, H - 1), 1)])
    top = top * (r > 0).astype(jnp.float32)
    bot = bot * (r < nrow - 1).astype(jnp.float32)
    t_ext = jnp.concatenate([top, core, bot], axis=0)        # (SHc+2, W, Ci)

    u16 = _upsample_nearest(t_ext, s).astype(jnp.bfloat16)   # (TH+2s, Ws, Ci)
    _store_taps(col_ref, u16, TH, Ws, halo=s)

    patches = col_ref[...].reshape(TH * Ws, 9 * Ci)
    acc = jnp.dot(patches, w_ref[...],
                  preferred_element_type=jnp.float32) + b_ref[...]
    t1_ref[...] = acc.reshape(TH, Ws, Co).astype(t1_ref.dtype)

    # Per-block stats for BatchNorm2, centred per block to avoid
    # E[x^2]-E[x]^2 cancellation; combined across blocks in the wrapper.
    bsum = jnp.sum(acc, axis=0, keepdims=True)
    bmean = bsum * (1.0 / float(TH * Ws))
    d = acc - bmean
    sum_ref[...] = bsum
    cssq_ref[...] = jnp.sum(d * d, axis=0, keepdims=True)


def _bn_relu_conv3_ident_kernel(t1_ref, x_ref, scale_ref, shift_ref,
                                w_ref, b_ref, out_ref, col_ref):
    """relu(t1*scale+shift) -> 3x3 'same' conv, fused with the spectral-norm
    1x1 'ident' conv on nearest-upsample(x) and the residual add, for one
    (TH x Ws) output-row block: the ident channels are appended to K so
    everything is a single bf16 matmul."""
    Hs, Ws, Cm = t1_ref.shape
    H, W, Ci = x_ref.shape
    TH = out_ref.shape[0]
    s = Hs // H
    r = pl.program_id(1)
    nrow = pl.num_programs(1)
    r0 = r * TH

    def bn_relu(v):
        return jnp.maximum(v.astype(jnp.float32) * scale_ref[...]
                           + shift_ref[...], 0.0)

    core = bn_relu(t1_ref[pl.ds(r0, TH)])
    top = bn_relu(t1_ref[pl.ds(jnp.maximum(r0 - 1, 0), 1)])
    bot = bn_relu(t1_ref[pl.ds(jnp.minimum(r0 + TH, Hs - 1), 1)])
    top = top * (r > 0).astype(jnp.float32)
    bot = bot * (r < nrow - 1).astype(jnp.float32)
    t16 = jnp.concatenate([top, core, bot], axis=0).astype(jnp.bfloat16)

    _store_taps(col_ref, t16, TH, Ws, halo=1)

    # ident branch columns: nearest-upsampled raw input (1x1 conv == matmul).
    xs = x_ref[pl.ds(r * (TH // s), TH // s)]                # (TH//s, W, Ci)
    col_ref[:, :, 9 * Cm:9 * Cm + Ci] = (
        _upsample_nearest(xs, s).astype(jnp.bfloat16))

    K = 9 * Cm + Ci
    patches = col_ref[...].reshape(TH * Ws, K)
    acc = jnp.dot(patches, w_ref[...],
                  preferred_element_type=jnp.float32) + b_ref[...]
    out_ref[...] = acc.reshape(TH, Ws, out_ref.shape[-1])


def _choose_tile_h(Hs, s, bytes_per_row, target_bytes=6 << 20):
    """Largest output-row tile TH (multiple of s, divisor of Hs) whose im2col
    block stays under `target_bytes`; capped at Hs//2 so the grid has >= 2
    row blocks (megacore sharding, and the halo path is exercised)."""
    cap = Hs // 2 if Hs >= 2 * s else Hs
    best = s
    th = s
    while th <= cap:
        if Hs % th == 0 and th * bytes_per_row <= target_bytes:
            best = th
        th += s
    return best


def _vmem_limit_bytes(block_bytes, scratch_bytes):
    # Double-buffered pipelined blocks + persistent scratch, with headroom
    # for Mosaic-internal temporaries; clamped so small shapes keep default
    # behaviour and large shapes stay well under physical VMEM (v7x: 64 MiB).
    est = 2 * block_bytes + scratch_bytes
    return int(min(96 << 20, max(32 << 20, 2 * est)))


def up_block_forward(x_nchw, params, scale_factor):
    eps = 1e-5
    N, Cin, H, W = x_nchw.shape
    Cout = params["b_conv1"].shape[0]
    s = scale_factor
    Hs, Ws = H * s, W * s
    Cin_p = _round_up(Cin, _LANE)     # lane-aligned per-tap channel stride
    Cout_p = _round_up(Cout, _LANE)   # lane-dense output width

    x = jnp.transpose(x_nchw, (0, 2, 3, 1)).astype(jnp.float32)   # NHWC

    # --- BatchNorm1 batch statistics (training mode, biased variance) ---
    # TODO(synk): fuse this reduction into kernel 1's input pass if the model
    # is HBM-bound (x is read here and again by both kernels).
    mean1 = jnp.mean(x, axis=(0, 1, 2))
    var1 = jnp.var(x, axis=(0, 1, 2))
    scale1 = params["bn1_gamma"] / jnp.sqrt(var1 + eps)
    shift1 = params["bn1_beta"] - mean1 * scale1
    scale1_p = _pad_last(scale1, Cin_p).reshape(1, Cin_p)
    shift1_p = _pad_last(shift1, Cin_p).reshape(1, Cin_p)

    # Lane-pad x's channels only when Cin is not already a multiple of 128
    # (production channel counts take the no-copy path); padded channels are
    # zero and meet zero weight rows, so they contribute nothing.
    xp = x if Cin_p == Cin else _pad_last(x, Cin_p)

    # Weights in im2col layout: per-tap K stride padded to Cin_p/Cout_p (zero
    # rows) and the output dim padded to Cout_p (zero cols) so every tap
    # store is lane-aligned and every output store is lane-dense.
    w1 = _pad_axis(_pad_axis(params["w_conv1"], 1, Cin_p), 2, Cout_p)
    w1_col = w1.reshape(9 * Cin_p, Cout_p).astype(jnp.bfloat16)
    b1_p = _pad_last(params["b_conv1"], Cout_p).reshape(1, Cout_p)
    b1_p = b1_p.astype(jnp.float32)

    # Output-row tiling: the col scratch is the largest VMEM consumer, so
    # size TH from it (bf16) and keep >= 2 row blocks for v7x's 2 TCs.
    lanes = max(9 * Cin_p, 9 * Cout_p + Cin_p)
    TH = _choose_tile_h(Hs, s, Ws * lanes * 2)
    R = Hs // TH

    blk1 = (H * W * Cin_p * 4 + 2 * Cin_p * 4 + 9 * Cin_p * Cout_p * 2
            + Cout_p * 4 + TH * Ws * Cout_p * 2 + 2 * Cout_p * 4)
    vmem1 = _vmem_limit_bytes(blk1, TH * Ws * 9 * Cin_p * 2)

    # --- kernel 1: BN1+ReLU -> upsample -> conv3x3 (+ BN2 stats) ---
    t1, t1_sum, t1_cssq = pl.pallas_call(
        _bn_relu_up_conv3_kernel,
        out_shape=(
            jax.ShapeDtypeStruct((N, Hs, Ws, Cout_p), jnp.bfloat16),
            jax.ShapeDtypeStruct((N, R, 1, Cout_p), jnp.float32),
            jax.ShapeDtypeStruct((N, R, 1, Cout_p), jnp.float32),
        ),
        grid=(N, R),
        in_specs=[
            pl.BlockSpec((None, H, W, Cin_p), lambda b, r: (b, 0, 0, 0)),
            pl.BlockSpec((1, Cin_p), lambda b, r: (0, 0)),
            pl.BlockSpec((1, Cin_p), lambda b, r: (0, 0)),
            pl.BlockSpec((9 * Cin_p, Cout_p), lambda b, r: (0, 0)),
            pl.BlockSpec((1, Cout_p), lambda b, r: (0, 0)),
        ],
        out_specs=(
            pl.BlockSpec((None, TH, Ws, Cout_p), lambda b, r: (b, r, 0, 0)),
            pl.BlockSpec((None, None, 1, Cout_p), lambda b, r: (b, r, 0, 0)),
            pl.BlockSpec((None, None, 1, Cout_p), lambda b, r: (b, r, 0, 0)),
        ),
        scratch_shapes=[pltpu.VMEM((TH, Ws, 9 * Cin_p), jnp.bfloat16)],
        compiler_params=pltpu.CompilerParams(
            dimension_semantics=("parallel", "parallel"),
            vmem_limit_bytes=vmem1),
    )(xp, scale1_p, shift1_p, w1_col, b1_p)

    # --- BatchNorm2 batch statistics (parallel-variance combination) ---
    cnt_b = TH * Ws
    total = N * R * cnt_b
    sum_c = t1_sum[..., :Cout]                                  # (N, R, 1, Cout)
    cssq_c = t1_cssq[..., :Cout]
    mean2 = jnp.sum(sum_c, axis=(0, 1, 2)) / total              # (Cout,)
    mean_b = sum_c[:, :, 0, :] / cnt_b                          # (N, R, Cout)
    var2 = (jnp.sum(cssq_c, axis=(0, 1, 2))
            + cnt_b * jnp.sum((mean_b - mean2) ** 2, axis=(0, 1))) / total
    scale2 = params["bn2_gamma"] / jnp.sqrt(var2 + eps)
    shift2 = params["bn2_beta"] - mean2 * scale2
    scale2_p = _pad_last(scale2, Cout_p).reshape(1, Cout_p)
    shift2_p = _pad_last(shift2, Cout_p).reshape(1, Cout_p)

    # Fused weights for kernel 2: [ conv2 taps | spectral-norm 1x1 ident ].
    w2 = _pad_axis(_pad_axis(params["w_conv2"], 1, Cout_p), 2, Cout_p)
    w2_col = w2.reshape(9 * Cout_p, Cout_p)
    w_id = _pad_axis(_pad_axis(params["w_ident"], 0, Cin_p), 1, Cout_p)
    w_fused = jnp.concatenate([w2_col, w_id], axis=0).astype(jnp.bfloat16)
    b_fused = _pad_last(params["b_conv2"] + params["b_ident"], Cout_p)
    b_fused = b_fused.reshape(1, Cout_p).astype(jnp.float32)

    blk2 = (Hs * Ws * Cout_p * 2 + H * W * Cin_p * 4 + 2 * Cout_p * 4
            + (9 * Cout_p + Cin_p) * Cout_p * 2 + Cout_p * 4
            + TH * Ws * Cout_p * 4)
    vmem2 = _vmem_limit_bytes(blk2, TH * Ws * (9 * Cout_p + Cin_p) * 2)

    # --- kernel 2: BN2+ReLU -> conv3x3, fused with ident (1x1) + add ---
    out_p = pl.pallas_call(
        _bn_relu_conv3_ident_kernel,
        out_shape=jax.ShapeDtypeStruct((N, Hs, Ws, Cout_p), jnp.float32),
        grid=(N, R),
        in_specs=[
            pl.BlockSpec((None, Hs, Ws, Cout_p), lambda b, r: (b, 0, 0, 0)),
            pl.BlockSpec((None, H, W, Cin_p), lambda b, r: (b, 0, 0, 0)),
            pl.BlockSpec((1, Cout_p), lambda b, r: (0, 0)),
            pl.BlockSpec((1, Cout_p), lambda b, r: (0, 0)),
            pl.BlockSpec((9 * Cout_p + Cin_p, Cout_p), lambda b, r: (0, 0)),
            pl.BlockSpec((1, Cout_p), lambda b, r: (0, 0)),
        ],
        out_specs=pl.BlockSpec((None, TH, Ws, Cout_p),
                               lambda b, r: (b, r, 0, 0)),
        scratch_shapes=[
            pltpu.VMEM((TH, Ws, 9 * Cout_p + Cin_p), jnp.bfloat16)],
        compiler_params=pltpu.CompilerParams(
            dimension_semantics=("parallel", "parallel"),
            vmem_limit_bytes=vmem2),
    )(t1, xp, scale2_p, shift2_p, w_fused, b_fused)

    # TODO(synk): for scale_factor=2, kernel 1 could use the 4-phase sub-pixel
    # decomposition (~2.25x fewer MACs, 2.25x smaller col scratch); and for
    # very large images the full-image x / t1 input blocks should also be
    # row-tiled via pl.ANY + manual halo DMAs.

    return jnp.transpose(out_p[..., :Cout], (0, 3, 1, 2))    # back to NCHW


def init_params(key, in_ch, channel_factor):
    """Deterministic synthetic parameters (shapes per Up_block.__init__)."""
    out_ch = in_ch // channel_factor
    ks = jax.random.split(key, 7)

    # ident: spectral-norm'd 1x1 conv; torch weight (out, in, 1, 1)
    w_id = jax.random.normal(ks[0], (out_ch, in_ch), jnp.float32) * 0.1
    b_id = jax.random.normal(ks[1], (out_ch,), jnp.float32) * 0.05
    # one power iteration (as torch.nn.utils.spectral_norm does per forward)
    u = jax.random.normal(ks[2], (out_ch,), jnp.float32)
    u = u / (jnp.linalg.norm(u) + 1e-12)
    v = w_id.T @ u
    v = v / (jnp.linalg.norm(v) + 1e-12)
    u = w_id @ v
    u = u / (jnp.linalg.norm(u) + 1e-12)
    sigma = u @ (w_id @ v)
    w_id_sn = w_id / sigma

    # fmap convs; torch layout (out, in, kh, kw) -> kernel layout (kh*kw, in, out)
    w1 = jax.random.normal(ks[3], (out_ch, in_ch, 3, 3), jnp.float32) * 0.1
    b1 = jax.random.normal(ks[4], (out_ch,), jnp.float32) * 0.05
    w2 = jax.random.normal(ks[5], (out_ch, out_ch, 3, 3), jnp.float32) * 0.1
    b2 = jax.random.normal(ks[6], (out_ch,), jnp.float32) * 0.05

    return {
        "w_ident": w_id_sn.T,                                            # (in, out)
        "b_ident": b_id,
        "w_conv1": jnp.transpose(w1, (2, 3, 1, 0)).reshape(9, in_ch, out_ch),
        "b_conv1": b1,
        "w_conv2": jnp.transpose(w2, (2, 3, 1, 0)).reshape(9, out_ch, out_ch),
        "b_conv2": b2,
        # BatchNorm default init: gamma=1, beta=0 (PyTorch default).
        "bn1_gamma": jnp.ones((in_ch,), jnp.float32),
        "bn1_beta": jnp.zeros((in_ch,), jnp.float32),
        "bn2_gamma": jnp.ones((out_ch,), jnp.float32),
        "bn2_beta": jnp.zeros((out_ch,), jnp.float32),
    }


def up_block_reference(x, params, scale_factor):
    """Pure-JAX (XLA, f32) reference mirroring the PyTorch forward, NCHW."""
    eps = 1e-5
    s = scale_factor

    def bn_relu(t, gamma, beta):
        m = jnp.mean(t, axis=(0, 2, 3), keepdims=True)
        v = jnp.var(t, axis=(0, 2, 3), keepdims=True)
        return jnp.maximum(
            (t - m) / jnp.sqrt(v + eps) * gamma.reshape(1, -1, 1, 1)
            + beta.reshape(1, -1, 1, 1), 0.0)

    def up(t):
        return jnp.repeat(jnp.repeat(t, s, axis=2), s, axis=3)

    def conv(t, w_kern, b):
        k2, ci, co = w_kern.shape
        k = int(round(k2 ** 0.5))
        w = jnp.transpose(w_kern.reshape(k, k, ci, co), (3, 2, 0, 1))  # OIHW
        y = lax.conv_general_dilated(
            t, w, (1, 1), "SAME",
            dimension_numbers=("NCHW", "OIHW", "NCHW"))
        return y + b.reshape(1, -1, 1, 1)

    ci, co = params["w_ident"].shape
    wi = params["w_ident"].T.reshape(co, ci, 1, 1)
    ident = lax.conv_general_dilated(
        up(x), wi, (1, 1), "SAME",
        dimension_numbers=("NCHW", "OIHW", "NCHW"))
    ident = ident + params["b_ident"].reshape(1, -1, 1, 1)

    h = up(bn_relu(x, params["bn1_gamma"], params["bn1_beta"]))
    h = conv(h, params["w_conv1"], params["b_conv1"])
    h = bn_relu(h, params["bn2_gamma"], params["bn2_beta"])
    h = conv(h, params["w_conv2"], params["b_conv2"])
    return ident + h


if __name__ == "__main__":
    key = jax.random.PRNGKey(0)
    kx, kp = jax.random.split(key)

    N, in_ch, H, W = 2, 8, 8, 8
    scale_factor, channel_factor = 2, 2

    x = jax.random.normal(kx, (N, in_ch, H, W), jnp.float32)
    params = init_params(kp, in_ch, channel_factor)

    fwd = jax.jit(functools.partial(up_block_forward, scale_factor=scale_factor))
    out = fwd(x, params)
    out = jax.block_until_ready(out)

    expected_shape = (N, in_ch // channel_factor, H * scale_factor, W * scale_factor)
    assert out.shape == expected_shape, (out.shape, expected_shape)

    # bf16 MXU operands and a bf16 HBM t1 intermediate (f32 accumulation and
    # BN statistics) vs an all-f32 XLA reference: tolerance widened accordingly.
    ref = up_block_reference(x, params, scale_factor)
    assert jnp.allclose(out, ref, atol=4e-2, rtol=4e-2), float(
        jnp.max(jnp.abs(out - ref)))

    print("KERNEL_OK")
</pallas_src>

<mosaic_0001>
module attributes {stable_mosaic.version = 11 : i64} {
  func.func @_bn_relu_up_conv3_kernel(%arg0: i32, %arg1: i32, %arg2: memref<1x8x8x128xf32, #tpu.memory_space<vmem>>, %arg3: memref<1x128xf32, #tpu.memory_space<vmem>>, %arg4: memref<1x128xf32, #tpu.memory_space<vmem>>, %arg5: memref<1152x128xbf16, #tpu.memory_space<vmem>>, %arg6: memref<1x128xf32, #tpu.memory_space<vmem>>, %arg7: memref<1x8x16x128xbf16, #tpu.memory_space<vmem>>, %arg8: memref<1x1x1x128xf32, #tpu.memory_space<vmem>>, %arg9: memref<1x1x1x128xf32, #tpu.memory_space<vmem>>, %arg10: memref<8x16x1152xbf16, #tpu.memory_space<vmem>>) attributes {dimension_semantics = [#tpu.dimension_semantics<parallel>, #tpu.dimension_semantics<parallel>], iteration_bounds = array<i64: 2, 2>, scalar_prefetch = 0 : i64, scratch_operands = 1 : i64, tpu.core_type = #tpu.core_type<tc>, window_params = [{transform_indices = @transform_0, window_bounds = array<i64: 1, 8, 8, 128>}, {pipeline_mode = #tpu.pipeline_mode<synchronous>, transform_indices = @transform_1, window_bounds = array<i64: 1, 128>}, {pipeline_mode = #tpu.pipeline_mode<synchronous>, transform_indices = @transform_2, window_bounds = array<i64: 1, 128>}, {pipeline_mode = #tpu.pipeline_mode<synchronous>, transform_indices = @transform_3, window_bounds = array<i64: 1152, 128>}, {pipeline_mode = #tpu.pipeline_mode<synchronous>, transform_indices = @transform_4, window_bounds = array<i64: 1, 128>}, {transform_indices = @transform_5, window_bounds = array<i64: 1, 8, 16, 128>}, {transform_indices = @transform_6, window_bounds = array<i64: 1, 1, 1, 128>}, {transform_indices = @transform_7, window_bounds = array<i64: 1, 1, 1, 128>}]} {
    %c4_i32 = arith.constant 4 : i32
    %0 = arith.muli %arg1, %c4_i32 : i32
    %c0 = arith.constant 0 : index
    %1 = arith.index_cast %0 : i32 to index
    %c0_0 = arith.constant 0 : index
    %c0_1 = arith.constant 0 : index
    %2 = vector.load %arg2[%c0, %1, %c0_0, %c0_1] : memref<1x8x8x128xf32, #tpu.memory_space<vmem>>, vector<1x4x8x128xf32>
    %3 = vector.shape_cast %2 : vector<1x4x8x128xf32> to vector<4x8x128xf32>
    %c0_2 = arith.constant 0 : index
    %c0_3 = arith.constant 0 : index
    %4 = vector.load %arg3[%c0_2, %c0_3] : memref<1x128xf32, #tpu.memory_space<vmem>>, vector<1x128xf32>
    %5 = vector.shape_cast %4 : vector<1x128xf32> to vector<1x1x128xf32>
    %6 = vector.broadcast %5 : vector<1x1x128xf32> to vector<4x8x128xf32>
    %7 = arith.mulf %3, %6 : vector<4x8x128xf32>
    %c0_4 = arith.constant 0 : index
    %c0_5 = arith.constant 0 : index
    %8 = vector.load %arg4[%c0_4, %c0_5] : memref<1x128xf32, #tpu.memory_space<vmem>>, vector<1x128xf32>
    %9 = vector.shape_cast %8 : vector<1x128xf32> to vector<1x1x128xf32>
    %10 = vector.broadcast %9 : vector<1x1x128xf32> to vector<4x8x128xf32>
    %11 = arith.addf %7, %10 : vector<4x8x128xf32>
    %cst = arith.constant 0.000000e+00 : f32
    %12 = vector.broadcast %cst : f32 to vector<4x8x128xf32>
    %13 = arith.maximumf %11, %12 : vector<4x8x128xf32>
    %c1_i32 = arith.constant 1 : i32
    %14 = arith.subi %0, %c1_i32 : i32
    %c0_i32 = arith.constant 0 : i32
    %15 = arith.maxsi %14, %c0_i32 : i32
    %c0_6 = arith.constant 0 : index
    %16 = arith.index_cast %15 : i32 to index
    %c0_7 = arith.constant 0 : index
    %c0_8 = arith.constant 0 : index
    %17 = vector.load %arg2[%c0_6, %16, %c0_7, %c0_8] : memref<1x8x8x128xf32, #tpu.memory_space<vmem>>, vector<1x1x8x128xf32>
    %18 = vector.shape_cast %17 : vector<1x1x8x128xf32> to vector<1x8x128xf32>
    %c0_9 = arith.constant 0 : index
    %c0_10 = arith.constant 0 : index
    %19 = vector.load %arg3[%c0_9, %c0_10] : memref<1x128xf32, #tpu.memory_space<vmem>>, vector<1x128xf32>
    %20 = vector.shape_cast %19 : vector<1x128xf32> to vector<1x1x128xf32>
    %21 = vector.broadcast %20 : vector<1x1x128xf32> to vector<1x8x128xf32>
    %22 = arith.mulf %18, %21 : vector<1x8x128xf32>
    %c0_11 = arith.constant 0 : index
    %c0_12 = arith.constant 0 : index
    %23 = vector.load %arg4[%c0_11, %c0_12] : memref<1x128xf32, #tpu.memory_space<vmem>>, vector<1x128xf32>
    %24 = vector.shape_cast %23 : vector<1x128xf32> to vector<1x1x128xf32>
    %25 = vector.broadcast %24 : vector<1x1x128xf32> to vector<1x8x128xf32>
    %26 = arith.addf %22, %25 : vector<1x8x128xf32>
    %cst_13 = arith.constant 0.000000e+00 : f32
    %27 = vector.broadcast %cst_13 : f32 to vector<1x8x128xf32>
    %28 = arith.maximumf %26, %27 : vector<1x8x128xf32>
    %c4_i32_14 = arith.constant 4 : i32
    %29 = arith.addi %0, %c4_i32_14 : i32
    %c7_i32 = arith.constant 7 : i32
    %30 = arith.minsi %29, %c7_i32 : i32
    %c0_15 = arith.constant 0 : index
    %31 = arith.index_cast %30 : i32 to index
    %c0_16 = arith.constant 0 : index
    %c0_17 = arith.constant 0 : index
    %32 = vector.load %arg2[%c0_15, %31, %c0_16, %c0_17] : memref<1x8x8x128xf32, #tpu.memory_space<vmem>>, vector<1x1x8x128xf32>
    %33 = vector.shape_cast %32 : vector<1x1x8x128xf32> to vector<1x8x128xf32>
    %c0_18 = arith.constant 0 : index
    %c0_19 = arith.constant 0 : index
    %34 = vector.load %arg3[%c0_18, %c0_19] : memref<1x128xf32, #tpu.memory_space<vmem>>, vector<1x128xf32>
    %35 = vector.shape_cast %34 : vector<1x128xf32> to vector<1x1x128xf32>
    %36 = vector.broadcast %35 : vector<1x1x128xf32> to vector<1x8x128xf32>
    %37 = arith.mulf %33, %36 : vector<1x8x128xf32>
    %c0_20 = arith.constant 0 : index
    %c0_21 = arith.constant 0 : index
    %38 = vector.load %arg4[%c0_20, %c0_21] : memref<1x128xf32, #tpu.memory_space<vmem>>, vector<1x128xf32>
    %39 = vector.shape_cast %38 : vector<1x128xf32> to vector<1x1x128xf32>
    %40 = vector.broadcast %39 : vector<1x1x128xf32> to vector<1x8x128xf32>
    %41 = arith.addf %37, %40 : vector<1x8x128xf32>
    %cst_22 = arith.constant 0.000000e+00 : f32
    %42 = vector.broadcast %cst_22 : f32 to vector<1x8x128xf32>
    %43 = arith.maximumf %41, %42 : vector<1x8x128xf32>
    %c0_i32_23 = arith.constant 0 : i32
    %44 = arith.cmpi sgt, %arg1, %c0_i32_23 : i32
    %45 = arith.extui %44 : i1 to i32
    %46 = arith.sitofp %45 : i32 to f32
    %47 = vector.broadcast %46 : f32 to vector<1x8x128xf32>
    %48 = arith.mulf %28, %47 : vector<1x8x128xf32>
    %c1_i32_24 = arith.constant 1 : i32
    %49 = arith.cmpi slt, %arg1, %c1_i32_24 : i32
    %50 = arith.extui %49 : i1 to i32
    %51 = arith.sitofp %50 : i32 to f32
    %52 = vector.broadcast %51 : f32 to vector<1x8x128xf32>
    %53 = arith.mulf %43, %52 : vector<1x8x128xf32>
    %54 = tpu.concatenate %48, %13, %53 in 0 : vector<1x8x128xf32>, vector<4x8x128xf32>, vector<1x8x128xf32> -> vector<6x8x128xf32>
    %55 = vector.shape_cast %54 : vector<6x8x128xf32> to vector<6x8x1x128xf32>
    %56 = vector.shape_cast %55 : vector<6x8x1x128xf32> to vector<6x8x1x128xf32>
    %57 = vector.broadcast %56 : vector<6x8x1x128xf32> to vector<6x8x2x128xf32>
    %58 = vector.shape_cast %57 : vector<6x8x2x128xf32> to vector<96x128xf32>
    %59 = vector.shape_cast %58 : vector<96x128xf32> to vector<6x16x128xf32>
    %60 = vector.shape_cast %59 : vector<6x16x128xf32> to vector<6x1x16x128xf32>
    %61 = vector.shape_cast %60 : vector<6x1x16x128xf32> to vector<6x1x16x128xf32>
    %62 = vector.broadcast %61 : vector<6x1x16x128xf32> to vector<6x2x16x128xf32>
    %63 = vector.shape_cast %62 : vector<6x2x16x128xf32> to vector<12x16x128xf32>
    %64 = arith.truncf %63 : vector<12x16x128xf32> to vector<12x16x128xbf16>
    %cst_25 = arith.constant 0.000000e+00 : bf16
    %65 = vector.broadcast %cst_25 : bf16 to vector<8x1x128xbf16>
    %66 = vector.extract_strided_slice %64 {offsets = [1, 0, 0], sizes = [8, 16, 128], strides = [1, 1, 1]} : vector<12x16x128xbf16> to vector<8x16x128xbf16>
    %67 = vector.extract_strided_slice %66 {offsets = [0, 0, 0], sizes = [8, 15, 128], strides = [1, 1, 1]} : vector<8x16x128xbf16> to vector<8x15x128xbf16>
    %c0_26 = arith.constant 0 : index
    %c1 = arith.constant 1 : index
    %c0_27 = arith.constant 0 : index
    %68 = vector.load %arg10[%c0_26, %c1, %c0_27] : memref<8x16x1152xbf16, #tpu.memory_space<vmem>>, vector<8x15x128xbf16>
    tpu.vector_store %arg10[%c0_26, %c1, %c0_27], %67 {strides = array<i32>} : memref<8x16x1152xbf16, #tpu.memory_space<vmem>>, vector<8x15x128xbf16>,
    %c0_28 = arith.constant 0 : index
    %c0_29 = arith.constant 0 : index
    %c0_30 = arith.constant 0 : index
    %69 = vector.load %arg10[%c0_28, %c0_29, %c0_30] : memref<8x16x1152xbf16, #tpu.memory_space<vmem>>, vector<8x1x128xbf16>
    tpu.vector_store %arg10[%c0_28, %c0_29, %c0_30], %65 {strides = array<i32>} : memref<8x16x1152xbf16, #tpu.memory_space<vmem>>, vector<8x1x128xbf16>,
    %c0_31 = arith.constant 0 : index
    %c0_32 = arith.constant 0 : index
    %c128 = arith.constant 128 : index
    %70 = vector.load %arg10[%c0_31, %c0_32, %c128] : memref<8x16x1152xbf16, #tpu.memory_space<vmem>>, vector<8x16x128xbf16>
    tpu.vector_store %arg10[%c0_31, %c0_32, %c128], %66 {strides = array<i32>} : memref<8x16x1152xbf16, #tpu.memory_space<vmem>>, vector<8x16x128xbf16>,
    %71 = vector.extract_strided_slice %66 {offsets = [0, 1, 0], sizes = [8, 15, 128], strides = [1, 1, 1]} : vector<8x16x128xbf16> to vector<8x15x128xbf16>
    %c0_33 = arith.constant 0 : index
    %c0_34 = arith.constant 0 : index
    %c256 = arith.constant 256 : index
    %72 = vector.load %arg10[%c0_33, %c0_34, %c256] : memref<8x16x1152xbf16, #tpu.memory_space<vmem>>, vector<8x15x128xbf16>
    tpu.vector_store %arg10[%c0_33, %c0_34, %c256], %71 {strides = array<i32>} : memref<8x16x1152xbf16, #tpu.memory_space<vmem>>, vector<8x15x128xbf16>,
    %c0_35 = arith.constant 0 : index
    %c15 = arith.constant 15 : index
    %c256_36 = arith.constant 256 : index
    %73 = vector.load %arg10[%c0_35, %c15, %c256_36] : memref<8x16x1152xbf16, #tpu.memory_space<vmem>>, vector<8x1x128xbf16>
    tpu.vector_store %arg10[%c0_35, %c15, %c256_36], %65 {strides = array<i32>} : memref<8x16x1152xbf16, #tpu.memory_space<vmem>>, vector<8x1x128xbf16>,
    %74 = vector.extract_strided_slice %64 {offsets = [2, 0, 0], sizes = [8, 16, 128], strides = [1, 1, 1]} : vector<12x16x128xbf16> to vector<8x16x128xbf16>
    %75 = vector.extract_strided_slice %74 {offsets = [0, 0, 0], sizes = [8, 15, 128], strides = [1, 1, 1]} : vector<8x16x128xbf16> to vector<8x15x128xbf16>
    %c0_37 = arith.constant 0 : index
    %c1_38 = arith.constant 1 : index
    %c384 = arith.constant 384 : index
    %76 = vector.load %arg10[%c0_37, %c1_38, %c384] : memref<8x16x1152xbf16, #tpu.memory_space<vmem>>, vector<8x15x128xbf16>
    tpu.vector_store %arg10[%c0_37, %c1_38, %c384], %75 {strides = array<i32>} : memref<8x16x1152xbf16, #tpu.memory_space<vmem>>, vector<8x15x128xbf16>,
    %c0_39 = arith.constant 0 : index
    %c0_40 = arith.constant 0 : index
    %c384_41 = arith.constant 384 : index
    %77 = vector.load %arg10[%c0_39, %c0_40, %c384_41] : memref<8x16x1152xbf16, #tpu.memory_space<vmem>>, vector<8x1x128xbf16>
    tpu.vector_store %arg10[%c0_39, %c0_40, %c384_41], %65 {strides = array<i32>} : memref<8x16x1152xbf16, #tpu.memory_space<vmem>>, vector<8x1x128xbf16>,
    %c0_42 = arith.constant 0 : index
    %c0_43 = arith.constant 0 : index
    %c512 = arith.constant 512 : index
    %78 = vector.load %arg10[%c0_42, %c0_43, %c512] : memref<8x16x1152xbf16, #tpu.memory_space<vmem>>, vector<8x16x128xbf16>
    tpu.vector_store %arg10[%c0_42, %c0_43, %c512], %74 {strides = array<i32>} : memref<8x16x1152xbf16, #tpu.memory_space<vmem>>, vector<8x16x128xbf16>,
    %79 = vector.extract_strided_slice %74 {offsets = [0, 1, 0], sizes = [8, 15, 128], strides = [1, 1, 1]} : vector<8x16x128xbf16> to vector<8x15x128xbf16>
    %c0_44 = arith.constant 0 : index
    %c0_45 = arith.constant 0 : index
    %c640 = arith.constant 640 : index
    %80 = vector.load %arg10[%c0_44, %c0_45, %c640] : memref<8x16x1152xbf16, #tpu.memory_space<vmem>>, vector<8x15x128xbf16>
    tpu.vector_store %arg10[%c0_44, %c0_45, %c640], %79 {strides = array<i32>} : memref<8x16x1152xbf16, #tpu.memory_space<vmem>>, vector<8x15x128xbf16>,
    %c0_46 = arith.constant 0 : index
    %c15_47 = arith.constant 15 : index
    %c640_48 = arith.constant 640 : index
    %81 = vector.load %arg10[%c0_46, %c15_47, %c640_48] : memref<8x16x1152xbf16, #tpu.memory_space<vmem>>, vector<8x1x128xbf16>
    tpu.vector_store %arg10[%c0_46, %c15_47, %c640_48], %65 {strides = array<i32>} : memref<8x16x1152xbf16, #tpu.memory_space<vmem>>, vector<8x1x128xbf16>,
    %82 = vector.extract_strided_slice %64 {offsets = [3, 0, 0], sizes = [8, 16, 128], strides = [1, 1, 1]} : vector<12x16x128xbf16> to vector<8x16x128xbf16>
    %83 = vector.extract_strided_slice %82 {offsets = [0, 0, 0], sizes = [8, 15, 128], strides = [1, 1, 1]} : vector<8x16x128xbf16> to vector<8x15x128xbf16>
    %c0_49 = arith.constant 0 : index
    %c1_50 = arith.constant 1 : index
    %c768 = arith.constant 768 : index
    %84 = vector.load %arg10[%c0_49, %c1_50, %c768] : memref<8x16x1152xbf16, #tpu.memory_space<vmem>>, vector<8x15x128xbf16>
    tpu.vector_store %arg10[%c0_49, %c1_50, %c768], %83 {strides = array<i32>} : memref<8x16x1152xbf16, #tpu.memory_space<vmem>>, vector<8x15x128xbf16>,
    %c0_51 = arith.constant 0 : index
    %c0_52 = arith.constant 0 : index
    %c768_53 = arith.constant 768 : index
    %85 = vector.load %arg10[%c0_51, %c0_52, %c768_53] : memref<8x16x1152xbf16, #tpu.memory_space<vmem>>, vector<8x1x128xbf16>
    tpu.vector_store %arg10[%c0_51, %c0_52, %c768_53], %65 {strides = array<i32>} : memref<8x16x1152xbf16, #tpu.memory_space<vmem>>, vector<8x1x128xbf16>,
    %c0_54 = arith.constant 0 : index
    %c0_55 = arith.constant 0 : index
    %c896 = arith.constant 896 : index
    %86 = vector.load %arg10[%c0_54, %c0_55, %c896] : memref<8x16x1152xbf16, #tpu.memory_space<vmem>>, vector<8x16x128xbf16>
    tpu.vector_store %arg10[%c0_54, %c0_55, %c896], %82 {strides = array<i32>} : memref<8x16x1152xbf16, #tpu.memory_space<vmem>>, vector<8x16x128xbf16>,
    %87 = vector.extract_strided_slice %82 {offsets = [0, 1, 0], sizes = [8, 15, 128], strides = [1, 1, 1]} : vector<8x16x128xbf16> to vector<8x15x128xbf16>
    %c0_56 = arith.constant 0 : index
    %c0_57 = arith.constant 0 : index
    %c1024 = arith.constant 1024 : index
    %88 = vector.load %arg10[%c0_56, %c0_57, %c1024] : memref<8x16x1152xbf16, #tpu.memory_space<vmem>>, vector<8x15x128xbf16>
    tpu.vector_store %arg10[%c0_56, %c0_57, %c1024], %87 {strides = array<i32>} : memref<8x16x1152xbf16, #tpu.memory_space<vmem>>, vector<8x15x128xbf16>,
    %c0_58 = arith.constant 0 : index
    %c15_59 = arith.constant 15 : index
    %c1024_60 = arith.constant 1024 : index
    %89 = vector.load %arg10[%c0_58, %c15_59, %c1024_60] : memref<8x16x1152xbf16, #tpu.memory_space<vmem>>, vector<8x1x128xbf16>
    tpu.vector_store %arg10[%c0_58, %c15_59, %c1024_60], %65 {strides = array<i32>} : memref<8x16x1152xbf16, #tpu.memory_space<vmem>>, vector<8x1x128xbf16>,
    %c0_61 = arith.constant 0 : index
    %c0_62 = arith.constant 0 : index
    %c0_63 = arith.constant 0 : index
    %90 = vector.load %arg10[%c0_61, %c0_62, %c0_63] : memref<8x16x1152xbf16, #tpu.memory_space<vmem>>, vector<8x16x1152xbf16>
    %91 = vector.shape_cast %90 : vector<8x16x1152xbf16> to vector<128x1152xbf16>
    %c0_64 = arith.constant 0 : index
    %c0_65 = arith.constant 0 : index
    %92 = vector.load %arg5[%c0_64, %c0_65] : memref<1152x128xbf16, #tpu.memory_space<vmem>>, vector<1152x128xbf16>
    %cst_66 = arith.constant dense<0.000000e+00> : vector<128x128xf32>
    %93 = tpu.matmul %91, %92, %cst_66 {dimension_numbers = #tpu.dot_dimension_numbers<[1], [0], [0], [1], [0, 0, 1, 1], [], []>} : vector<128x1152xbf16>, vector<1152x128xbf16>, vector<128x128xf32> -> vector<128x128xf32>
    %c0_67 = arith.constant 0 : index
    %c0_68 = arith.constant 0 : index
    %94 = vector.load %arg6[%c0_67, %c0_68] : memref<1x128xf32, #tpu.memory_space<vmem>>, vector<1x128xf32>
    %95 = vector.broadcast %94 : vector<1x128xf32> to vector<128x128xf32>
    %96 = arith.addf %93, %95 : vector<128x128xf32>
    %97 = vector.shape_cast %96 : vector<128x128xf32> to vector<8x16x128xf32>
    %98 = arith.truncf %97 : vector<8x16x128xf32> to vector<8x16x128xbf16>
    %c0_69 = arith.constant 0 : index
    %c0_70 = arith.constant 0 : index
    %c0_71 = arith.constant 0 : index
    %c0_72 = arith.constant 0 : index
    %99 = vector.load %arg7[%c0_69, %c0_70, %c0_71, %c0_72] : memref<1x8x16x128xbf16, #tpu.memory_space<vmem>>, vector<1x8x16x128xbf16>
    %100 = vector.shape_cast %99 : vector<1x8x16x128xbf16> to vector<8x16x128xbf16>
    %101 = vector.shape_cast %98 : vector<8x16x128xbf16> to vector<1x8x16x128xbf16>
    tpu.vector_store %arg7[%c0_69, %c0_70, %c0_71, %c0_72], %101 {strides = array<i32>} : memref<1x8x16x128xbf16, #tpu.memory_space<vmem>>, vector<1x8x16x128xbf16>,
    %cst_73 = arith.constant dense<0.000000e+00> : vector<128xf32>
    %102 = vector.multi_reduction <add>, %96, %cst_73 [0] : vector<128x128xf32> to vector<128xf32>
    %103 = vector.shape_cast %102 : vector<128xf32> to vector<1x128xf32>
    %cst_74 = arith.constant 7.812500e-03 : f32
    %104 = vector.broadcast %cst_74 : f32 to vector<1x128xf32>
    %105 = arith.mulf %103, %104 : vector<1x128xf32>
    %106 = vector.broadcast %105 : vector<1x128xf32> to vector<128x128xf32>
    %107 = arith.subf %96, %106 : vector<128x128xf32>
    %c0_75 = arith.constant 0 : index
    %c0_76 = arith.constant 0 : index
    %c0_77 = arith.constant 0 : index
    %c0_78 = arith.constant 0 : index
    %108 = vector.load %arg8[%c0_75, %c0_76, %c0_77, %c0_78] : memref<1x1x1x128xf32, #tpu.memory_space<vmem>>, vector<1x1x1x128xf32>
    %109 = vector.shape_cast %108 : vector<1x1x1x128xf32> to vector<1x128xf32>
    %110 = vector.shape_cast %103 : vector<1x128xf32> to vector<1x1x1x128xf32>
    tpu.vector_store %arg8[%c0_75, %c0_76, %c0_77, %c0_78], %110 {strides = array<i32>} : memref<1x1x1x128xf32, #tpu.memory_space<vmem>>, vector<1x1x1x128xf32>,
    %111 = arith.mulf %107, %107 : vector<128x128xf32>
    %cst_79 = arith.constant dense<0.000000e+00> : vector<128xf32>
    %112 = vector.multi_reduction <add>, %111, %cst_79 [0] : vector<128x128xf32> to vector<128xf32>
    %113 = vector.shape_cast %112 : vector<128xf32> to vector<1x128xf32>
    %c0_80 = arith.constant 0 : index
    %c0_81 = arith.constant 0 : index
    %c0_82 = arith.constant 0 : index
    %c0_83 = arith.constant 0 : index
    %114 = vector.load %arg9[%c0_80, %c0_81, %c0_82, %c0_83] : memref<1x1x1x128xf32, #tpu.memory_space<vmem>>, vector<1x1x1x128xf32>
    %115 = vector.shape_cast %114 : vector<1x1x1x128xf32> to vector<1x128xf32>
    %116 = vector.shape_cast %113 : vector<1x128xf32> to vector<1x1x1x128xf32>
    tpu.vector_store %arg9[%c0_80, %c0_81, %c0_82, %c0_83], %116 {strides = array<i32>} : memref<1x1x1x128xf32, #tpu.memory_space<vmem>>, vector<1x1x1x128xf32>,
    return
  }
  func.func @transform_0(%arg0: i32, %arg1: i32) -> (i32, i32, i32, i32) {
    %c0_i32 = arith.constant 0 : i32
    %c0_i32_0 = arith.constant 0 : i32
    %c0_i32_1 = arith.constant 0 : i32
    %c0_i32_2 = arith.constant 0 : i32
    return %arg0, %c0_i32, %c0_i32_0, %c0_i32_1 : i32, i32, i32, i32
  }
  func.func @transform_1(%arg0: i32, %arg1: i32) -> (i32, i32) {
    %c0_i32 = arith.constant 0 : i32
    %c0_i32_0 = arith.constant 0 : i32
    %c0_i32_1 = arith.constant 0 : i32
    return %c0_i32, %c0_i32_0 : i32, i32
  }
  func.func @transform_2(%arg0: i32, %arg1: i32) -> (i32, i32) {
    %c0_i32 = arith.constant 0 : i32
    %c0_i32_0 = arith.constant 0 : i32
    %c0_i32_1 = arith.constant 0 : i32
    return %c0_i32, %c0_i32_0 : i32, i32
  }
  func.func @transform_3(%arg0: i32, %arg1: i32) -> (i32, i32) {
    %c0_i32 = arith.constant 0 : i32
    %c0_i32_0 = arith.constant 0 : i32
    %c0_i32_1 = arith.constant 0 : i32
    return %c0_i32, %c0_i32_0 : i32, i32
  }
  func.func @transform_4(%arg0: i32, %arg1: i32) -> (i32, i32) {
    %c0_i32 = arith.constant 0 : i32
    %c0_i32_0 = arith.constant 0 : i32
    %c0_i32_1 = arith.constant 0 : i32
    return %c0_i32, %c0_i32_0 : i32, i32
  }
  func.func @transform_5(%arg0: i32, %arg1: i32) -> (i32, i32, i32, i32) {
    %c0_i32 = arith.constant 0 : i32
    %c0_i32_0 = arith.constant 0 : i32
    %c0_i32_1 = arith.constant 0 : i32
    return %arg0, %arg1, %c0_i32, %c0_i32_0 : i32, i32, i32, i32
  }
  func.func @transform_6(%arg0: i32, %arg1: i32) -> (i32, i32, i32, i32) {
    %c0_i32 = arith.constant 0 : i32
    %c0_i32_0 = arith.constant 0 : i32
    %c0_i32_1 = arith.constant 0 : i32
    return %arg0, %arg1, %c0_i32, %c0_i32_0 : i32, i32, i32, i32
  }
  func.func @transform_7(%arg0: i32, %arg1: i32) -> (i32, i32, i32, i32) {
    %c0_i32 = arith.constant 0 : i32
    %c0_i32_0 = arith.constant 0 : i32
    %c0_i32_1 = arith.constant 0 : i32
    return %arg0, %arg1, %c0_i32, %c0_i32_0 : i32, i32, i32, i32
  }
}

module attributes {stable_mosaic.version = 11 : i64} {
  func.func @_bn_relu_conv3_ident_kernel(%arg0: i32, %arg1: i32, %arg2: memref<1x16x16x128xbf16, #tpu.memory_space<vmem>>, %arg3: memref<1x8x8x128xf32, #tpu.memory_space<vmem>>, %arg4: memref<1x128xf32, #tpu.memory_space<vmem>>, %arg5: memref<1x128xf32, #tpu.memory_space<vmem>>, %arg6: memref<1280x128xbf16, #tpu.memory_space<vmem>>, %arg7: memref<1x128xf32, #tpu.memory_space<vmem>>, %arg8: memref<1x8x16x128xf32, #tpu.memory_space<vmem>>, %arg9: memref<8x16x1280xbf16, #tpu.memory_space<vmem>>) attributes {dimension_semantics = [#tpu.dimension_semantics<parallel>, #tpu.dimension_semantics<parallel>], iteration_bounds = array<i64: 2, 2>, scalar_prefetch = 0 : i64, scratch_operands = 1 : i64, tpu.core_type = #tpu.core_type<tc>, window_params = [{transform_indices = @transform_0, window_bounds = array<i64: 1, 16, 16, 128>}, {transform_indices = @transform_1, window_bounds = array<i64: 1, 8, 8, 128>}, {pipeline_mode = #tpu.pipeline_mode<synchronous>, transform_indices = @transform_2, window_bounds = array<i64: 1, 128>}, {pipeline_mode = #tpu.pipeline_mode<synchronous>, transform_indices = @transform_3, window_bounds = array<i64: 1, 128>}, {pipeline_mode = #tpu.pipeline_mode<synchronous>, transform_indices = @transform_4, window_bounds = array<i64: 1280, 128>}, {pipeline_mode = #tpu.pipeline_mode<synchronous>, transform_indices = @transform_5, window_bounds = array<i64: 1, 128>}, {transform_indices = @transform_6, window_bounds = array<i64: 1, 8, 16, 128>}]} {
    %c8_i32 = arith.constant 8 : i32
    %0 = arith.muli %arg1, %c8_i32 : i32
    %c0 = arith.constant 0 : index
    %1 = arith.index_cast %0 : i32 to index
    %c0_0 = arith.constant 0 : index
    %c0_1 = arith.constant 0 : index
    %2 = vector.load %arg2[%c0, %1, %c0_0, %c0_1] : memref<1x16x16x128xbf16, #tpu.memory_space<vmem>>, vector<1x8x16x128xbf16>
    %3 = vector.shape_cast %2 : vector<1x8x16x128xbf16> to vector<8x16x128xbf16>
    %4 = arith.extf %3 : vector<8x16x128xbf16> to vector<8x16x128xf32>
    %c0_2 = arith.constant 0 : index
    %c0_3 = arith.constant 0 : index
    %5 = vector.load %arg4[%c0_2, %c0_3] : memref<1x128xf32, #tpu.memory_space<vmem>>, vector<1x128xf32>
    %6 = vector.shape_cast %5 : vector<1x128xf32> to vector<1x1x128xf32>
    %7 = vector.broadcast %6 : vector<1x1x128xf32> to vector<8x16x128xf32>
    %8 = arith.mulf %4, %7 : vector<8x16x128xf32>
    %c0_4 = arith.constant 0 : index
    %c0_5 = arith.constant 0 : index
    %9 = vector.load %arg5[%c0_4, %c0_5] : memref<1x128xf32, #tpu.memory_space<vmem>>, vector<1x128xf32>
    %10 = vector.shape_cast %9 : vector<1x128xf32> to vector<1x1x128xf32>
    %11 = vector.broadcast %10 : vector<1x1x128xf32> to vector<8x16x128xf32>
    %12 = arith.addf %8, %11 : vector<8x16x128xf32>
    %cst = arith.constant 0.000000e+00 : f32
    %13 = vector.broadcast %cst : f32 to vector<8x16x128xf32>
    %14 = arith.maximumf %12, %13 : vector<8x16x128xf32>
    %c1_i32 = arith.constant 1 : i32
    %15 = arith.subi %0, %c1_i32 : i32
    %c0_i32 = arith.constant 0 : i32
    %16 = arith.maxsi %15, %c0_i32 : i32
    %c0_6 = arith.constant 0 : index
    %17 = arith.index_cast %16 : i32 to index
    %c0_7 = arith.constant 0 : index
    %c0_8 = arith.constant 0 : index
    %18 = vector.load %arg2[%c0_6, %17, %c0_7, %c0_8] : memref<1x16x16x128xbf16, #tpu.memory_space<vmem>>, vector<1x1x16x128xbf16>
    %19 = vector.shape_cast %18 : vector<1x1x16x128xbf16> to vector<1x16x128xbf16>
    %20 = arith.extf %19 : vector<1x16x128xbf16> to vector<1x16x128xf32>
    %c0_9 = arith.constant 0 : index
    %c0_10 = arith.constant 0 : index
    %21 = vector.load %arg4[%c0_9, %c0_10] : memref<1x128xf32, #tpu.memory_space<vmem>>, vector<1x128xf32>
    %22 = vector.shape_cast %21 : vector<1x128xf32> to vector<1x1x128xf32>
    %23 = vector.broadcast %22 : vector<1x1x128xf32> to vector<1x16x128xf32>
    %24 = arith.mulf %20, %23 : vector<1x16x128xf32>
    %c0_11 = arith.constant 0 : index
    %c0_12 = arith.constant 0 : index
    %25 = vector.load %arg5[%c0_11, %c0_12] : memref<1x128xf32, #tpu.memory_space<vmem>>, vector<1x128xf32>
    %26 = vector.shape_cast %25 : vector<1x128xf32> to vector<1x1x128xf32>
    %27 = vector.broadcast %26 : vector<1x1x128xf32> to vector<1x16x128xf32>
    %28 = arith.addf %24, %27 : vector<1x16x128xf32>
    %cst_13 = arith.constant 0.000000e+00 : f32
    %29 = vector.broadcast %cst_13 : f32 to vector<1x16x128xf32>
    %30 = arith.maximumf %28, %29 : vector<1x16x128xf32>
    %c8_i32_14 = arith.constant 8 : i32
    %31 = arith.addi %0, %c8_i32_14 : i32
    %c15_i32 = arith.constant 15 : i32
    %32 = arith.minsi %31, %c15_i32 : i32
    %c0_15 = arith.constant 0 : index
    %33 = arith.index_cast %32 : i32 to index
    %c0_16 = arith.constant 0 : index
    %c0_17 = arith.constant 0 : index
    %34 = vector.load %arg2[%c0_15, %33, %c0_16, %c0_17] : memref<1x16x16x128xbf16, #tpu.memory_space<vmem>>, vector<1x1x16x128xbf16>
    %35 = vector.shape_cast %34 : vector<1x1x16x128xbf16> to vector<1x16x128xbf16>
    %36 = arith.extf %35 : vector<1x16x128xbf16> to vector<1x16x128xf32>
    %c0_18 = arith.constant 0 : index
    %c0_19 = arith.constant 0 : index
    %37 = vector.load %arg4[%c0_18, %c0_19] : memref<1x128xf32, #tpu.memory_space<vmem>>, vector<1x128xf32>
    %38 = vector.shape_cast %37 : vector<1x128xf32> to vector<1x1x128xf32>
    %39 = vector.broadcast %38 : vector<1x1x128xf32> to vector<1x16x128xf32>
    %40 = arith.mulf %36, %39 : vector<1x16x128xf32>
    %c0_20 = arith.constant 0 : index
    %c0_21 = arith.constant 0 : index
    %41 = vector.load %arg5[%c0_20, %c0_21] : memref<1x128xf32, #tpu.memory_space<vmem>>, vector<1x128xf32>
    %42 = vector.shape_cast %41 : vector<1x128xf32> to vector<1x1x128xf32>
    %43 = vector.broadcast %42 : vector<1x1x128xf32> to vector<1x16x128xf32>
    %44 = arith.addf %40, %43 : vector<1x16x128xf32>
    %cst_22 = arith.constant 0.000000e+00 : f32
    %45 = vector.broadcast %cst_22 : f32 to vector<1x16x128xf32>
    %46 = arith.maximumf %44, %45 : vector<1x16x128xf32>
    %c0_i32_23 = arith.constant 0 : i32
    %47 = arith.cmpi sgt, %arg1, %c0_i32_23 : i32
    %48 = arith.extui %47 : i1 to i32
    %49 = arith.sitofp %48 : i32 to f32
    %50 = vector.broadcast %49 : f32 to vector<1x16x128xf32>
    %51 = arith.mulf %30, %50 : vector<1x16x128xf32>
    %c1_i32_24 = arith.constant 1 : i32
    %52 = arith.cmpi slt, %arg1, %c1_i32_24 : i32
    %53 = arith.extui %52 : i1 to i32
    %54 = arith.sitofp %53 : i32 to f32
    %55 = vector.broadcast %54 : f32 to vector<1x16x128xf32>
    %56 = arith.mulf %46, %55 : vector<1x16x128xf32>
    %57 = tpu.concatenate %51, %14, %56 in 0 : vector<1x16x128xf32>, vector<8x16x128xf32>, vector<1x16x128xf32> -> vector<10x16x128xf32>
    %58 = arith.truncf %57 : vector<10x16x128xf32> to vector<10x16x128xbf16>
    %cst_25 = arith.constant 0.000000e+00 : bf16
    %59 = vector.broadcast %cst_25 : bf16 to vector<8x1x128xbf16>
    %60 = vector.extract_strided_slice %58 {offsets = [0, 0, 0], sizes = [8, 16, 128], strides = [1, 1, 1]} : vector<10x16x128xbf16> to vector<8x16x128xbf16>
    %61 = vector.extract_strided_slice %60 {offsets = [0, 0, 0], sizes = [8, 15, 128], strides = [1, 1, 1]} : vector<8x16x128xbf16> to vector<8x15x128xbf16>
    %c0_26 = arith.constant 0 : index
    %c1 = arith.constant 1 : index
    %c0_27 = arith.constant 0 : index
    %62 = vector.load %arg9[%c0_26, %c1, %c0_27] : memref<8x16x1280xbf16, #tpu.memory_space<vmem>>, vector<8x15x128xbf16>
    tpu.vector_store %arg9[%c0_26, %c1, %c0_27], %61 {strides = array<i32>} : memref<8x16x1280xbf16, #tpu.memory_space<vmem>>, vector<8x15x128xbf16>,
    %c0_28 = arith.constant 0 : index
    %c0_29 = arith.constant 0 : index
    %c0_30 = arith.constant 0 : index
    %63 = vector.load %arg9[%c0_28, %c0_29, %c0_30] : memref<8x16x1280xbf16, #tpu.memory_space<vmem>>, vector<8x1x128xbf16>
    tpu.vector_store %arg9[%c0_28, %c0_29, %c0_30], %59 {strides = array<i32>} : memref<8x16x1280xbf16, #tpu.memory_space<vmem>>, vector<8x1x128xbf16>,
    %c0_31 = arith.constant 0 : index
    %c0_32 = arith.constant 0 : index
    %c128 = arith.constant 128 : index
    %64 = vector.load %arg9[%c0_31, %c0_32, %c128] : memref<8x16x1280xbf16, #tpu.memory_space<vmem>>, vector<8x16x128xbf16>
    tpu.vector_store %arg9[%c0_31, %c0_32, %c128], %60 {strides = array<i32>} : memref<8x16x1280xbf16, #tpu.memory_space<vmem>>, vector<8x16x128xbf16>,
    %65 = vector.extract_strided_slice %60 {offsets = [0, 1, 0], sizes = [8, 15, 128], strides = [1, 1, 1]} : vector<8x16x128xbf16> to vector<8x15x128xbf16>
    %c0_33 = arith.constant 0 : index
    %c0_34 = arith.constant 0 : index
    %c256 = arith.constant 256 : index
    %66 = vector.load %arg9[%c0_33, %c0_34, %c256] : memref<8x16x1280xbf16, #tpu.memory_space<vmem>>, vector<8x15x128xbf16>
    tpu.vector_store %arg9[%c0_33, %c0_34, %c256], %65 {strides = array<i32>} : memref<8x16x1280xbf16, #tpu.memory_space<vmem>>, vector<8x15x128xbf16>,
    %c0_35 = arith.constant 0 : index
    %c15 = arith.constant 15 : index
    %c256_36 = arith.constant 256 : index
    %67 = vector.load %arg9[%c0_35, %c15, %c256_36] : memref<8x16x1280xbf16, #tpu.memory_space<vmem>>, vector<8x1x128xbf16>
    tpu.vector_store %arg9[%c0_35, %c15, %c256_36], %59 {strides = array<i32>} : memref<8x16x1280xbf16, #tpu.memory_space<vmem>>, vector<8x1x128xbf16>,
    %68 = vector.extract_strided_slice %58 {offsets = [1, 0, 0], sizes = [8, 16, 128], strides = [1, 1, 1]} : vector<10x16x128xbf16> to vector<8x16x128xbf16>
    %69 = vector.extract_strided_slice %68 {offsets = [0, 0, 0], sizes = [8, 15, 128], strides = [1, 1, 1]} : vector<8x16x128xbf16> to vector<8x15x128xbf16>
    %c0_37 = arith.constant 0 : index
    %c1_38 = arith.constant 1 : index
    %c384 = arith.constant 384 : index
    %70 = vector.load %arg9[%c0_37, %c1_38, %c384] : memref<8x16x1280xbf16, #tpu.memory_space<vmem>>, vector<8x15x128xbf16>
    tpu.vector_store %arg9[%c0_37, %c1_38, %c384], %69 {strides = array<i32>} : memref<8x16x1280xbf16, #tpu.memory_space<vmem>>, vector<8x15x128xbf16>,
    %c0_39 = arith.constant 0 : index
    %c0_40 = arith.constant 0 : index
    %c384_41 = arith.constant 384 : index
    %71 = vector.load %arg9[%c0_39, %c0_40, %c384_41] : memref<8x16x1280xbf16, #tpu.memory_space<vmem>>, vector<8x1x128xbf16>
    tpu.vector_store %arg9[%c0_39, %c0_40, %c384_41], %59 {strides = array<i32>} : memref<8x16x1280xbf16, #tpu.memory_space<vmem>>, vector<8x1x128xbf16>,
    %c0_42 = arith.constant 0 : index
    %c0_43 = arith.constant 0 : index
    %c512 = arith.constant 512 : index
    %72 = vector.load %arg9[%c0_42, %c0_43, %c512] : memref<8x16x1280xbf16, #tpu.memory_space<vmem>>, vector<8x16x128xbf16>
    tpu.vector_store %arg9[%c0_42, %c0_43, %c512], %68 {strides = array<i32>} : memref<8x16x1280xbf16, #tpu.memory_space<vmem>>, vector<8x16x128xbf16>,
    %73 = vector.extract_strided_slice %68 {offsets = [0, 1, 0], sizes = [8, 15, 128], strides = [1, 1, 1]} : vector<8x16x128xbf16> to vector<8x15x128xbf16>
    %c0_44 = arith.constant 0 : index
    %c0_45 = arith.constant 0 : index
    %c640 = arith.constant 640 : index
    %74 = vector.load %arg9[%c0_44, %c0_45, %c640] : memref<8x16x1280xbf16, #tpu.memory_space<vmem>>, vector<8x15x128xbf16>
    tpu.vector_store %arg9[%c0_44, %c0_45, %c640], %73 {strides = array<i32>} : memref<8x16x1280xbf16, #tpu.memory_space<vmem>>, vector<8x15x128xbf16>,
    %c0_46 = arith.constant 0 : index
    %c15_47 = arith.constant 15 : index
    %c640_48 = arith.constant 640 : index
    %75 = vector.load %arg9[%c0_46, %c15_47, %c640_48] : memref<8x16x1280xbf16, #tpu.memory_space<vmem>>, vector<8x1x128xbf16>
    tpu.vector_store %arg9[%c0_46, %c15_47, %c640_48], %59 {strides = array<i32>} : memref<8x16x1280xbf16, #tpu.memory_space<vmem>>, vector<8x1x128xbf16>,
    %76 = vector.extract_strided_slice %58 {offsets = [2, 0, 0], sizes = [8, 16, 128], strides = [1, 1, 1]} : vector<10x16x128xbf16> to vector<8x16x128xbf16>
    %77 = vector.extract_strided_slice %76 {offsets = [0, 0, 0], sizes = [8, 15, 128], strides = [1, 1, 1]} : vector<8x16x128xbf16> to vector<8x15x128xbf16>
    %c0_49 = arith.constant 0 : index
    %c1_50 = arith.constant 1 : index
    %c768 = arith.constant 768 : index
    %78 = vector.load %arg9[%c0_49, %c1_50, %c768] : memref<8x16x1280xbf16, #tpu.memory_space<vmem>>, vector<8x15x128xbf16>
    tpu.vector_store %arg9[%c0_49, %c1_50, %c768], %77 {strides = array<i32>} : memref<8x16x1280xbf16, #tpu.memory_space<vmem>>, vector<8x15x128xbf16>,
    %c0_51 = arith.constant 0 : index
    %c0_52 = arith.constant 0 : index
    %c768_53 = arith.constant 768 : index
    %79 = vector.load %arg9[%c0_51, %c0_52, %c768_53] : memref<8x16x1280xbf16, #tpu.memory_space<vmem>>, vector<8x1x128xbf16>
    tpu.vector_store %arg9[%c0_51, %c0_52, %c768_53], %59 {strides = array<i32>} : memref<8x16x1280xbf16, #tpu.memory_space<vmem>>, vector<8x1x128xbf16>,
    %c0_54 = arith.constant 0 : index
    %c0_55 = arith.constant 0 : index
    %c896 = arith.constant 896 : index
    %80 = vector.load %arg9[%c0_54, %c0_55, %c896] : memref<8x16x1280xbf16, #tpu.memory_space<vmem>>, vector<8x16x128xbf16>
    tpu.vector_store %arg9[%c0_54, %c0_55, %c896], %76 {strides = array<i32>} : memref<8x16x1280xbf16, #tpu.memory_space<vmem>>, vector<8x16x128xbf16>,
    %81 = vector.extract_strided_slice %76 {offsets = [0, 1, 0], sizes = [8, 15, 128], strides = [1, 1, 1]} : vector<8x16x128xbf16> to vector<8x15x128xbf16>
    %c0_56 = arith.constant 0 : index
    %c0_57 = arith.constant 0 : index
    %c1024 = arith.constant 1024 : index
    %82 = vector.load %arg9[%c0_56, %c0_57, %c1024] : memref<8x16x1280xbf16, #tpu.memory_space<vmem>>, vector<8x15x128xbf16>
    tpu.vector_store %arg9[%c0_56, %c0_57, %c1024], %81 {strides = array<i32>} : memref<8x16x1280xbf16, #tpu.memory_space<vmem>>, vector<8x15x128xbf16>,
    %c0_58 = arith.constant 0 : index
    %c15_59 = arith.constant 15 : index
    %c1024_60 = arith.constant 1024 : index
    %83 = vector.load %arg9[%c0_58, %c15_59, %c1024_60] : memref<8x16x1280xbf16, #tpu.memory_space<vmem>>, vector<8x1x128xbf16>
    tpu.vector_store %arg9[%c0_58, %c15_59, %c1024_60], %59 {strides = array<i32>} : memref<8x16x1280xbf16, #tpu.memory_space<vmem>>, vector<8x1x128xbf16>,
    %c4_i32 = arith.constant 4 : i32
    %84 = arith.muli %arg1, %c4_i32 : i32
    %c0_61 = arith.constant 0 : index
    %85 = arith.index_cast %84 : i32 to index
    %c0_62 = arith.constant 0 : index
    %c0_63 = arith.constant 0 : index
    %86 = vector.load %arg3[%c0_61, %85, %c0_62, %c0_63] : memref<1x8x8x128xf32, #tpu.memory_space<vmem>>, vector<1x4x8x128xf32>
    %87 = vector.shape_cast %86 : vector<1x4x8x128xf32> to vector<4x8x128xf32>
    %88 = vector.shape_cast %87 : vector<4x8x128xf32> to vector<4x8x1x128xf32>
    %89 = vector.shape_cast %88 : vector<4x8x1x128xf32> to vector<4x8x1x128xf32>
    %90 = vector.broadcast %89 : vector<4x8x1x128xf32> to vector<4x8x2x128xf32>
    %91 = vector.shape_cast %90 : vector<4x8x2x128xf32> to vector<64x128xf32>
    %92 = vector.shape_cast %91 : vector<64x128xf32> to vector<4x16x128xf32>
    %93 = vector.shape_cast %92 : vector<4x16x128xf32> to vector<4x1x16x128xf32>
    %94 = vector.shape_cast %93 : vector<4x1x16x128xf32> to vector<4x1x16x128xf32>
    %95 = vector.broadcast %94 : vector<4x1x16x128xf32> to vector<4x2x16x128xf32>
    %96 = vector.shape_cast %95 : vector<4x2x16x128xf32> to vector<8x16x128xf32>
    %97 = arith.truncf %96 : vector<8x16x128xf32> to vector<8x16x128xbf16>
    %c0_64 = arith.constant 0 : index
    %c0_65 = arith.constant 0 : index
    %c1152 = arith.constant 1152 : index
    %98 = vector.load %arg9[%c0_64, %c0_65, %c1152] : memref<8x16x1280xbf16, #tpu.memory_space<vmem>>, vector<8x16x128xbf16>
    tpu.vector_store %arg9[%c0_64, %c0_65, %c1152], %97 {strides = array<i32>} : memref<8x16x1280xbf16, #tpu.memory_space<vmem>>, vector<8x16x128xbf16>,
    %c0_66 = arith.constant 0 : index
    %c0_67 = arith.constant 0 : index
    %c0_68 = arith.constant 0 : index
    %99 = vector.load %arg9[%c0_66, %c0_67, %c0_68] : memref<8x16x1280xbf16, #tpu.memory_space<vmem>>, vector<8x16x1280xbf16>
    %100 = vector.shape_cast %99 : vector<8x16x1280xbf16> to vector<128x1280xbf16>
    %c0_69 = arith.constant 0 : index
    %c0_70 = arith.constant 0 : index
    %101 = vector.load %arg6[%c0_69, %c0_70] : memref<1280x128xbf16, #tpu.memory_space<vmem>>, vector<1280x128xbf16>
    %cst_71 = arith.constant dense<0.000000e+00> : vector<128x128xf32>
    %102 = tpu.matmul %100, %101, %cst_71 {dimension_numbers = #tpu.dot_dimension_numbers<[1], [0], [0], [1], [0, 0, 1, 1], [], []>} : vector<128x1280xbf16>, vector<1280x128xbf16>, vector<128x128xf32> -> vector<128x128xf32>
    %c0_72 = arith.constant 0 : index
    %c0_73 = arith.constant 0 : index
    %103 = vector.load %arg7[%c0_72, %c0_73] : memref<1x128xf32, #tpu.memory_space<vmem>>, vector<1x128xf32>
    %104 = vector.broadcast %103 : vector<1x128xf32> to vector<128x128xf32>
    %105 = arith.addf %102, %104 : vector<128x128xf32>
    %106 = vector.shape_cast %105 : vector<128x128xf32> to vector<8x16x128xf32>
    %c0_74 = arith.constant 0 : index
    %c0_75 = arith.constant 0 : index
    %c0_76 = arith.constant 0 : index
    %c0_77 = arith.constant 0 : index
    %107 = vector.load %arg8[%c0_74, %c0_75, %c0_76, %c0_77] : memref<1x8x16x128xf32, #tpu.memory_space<vmem>>, vector<1x8x16x128xf32>
    %108 = vector.shape_cast %107 : vector<1x8x16x128xf32> to vector<8x16x128xf32>
    %109 = vector.shape_cast %106 : vector<8x16x128xf32> to vector<1x8x16x128xf32>
    tpu.vector_store %arg8[%c0_74, %c0_75, %c0_76, %c0_77], %109 {strides = array<i32>} : memref<1x8x16x128xf32, #tpu.memory_space<vmem>>, vector<1x8x16x128xf32>,
    return
  }
  func.func @transform_0(%arg0: i32, %arg1: i32) -> (i32, i32, i32, i32) {
    %c0_i32 = arith.constant 0 : i32
    %c0_i32_0 = arith.constant 0 : i32
    %c0_i32_1 = arith.constant 0 : i32
    %c0_i32_2 = arith.constant 0 : i32
    return %arg0, %c0_i32, %c0_i32_0, %c0_i32_1 : i32, i32, i32, i32
  }
  func.func @transform_1(%arg0: i32, %arg1: i32) -> (i32, i32, i32, i32) {
    %c0_i32 = arith.constant 0 : i32
    %c0_i32_0 = arith.constant 0 : i32
    %c0_i32_1 = arith.constant 0 : i32
    %c0_i32_2 = arith.constant 0 : i32
    return %arg0, %c0_i32, %c0_i32_0, %c0_i32_1 : i32, i32, i32, i32
  }
  func.func @transform_2(%arg0: i32, %arg1: i32) -> (i32, i32) {
    %c0_i32 = arith.constant 0 : i32
    %c0_i32_0 = arith.constant 0 : i32
    %c0_i32_1 = arith.constant 0 : i32
    return %c0_i32, %c0_i32_0 : i32, i32
  }
  func.func @transform_3(%arg0: i32, %arg1: i32) -> (i32, i32) {
    %c0_i32 = arith.constant 0 : i32
    %c0_i32_0 = arith.constant 0 : i32
    %c0_i32_1 = arith.constant 0 : i32
    return %c0_i32, %c0_i32_0 : i32, i32
  }
  func.func @transform_4(%arg0: i32, %arg1: i32) -> (i32, i32) {
    %c0_i32 = arith.constant 0 : i32
    %c0_i32_0 = arith.constant 0 : i32
    %c0_i32_1 = arith.constant 0 : i32
    return %c0_i32, %c0_i32_0 : i32, i32
  }
  func.func @transform_5(%arg0: i32, %arg1: i32) -> (i32, i32) {
    %c0_i32 = arith.constant 0 : i32
    %c0_i32_0 = arith.constant 0 : i32
    %c0_i32_1 = arith.constant 0 : i32
    return %c0_i32, %c0_i32_0 : i32, i32
  }
  func.func @transform_6(%arg0: i32, %arg1: i32) -> (i32, i32, i32, i32) {
    %c0_i32 = arith.constant 0 : i32
    %c0_i32_0 = arith.constant 0 : i32
    %c0_i32_1 = arith.constant 0 : i32
    return %arg0, %arg1, %c0_i32, %c0_i32_0 : i32, i32, i32, i32
  }
}

</mosaic_0001>

<llo_original>
// kernel: up_block_forward.2
$region0: #{up_block_forward.2}
  #allocation0 [shape = 'u32[]', space=smem, size = 0x4, offset = 0x4, fixed_abs, tag = 'smem constant byte address 0x4 - core index']
  #allocation1 [shape = 'u32[144,128]{1,0:T(1,128)}', space=vmem, size = 0x12000, scoped, tag = 'internal scratch']
  #allocation2 [shape = 'bf16[8,16,1152]{2,1,0:T(16,128)(2,1)}', space=vmem, size = 0x48000, scoped, tag = 'scratch operand']
  %s0 = inlined_call_operand.vmem [shape: f32[2,8,8,128], index: 0, kind: input, shape index: {}]
  %s1 = inlined_call_operand.vmem [shape: f32[1,128], index: 1, kind: input, shape index: {}]
  %s2 = inlined_call_operand.vmem [shape: f32[1,128], index: 2, kind: input, shape index: {}]
  %s3 = inlined_call_operand.vmem [shape: bf16[1152,128], index: 3, kind: input, shape index: {}]
  %s4 = inlined_call_operand.vmem [shape: f32[1,128], index: 4, kind: input, shape index: {}]
  %s5 = inlined_call_operand.vmem [shape: bf16[2,16,16,128], index: 5, kind: output, shape index: {0}]
  %s6 = inlined_call_operand.vmem [shape: f32[2,2,1,128], index: 6, kind: output, shape index: {1}]
  %s7 = inlined_call_operand.vmem [shape: f32[2,2,1,128], index: 7, kind: output, shape index: {2}]
  %8 = xla_tuple %s5, %s6, %s7
  %s9 = sld [smem:[#allocation0]]
  $region69: #{up_block_forward.2} parent=0
    _
  %s11 = ssub.s32 1, %s9
  %s12 = scalar_select 0, %s11, %s9
  loop: start=0, step=1, limit=6
  $region2: #{up_block_forward.2} parent=0 // loop_pre_header
    _
  $region3: #{up_block_forward.2} parent=0 // loop_header
    %s14 = sphi 0, %s18
    %p15 = scmp.ge.s32.totalorder %s14, 6
    %s21 = sphi 0, %s33
    %s22 = sphi 0, %s29
    %s23 = sphi 0, %s21
    %s24 = sphi 0, %s22
    %s25 = sphi 0, %s23
    %s26 = sphi 0, %s24
    %s36 = sphi 0, %s38
    %s39 = sphi 0, %s36
    %s40 = sphi 0, %s39
    %s56 = sphi 0, %s40
    %s60 = sphi 0, %s60
    %s62 = sphi 0, %s60
    %s63 = sphi 0, %s62
    %s77 = sphi 0, %s63
    %s81 = sphi 0, %s81
    %s83 = sphi 0, %s81
    %s84 = sphi 0, %s83
    %s98 = sphi 0, %s84
    %s102 = sphi 0, %s102
    %s104 = sphi 0, %s102
    %s105 = sphi 0, %s104
    %s119 = sphi 0, %s105
    %s123 = sphi 0, %s123
    %s125 = sphi 0, %s123
    %s126 = sphi 0, %s125
    %s140 = sphi 0, %s126
    %s148 = sphi 0, %s150
    %s151 = sphi 0, %s148
    %s152 = sphi 0, %s151
    %s168 = sphi 0, %s152
    %s176 = sphi 0, %s178
    %s179 = sphi 0, %s176
    %s180 = sphi 0, %s179
    %s196 = sphi 0, %s180
    %s204 = sphi 0, %s206
    %s207 = sphi 0, %s204
    %s208 = sphi 0, %s207
    %s224 = sphi 0, %s208
  $region4: #{up_block_forward.2} parent=0 // loop_header_branch
    %17 = sbr.rel (%p15) target = $region8
  $region5: #{up_block_forward.2} parent=0 // loop_body
    %s19 = ssub.s32 %s14, 1
    %s20 = ssub.s32 %s14, 2
    %s27 = sadd.s32 1, %s22
    %p28 = scmp.ge.s32.totalorder %s27, 2
    %s29 = scalar_select %p28, 0, %s27
    %s30 = sadd.s32 1, %s21
    %s31 = scalar_select %p28, %s30, %s21
    %p32 = scmp.ge.s32.totalorder %s31, 2
    %s33 = scalar_select %p32, 0, %s31
    %s34 = ssub.s32 %s21, %s33
    %p35 = scmp.eq.s32.totalorder %s34, 0
    %s37 = sadd.s32 %s36, 1
    %s38 = scalar_select %p35, %s36, %s37
    %p41 = pneg %p35
    %p42 = scmp.eq.s32.totalorder %s14, 3
    %p43 = por %p41, %p42
    %p44 = scmp.ne.s32.totalorder %s36, %s39
    %p45 = scmp.eq.s32.totalorder %s14, 0
    %p46 = por %p44, %p45
    %p47 = scmp.ne.s32.totalorder %s36, %s39
    %p48 = scmp.eq.s32.totalorder %s19, 3
    %p49 = por %p47, %p48
    %p50 = scmp.ne.s32.totalorder %s39, %s40
    %p51 = scmp.eq.s32.totalorder %s19, 0
    %p52 = por %p50, %p51
    %p53 = scmp.ne.s32.totalorder %s39, %s40
    %p54 = scmp.eq.s32.totalorder %s20, 3
    %p55 = por %p53, %p54
    %p57 = scmp.ne.s32.totalorder %s40, %s56
    %p58 = scmp.eq.s32.totalorder %s20, 0
    %p59 = por %p57, %p58
    %s61 = sadd.s32 %s60, 1
    %p64 = scmp.eq.s32.totalorder %s14, 3
    %p65 = scmp.ne.s32.totalorder %s60, %s62
    %p66 = scmp.eq.s32.totalorder %s14, 0
    %p67 = por %p65, %p66
    %p68 = scmp.ne.s32.totalorder %s60, %s62
    %p69 = scmp.eq.s32.totalorder %s19, 3
    %p70 = por %p68, %p69
    %p71 = scmp.ne.s32.totalorder %s62, %s63
    %p72 = scmp.eq.s32.totalorder %s19, 0
    %p73 = por %p71, %p72
    %p74 = scmp.ne.s32.totalorder %s62, %s63
    %p75 = scmp.eq.s32.totalorder %s20, 3
    %p76 = por %p74, %p75
    %p78 = scmp.ne.s32.totalorder %s63, %s77
    %p79 = scmp.eq.s32.totalorder %s20, 0
    %p80 = por %p78, %p79
    %s82 = sadd.s32 %s81, 1
    %p85 = scmp.eq.s32.totalorder %s14, 3
    %p86 = scmp.ne.s32.totalorder %s81, %s83
    %p87 = scmp.eq.s32.totalorder %s14, 0
    %p88 = por %p86, %p87
    %p89 = scmp.ne.s32.totalorder %s81, %s83
    %p90 = scmp.eq.s32.totalorder %s19, 3
    %p91 = por %p89, %p90
    %p92 = scmp.ne.s32.totalorder %s83, %s84
    %p93 = scmp.eq.s32.totalorder %s19, 0
    %p94 = por %p92, %p93
    %p95 = scmp.ne.s32.totalorder %s83, %s84
    %p96 = scmp.eq.s32.totalorder %s20, 3
    %p97 = por %p95, %p96
    %p99 = scmp.ne.s32.totalorder %s84, %s98
    %p100 = scmp.eq.s32.totalorder %s20, 0
    %p101 = por %p99, %p100
    %s103 = sadd.s32 %s102, 1
    %p106 = scmp.eq.s32.totalorder %s14, 3
    %p107 = scmp.ne.s32.totalorder %s102, %s104
    %p108 = scmp.eq.s32.totalorder %s14, 0
    %p109 = por %p107, %p108
    %p110 = scmp.ne.s32.totalorder %s102, %s104
    %p111 = scmp.eq.s32.totalorder %s19, 3
    %p112 = por %p110, %p111
    %p113 = scmp.ne.s32.totalorder %s104, %s105
    %p114 = scmp.eq.s32.totalorder %s19, 0
    %p115 = por %p113, %p114
    %p116 = scmp.ne.s32.totalorder %s104, %s105
    %p117 = scmp.eq.s32.totalorder %s20, 3
    %p118 = por %p116, %p117
    %p120 = scmp.ne.s32.totalorder %s105, %s119
    %p121 = scmp.eq.s32.totalorder %s20, 0
    %p122 = por %p120, %p121
    %s124 = sadd.s32 %s123, 1
    %p127 = scmp.eq.s32.totalorder %s14, 3
    %p128 = scmp.ne.s32.totalorder %s123, %s125
    %p129 = scmp.eq.s32.totalorder %s14, 0
    %p130 = por %p128, %p129
    %p131 = scmp.ne.s32.totalorder %s123, %s125
    %p132 = scmp.eq.s32.totalorder %s19, 3
    %p133 = por %p131, %p132
    %p134 = scmp.ne.s32.totalorder %s125, %s126
    %p135 = scmp.eq.s32.totalorder %s19, 0
    %p136 = por %p134, %p135
    %p137 = scmp.ne.s32.totalorder %s125, %s126
    %p138 = scmp.eq.s32.totalorder %s20, 3
    %p139 = por %p137, %p138
    %p141 = scmp.ne.s32.totalorder %s126, %s140
    %p142 = scmp.eq.s32.totalorder %s20, 0
    %p143 = por %p141, %p142
    %s144 = ssub.s32 %s21, %s33
    %s145 = ssub.s32 %s22, %s29
    %s146 = sor.u32 %s144, %s145
    %p147 = scmp.eq.s32.totalorder %s146, 0
    %s149 = sadd.s32 %s148, 1
    %s150 = scalar_select %p147, %s148, %s149
    %p153 = pneg %p147
    %p154 = scmp.eq.s32.totalorder %s14, 3
    %p155 = por %p153, %p154
    %p156 = scmp.ne.s32.totalorder %s148, %s151
    %p157 = scmp.eq.s32.totalorder %s14, 0
    %p158 = por %p156, %p157
    %p159 = scmp.ne.s32.totalorder %s148, %s151
    %p160 = scmp.eq.s32.totalorder %s19, 3
    %p161 = por %p159, %p160
    %p162 = scmp.ne.s32.totalorder %s151, %s152
    %p163 = scmp.eq.s32.totalorder %s19, 0
    %p164 = por %p162, %p163
    %p165 = scmp.ne.s32.totalorder %s151, %s152
    %p166 = scmp.eq.s32.totalorder %s20, 3
    %p167 = por %p165, %p166
    %p169 = scmp.ne.s32.totalorder %s152, %s168
    %p170 = scmp.eq.s32.totalorder %s20, 0
    %p171 = por %p169, %p170
    %s172 = ssub.s32 %s21, %s33
    %s173 = ssub.s32 %s22, %s29
    %s174 = sor.u32 %s172, %s173
    %p175 = scmp.eq.s32.totalorder %s174, 0
    %s177 = sadd.s32 %s176, 1
    %s178 = scalar_select %p175, %s176, %s177
    %p181 = pneg %p175
    %p182 = scmp.eq.s32.totalorder %s14, 3
    %p183 = por %p181, %p182
    %p184 = scmp.ne.s32.totalorder %s176, %s179
    %p185 = scmp.eq.s32.totalorder %s14, 0
    %p186 = por %p184, %p185
    %p187 = scmp.ne.s32.totalorder %s176, %s179
    %p188 = scmp.eq.s32.totalorder %s19, 3
    %p189 = por %p187, %p188
    %p190 = scmp.ne.s32.totalorder %s179, %s180
    %p191 = scmp.eq.s32.totalorder %s19, 0
    %p192 = por %p190, %p191
    %p193 = scmp.ne.s32.totalorder %s179, %s180
    %p194 = scmp.eq.s32.totalorder %s20, 3
    %p195 = por %p193, %p194
    %p197 = scmp.ne.s32.totalorder %s180, %s196
    %p198 = scmp.eq.s32.totalorder %s20, 0
    %p199 = por %p197, %p198
    %s200 = ssub.s32 %s21, %s33
    %s201 = ssub.s32 %s22, %s29
    %s202 = sor.u32 %s200, %s201
    %p203 = scmp.eq.s32.totalorder %s202, 0
    %s205 = sadd.s32 %s204, 1
    %s206 = scalar_select %p203, %s204, %s205
    %p209 = pneg %p203
    %p210 = scmp.eq.s32.totalorder %s14, 3
    %p211 = por %p209, %p210
    %p212 = scmp.ne.s32.totalorder %s204, %s207
    %p213 = scmp.eq.s32.totalorder %s14, 0
    %p214 = por %p212, %p213
    %p215 = scmp.ne.s32.totalorder %s204, %s207
    %p216 = scmp.eq.s32.totalorder %s19, 3
    %p217 = por %p215, %p216
    %p218 = scmp.ne.s32.totalorder %s207, %s208
    %p219 = scmp.eq.s32.totalorder %s19, 0
    %p220 = por %p218, %p219
    %p221 = scmp.ne.s32.totalorder %s207, %s208
    %p222 = scmp.eq.s32.totalorder %s20, 3
    %p223 = por %p221, %p222
    %p225 = scmp.ne.s32.totalorder %s208, %s224
    %p226 = scmp.eq.s32.totalorder %s20, 0
    %p227 = por %p225, %p226
    %p228 = scmp.le.s32.totalorder 1, %s14
    %p229 = scmp.lt.s32.totalorder %s14, 5
    %p230 = pnand %p228, %p229
    %p231 = pneg %p230
    // Predicated region
    $region9: #{up_block_forward.2} parent=5 // pred_check
      _
    $region10: #{up_block_forward.2} parent=5 // pred_check_branch
      %233 = sbr.rel (%p230) target = $region12
    $region11: #{up_block_forward.2} parent=5 // pred_region
      %s234 = ssub.s32 %s14, 1
      // Predicated region
      $region13: #{up_block_forward.2} parent=11 // pred_check
        %p235 = pneg %p73
      $region14: #{up_block_forward.2} parent=11 // pred_check_branch
        %237 = sbr.rel (%p235) target = $region16
      $region15: #{up_block_forward.2} parent=11 // pred_region
        _
      $region16: #{up_block_forward.2} parent=11 // pred_fallthru
        _
      // Predicated region
      $region17: #{up_block_forward.2} parent=11 // pred_check
        %p238 = pneg %p94
      $region18: #{up_block_forward.2} parent=11 // pred_check_branch
        %240 = sbr.rel (%p238) target = $region20
      $region19: #{up_block_forward.2} parent=11 // pred_region
        _
      $region20: #{up_block_forward.2} parent=11 // pred_fallthru
        _
      // Predicated region
      $region21: #{up_block_forward.2} parent=11 // pred_check
        %p241 = pneg %p115
      $region22: #{up_block_forward.2} parent=11 // pred_check_branch
        %243 = sbr.rel (%p241) target = $region24
      $region23: #{up_block_forward.2} parent=11 // pred_region
        _
      $region24: #{up_block_forward.2} parent=11 // pred_fallthru
        _
      // Predicated region
      $region25: #{up_block_forward.2} parent=11 // pred_check
        %p244 = pneg %p136
      $region26: #{up_block_forward.2} parent=11 // pred_check_branch
        %246 = sbr.rel (%p244) target = $region28
      $region27: #{up_block_forward.2} parent=11 // pred_region
        _
      $region28: #{up_block_forward.2} parent=11 // pred_fallthru
        _
    $region12: #{up_block_forward.2} parent=5 // pred_fallthru
      _
    %p247 = scmp.lt.s32.totalorder %s14, 4
    // Predicated region
    $region29: #{up_block_forward.2} parent=5 // pred_check
      %p248 = pneg %p247
    $region30: #{up_block_forward.2} parent=5 // pred_check_branch
      %250 = sbr.rel (%p248) target = $region32
    $region31: #{up_block_forward.2} parent=5 // pred_region
      // Predicated region
      $region33: #{up_block_forward.2} parent=31 // pred_check
        %p251 = pneg %p46
      $region34: #{up_block_forward.2} parent=31 // pred_check_branch
        %253 = sbr.rel (%p251) target = $region36
      $region35: #{up_block_forward.2} parent=31 // pred_region
        %p254 = scmp.lt.s32.totalorder %s21, 1
        %s255 = scalar_select %p254, %s21, 1
        %s256 = smul.addr %s255, 8
        %s257 = smul.addr %s256, 8
        %s258 = scalar_lea.vmem %s0, %s257
      $region36: #{up_block_forward.2} parent=31 // pred_fallthru
        _
    $region32: #{up_block_forward.2} parent=5 // pred_fallthru
      _
    %p259 = scmp.le.s32.totalorder 1, %s14
    %p260 = scmp.lt.s32.totalorder %s14, 5
    %p261 = pnand %p259, %p260
    %p262 = pneg %p261
    // Predicated region
    $region37: #{up_block_forward.2} parent=5 // pred_check
      _
    $region38: #{up_block_forward.2} parent=5 // pred_check_branch
      %264 = sbr.rel (%p261) target = $region40
    $region39: #{up_block_forward.2} parent=5 // pred_region
      %s265 = ssub.s32 %s14, 1
      %p266 = scmp.lt.s32.totalorder %s23, 1
      %s267 = scalar_select %p266, %s23, 1
      %s268 = smul.addr %s267, 8
      %s269 = smul.addr %s268, 8
      %s270 = scalar_lea.vmem %s0, %s269
      %p271 = pneg %p52
      %p272 = pneg %p49
      %p273 = pneg %p73
      %p274 = pneg %p70
      %p275 = pneg %p94
      %p276 = pneg %p91
      %p277 = pneg %p115
      %p278 = pneg %p112
      %p279 = pneg %p136
      %p280 = pneg %p133
      %p281 = pneg %p164
      %p282 = pneg %p161
      %s283 = smul.u32 8, %s24
      %p284 = scmp.lt.s32.totalorder %s23, 1
      %s285 = scalar_select %p284, %s23, 1
      %p286 = scmp.lt.s32.totalorder %s283, 15
      %s287 = scalar_select %p286, %s283, 15
      %s288 = smul.addr %s287, 2
      %s289 = smul.addr %s285, 32
      %s290 = sadd.s32 %s288, %s289
      %s291 = smul.addr %s290, 4
      %s292 = scalar_lea.vmem %s5, %s291
      %p293 = pneg %p192
      %p294 = pneg %p189
      %p295 = scmp.lt.s32.totalorder %s23, 1
      %s296 = scalar_select %p295, %s23, 1
      %p297 = scmp.lt.s32.totalorder %s24, 1
      %s298 = scalar_select %p297, %s24, 1
      %s299 = smul.addr %s296, 2
      %s300 = sadd.s32 %s298, %s299
      %s301 = scalar_lea.vmem %s6, %s300
      %p302 = pneg %p220
      %p303 = pneg %p217
      %p304 = scmp.lt.s32.totalorder %s23, 1
      %s305 = scalar_select %p304, %s23, 1
      %p306 = scmp.lt.s32.totalorder %s24, 1
      %s307 = scalar_select %p306, %s24, 1
      %s308 = smul.addr %s305, 2
      %s309 = sadd.s32 %s307, %s308
      %s310 = scalar_lea.vmem %s7, %s309
      %p311 = scmp.lt.s32.totalorder %s23, 1
      %s312 = scalar_select %p311, %s23, 1
      %s313 = smul.addr %s312, 8
      %s314 = smul.addr %s313, 8
      %s315 = scalar_lea.vmem %s0, %s314
      %s316 = smul.u32 8, %s24
      %p317 = scmp.lt.s32.totalorder %s23, 1
      %s318 = scalar_select %p317, %s23, 1
      %p319 = scmp.lt.s32.totalorder %s316, 15
      %s320 = scalar_select %p319, %s316, 15
      %s321 = smul.addr %s320, 2
      %s322 = smul.addr %s318, 32
      %s323 = sadd.s32 %s321, %s322
      %s324 = smul.addr %s323, 4
      %s325 = scalar_lea.vmem %s5, %s324
      %s326 = smul.u32 8, %s24
      %p327 = scmp.lt.s32.totalorder %s23, 1
      %s328 = scalar_select %p327, %s23, 1
      %p329 = scmp.lt.s32.totalorder %s24, 1
      %s330 = scalar_select %p329, %s24, 1
      %s331 = smul.addr %s328, 2
      %s332 = sadd.s32 %s330, %s331
      %s333 = scalar_lea.vmem %s6, %s332
      %p334 = scmp.lt.s32.totalorder %s23, 1
      %s335 = scalar_select %p334, %s23, 1
      %p336 = scmp.lt.s32.totalorder %s24, 1
      %s337 = scalar_select %p336, %s24, 1
      %s338 = smul.addr %s335, 2
      %s339 = sadd.s32 %s337, %s338
      %s340 = scalar_lea.vmem %s7, %s339
      %s342 = smul.u32 %s24, 4
      %s343 = smul.u32 %s342, 8
      %s344 = scalar_lea.vmem %s315, %s343
      %v345 = vld [vmem:[%s344] sm:$0xff]
      %v346 = vld [vmem:[%s344 + $0x8] sm:$0xff]
      %v347 = vld [vmem:[%s344 + $0x10] sm:$0xff]
      %v348 = vld [vmem:[%s344 + $0x18] sm:$0xff]
      %v349 = vld [vmem:[%s1] sm:$0x1]
      %v351 = vlaneseq
      %v352 = vshrl.u32 %v351, 7
      %v353 = vsub.s32 0, %v352
      %v354 = vrot.slane %v349, %v353
      %v356 = vmul.f32 %v345, %v354
      %v357 = vmul.f32 %v346, %v354
      %v358 = vmul.f32 %v347, %v354
      %v359 = vmul.f32 %v348, %v354
      %v360 = vld [vmem:[%s2] sm:$0x1]
      %v362 = vlaneseq
      %v363 = vshrl.u32 %v362, 7
      %v364 = vsub.s32 0, %v363
      %v365 = vrot.slane %v360, %v364
      %v367 = vadd.f32 %v356, %v365
      %v368 = vadd.f32 %v357, %v365
      %v369 = vadd.f32 %v358, %v365
      %v370 = vadd.f32 %v359, %v365
      %v371 = vmax.f32 %v367, 0.0
      %v372 = vmax.f32 %v368, 0.0
      %v373 = vmax.f32 %v369, 0.0
      %v374 = vmax.f32 %v370, 0.0
      %s375 = ssub.s32 %s342, 1
      %p376 = scmp.gt.s32.totalorder %s375, 0
      %s377 = scalar_select %p376, %s375, 0
      %s378 = smul.u32 %s377, 8
      %s379 = scalar_lea.vmem %s315, %s378
      %v380 = vld [vmem:[%s379] sm:$0xff]
      %v381 = vmul.f32 %v380, %v354
      %v382 = vadd.f32 %v381, %v365
      %v383 = vmax.f32 %v382, 0.0
      %s384 = sadd.s32 %s342, 4
      %p385 = scmp.lt.s32.totalorder %s384, 7
      %s386 = scalar_select %p385, %s384, 7
      %s387 = smul.u32 %s386, 8
      %s388 = scalar_lea.vmem %s315, %s387
      %v389 = vld [vmem:[%s388] sm:$0xff]
      %v390 = vmul.f32 %v389, %v354
      %v391 = vadd.f32 %v390, %v365
      %v392 = vmax.f32 %v391, 0.0
      %p393 = scmp.gt.s32.totalorder %s24, 0
      %s394 = scalar_select %p393, 1, 0
      %s395 = scvt.s32.f32 %s394
      %v396 = vstv %s395
      %v397 = vmul.f32 %v383, %v396
      %p398 = scmp.lt.s32.totalorder %s24, 1
      %s399 = scalar_select %p398, 1, 0
      %s400 = scvt.s32.f32 %s399
      %v401 = vstv %s400
      %v402 = vmul.f32 %v392, %v401
      %v409 = vcombine.high %v397, %v397
      %v411 = vunpack.c.l.s4 1966171168
      %v412 = vunpack.c.0.s8 %v411
      %v413 = vlaneseq
      %v414 = vshrl.u32 %v413, 7
      %v415 = vsub.s32 %v412, %v414
      %v416 = vrot.slane %v397, %v415
      %v418 = vunpack.c.l.s4 1966171168
      %v419 = vunpack.c.0.s8 %v418
      %v420 = vlaneseq
      %v421 = vshrl.u32 %v420, 7
      %v422 = vsub.s32 %v419, %v421
      %v423 = vrot.slane %v409, %v422
      %v424 = vcombine.high %v416, %v416
      %v425 = vcombine.high %v423, %v423
      %v427 = vunpack.c.l.s4 1966171168
      %v428 = vunpack.c.0.s8 %v427
      %v429 = vlaneseq
      %v430 = vshrl.u32 %v429, 7
      %v431 = vsub.s32 %v428, %v430
      %v432 = vrot.slane %v416, %v431
      %v434 = vunpack.c.l.s4 1966171168
      %v435 = vunpack.c.0.s8 %v434
      %v436 = vlaneseq
      %v437 = vshrl.u32 %v436, 7
      %v438 = vsub.s32 %v435, %v437
      %v439 = vrot.slane %v423, %v438
      %v441 = vunpack.c.l.s4 1966171168
      %v442 = vunpack.c.0.s8 %v441
      %v443 = vlaneseq
      %v444 = vshrl.u32 %v443, 7
      %v445 = vsub.s32 %v442, %v444
      %v446 = vrot.slane %v424, %v445
      %v448 = vunpack.c.l.s4 1966171168
      %v449 = vunpack.c.0.s8 %v448
      %v450 = vlaneseq
      %v451 = vshrl.u32 %v450, 7
      %v452 = vsub.s32 %v449, %v451
      %v453 = vrot.slane %v425, %v452
      %v454 = vcombine.high %v432, %v432
      %v455 = vcombine.high %v439, %v439
      %v456 = vcombine.high %v446, %v446
      %v457 = vcombine.high %v453, %v453
      %v458 = vcombine.high %v371, %v371
      %v460 = vunpack.c.l.s4 1966171168
      %v461 = vunpack.c.0.s8 %v460
      %v462 = vlaneseq
      %v463 = vshrl.u32 %v462, 7
      %v464 = vsub.s32 %v461, %v463
      %v465 = vrot.slane %v371, %v464
      %v467 = vunpack.c.l.s4 1966171168
      %v468 = vunpack.c.0.s8 %v467
      %v469 = vlaneseq
      %v470 = vshrl.u32 %v469, 7
      %v471 = vsub.s32 %v468, %v470
      %v472 = vrot.slane %v458, %v471
      %v473 = vcombine.high %v465, %v465
      %v474 = vcombine.high %v472, %v472
      %v476 = vunpack.c.l.s4 1966171168
      %v477 = vunpack.c.0.s8 %v476
      %v478 = vlaneseq
      %v479 = vshrl.u32 %v478, 7
      %v480 = vsub.s32 %v477, %v479
      %v481 = vrot.slane %v465, %v480
      %v483 = vunpack.c.l.s4 1966171168
      %v484 = vunpack.c.0.s8 %v483
      %v485 = vlaneseq
      %v486 = vshrl.u32 %v485, 7
      %v487 = vsub.s32 %v484, %v486
      %v488 = vrot.slane %v472, %v487
      %v490 = vunpack.c.l.s4 1966171168
      %v491 = vunpack.c.0.s8 %v490
      %v492 = vlaneseq
      %v493 = vshrl.u32 %v492, 7
      %v494 = vsub.s32 %v491, %v493
      %v495 = vrot.slane %v473, %v494
      %v497 = vunpack.c.l.s4 1966171168
      %v498 = vunpack.c.0.s8 %v497
      %v499 = vlaneseq
      %v500 = vshrl.u32 %v499, 7
      %v501 = vsub.s32 %v498, %v500
      %v502 = vrot.slane %v474, %v501
      %v503 = vcombine.high %v481, %v481
      %v504 = vcombine.high %v488, %v488
      %v505 = vcombine.high %v495, %v495
      %v506 = vcombine.high %v502, %v502
      %v507 = vcombine.high %v372, %v372
      %v509 = vunpack.c.l.s4 1966171168
      %v510 = vunpack.c.0.s8 %v509
      %v511 = vlaneseq
      %v512 = vshrl.u32 %v511, 7
      %v513 = vsub.s32 %v510, %v512
      %v514 = vrot.slane %v372, %v513
      %v516 = vunpack.c.l.s4 1966171168
      %v517 = vunpack.c.0.s8 %v516
      %v518 = vlaneseq
      %v519 = vshrl.u32 %v518, 7
      %v520 = vsub.s32 %v517, %v519
      %v521 = vrot.slane %v507, %v520
      %v522 = vcombine.high %v514, %v514
      %v523 = vcombine.high %v521, %v521
      %v525 = vunpack.c.l.s4 1966171168
      %v526 = vunpack.c.0.s8 %v525
      %v527 = vlaneseq
      %v528 = vshrl.u32 %v527, 7
      %v529 = vsub.s32 %v526, %v528
      %v530 = vrot.slane %v514, %v529
      %v532 = vunpack.c.l.s4 1966171168
      %v533 = vunpack.c.0.s8 %v532
      %v534 = vlaneseq
      %v535 = vshrl.u32 %v534, 7
      %v536 = vsub.s32 %v533, %v535
      %v537 = vrot.slane %v521, %v536
      %v539 = vunpack.c.l.s4 1966171168
      %v540 = vunpack.c.0.s8 %v539
      %v541 = vlaneseq
      %v542 = vshrl.u32 %v541, 7
      %v543 = vsub.s32 %v540, %v542
      %v544 = vrot.slane %v522, %v543
      %v546 = vunpack.c.l.s4 1966171168
      %v547 = vunpack.c.0.s8 %v546
      %v548 = vlaneseq
      %v549 = vshrl.u32 %v548, 7
      %v550 = vsub.s32 %v547, %v549
      %v551 = vrot.slane %v523, %v550
      %v552 = vcombine.high %v530, %v530
      %v553 = vcombine.high %v537, %v537
      %v554 = vcombine.high %v544, %v544
      %v555 = vcombine.high %v551, %v551
      %v556 = vcombine.high %v373, %v373
      %v558 = vunpack.c.l.s4 1966171168
      %v559 = vunpack.c.0.s8 %v558
      %v560 = vlaneseq
      %v561 = vshrl.u32 %v560, 7
      %v562 = vsub.s32 %v559, %v561
      %v563 = vrot.slane %v373, %v562
      %v565 = vunpack.c.l.s4 1966171168
      %v566 = vunpack.c.0.s8 %v565
      %v567 = vlaneseq
      %v568 = vshrl.u32 %v567, 7
      %v569 = vsub.s32 %v566, %v568
      %v570 = vrot.slane %v556, %v569
      %v571 = vcombine.high %v563, %v563
      %v572 = vcombine.high %v570, %v570
      %v574 = vunpack.c.l.s4 1966171168
      %v575 = vunpack.c.0.s8 %v574
      %v576 = vlaneseq
      %v577 = vshrl.u32 %v576, 7
      %v578 = vsub.s32 %v575, %v577
      %v579 = vrot.slane %v563, %v578
      %v581 = vunpack.c.l.s4 1966171168
      %v582 = vunpack.c.0.s8 %v581
      %v583 = vlaneseq
      %v584 = vshrl.u32 %v583, 7
      %v585 = vsub.s32 %v582, %v584
      %v586 = vrot.slane %v570, %v585
      %v588 = vunpack.c.l.s4 1966171168
      %v589 = vunpack.c.0.s8 %v588
      %v590 = vlaneseq
      %v591 = vshrl.u32 %v590, 7
      %v592 = vsub.s32 %v589, %v591
      %v593 = vrot.slane %v571, %v592
      %v595 = vunpack.c.l.s4 1966171168
      %v596 = vunpack.c.0.s8 %v595
      %v597 = vlaneseq
      %v598 = vshrl.u32 %v597, 7
      %v599 = vsub.s32 %v596, %v598
      %v600 = vrot.slane %v572, %v599
      %v601 = vcombine.high %v579, %v579
      %v602 = vcombine.high %v586, %v586
      %v603 = vcombine.high %v593, %v593
      %v604 = vcombine.high %v600, %v600
      %v605 = vcombine.high %v374, %v374
      %v607 = vunpack.c.l.s4 1966171168
      %v608 = vunpack.c.0.s8 %v607
      %v609 = vlaneseq
      %v610 = vshrl.u32 %v609, 7
      %v611 = vsub.s32 %v608, %v610
      %v612 = vrot.slane %v374, %v611
      %v614 = vunpack.c.l.s4 1966171168
      %v615 = vunpack.c.0.s8 %v614
      %v616 = vlaneseq
      %v617 = vshrl.u32 %v616, 7
      %v618 = vsub.s32 %v615, %v617
      %v619 = vrot.slane %v605, %v618
      %v620 = vcombine.high %v612, %v612
      %v621 = vcombine.high %v619, %v619
      %v623 = vunpack.c.l.s4 1966171168
      %v624 = vunpack.c.0.s8 %v623
      %v625 = vlaneseq
      %v626 = vshrl.u32 %v625, 7
      %v627 = vsub.s32 %v624, %v626
      %v628 = vrot.slane %v612, %v627
      %v630 = vunpack.c.l.s4 1966171168
      %v631 = vunpack.c.0.s8 %v630
      %v632 = vlaneseq
      %v633 = vshrl.u32 %v632, 7
      %v634 = vsub.s32 %v631, %v633
      %v635 = vrot.slane %v619, %v634
      %v637 = vunpack.c.l.s4 1966171168
      %v638 = vunpack.c.0.s8 %v637
      %v639 = vlaneseq
      %v640 = vshrl.u32 %v639, 7
      %v641 = vsub.s32 %v638, %v640
      %v642 = vrot.slane %v620, %v641
      %v644 = vunpack.c.l.s4 1966171168
      %v645 = vunpack.c.0.s8 %v644
      %v646 = vlaneseq
      %v647 = vshrl.u32 %v646, 7
      %v648 = vsub.s32 %v645, %v647
      %v649 = vrot.slane %v621, %v648
      %v650 = vcombine.high %v628, %v628
      %v651 = vcombine.high %v635, %v635
      %v652 = vcombine.high %v642, %v642
      %v653 = vcombine.high %v649, %v649
      %v654 = vcombine.high %v402, %v402
      %v656 = vunpack.c.l.s4 1966171168
      %v657 = vunpack.c.0.s8 %v656
      %v658 = vlaneseq
      %v659 = vshrl.u32 %v658, 7
      %v660 = vsub.s32 %v657, %v659
      %v661 = vrot.slane %v402, %v660
      %v663 = vunpack.c.l.s4 1966171168
      %v664 = vunpack.c.0.s8 %v663
      %v665 = vlaneseq
      %v666 = vshrl.u32 %v665, 7
      %v667 = vsub.s32 %v664, %v666
      %v668 = vrot.slane %v654, %v667
      %v669 = vcombine.high %v661, %v661
      %v670 = vcombine.high %v668, %v668
      %v672 = vunpack.c.l.s4 1966171168
      %v673 = vunpack.c.0.s8 %v672
      %v674 = vlaneseq
      %v675 = vshrl.u32 %v674, 7
      %v676 = vsub.s32 %v673, %v675
      %v677 = vrot.slane %v661, %v676
      %v679 = vunpack.c.l.s4 1966171168
      %v680 = vunpack.c.0.s8 %v679
      %v681 = vlaneseq
      %v682 = vshrl.u32 %v681, 7
      %v683 = vsub.s32 %v680, %v682
      %v684 = vrot.slane %v668, %v683
      %v686 = vunpack.c.l.s4 1966171168
      %v687 = vunpack.c.0.s8 %v686
      %v688 = vlaneseq
      %v689 = vshrl.u32 %v688, 7
      %v690 = vsub.s32 %v687, %v689
      %v691 = vrot.slane %v669, %v690
      %v693 = vunpack.c.l.s4 1966171168
      %v694 = vunpack.c.0.s8 %v693
      %v695 = vlaneseq
      %v696 = vshrl.u32 %v695, 7
      %v697 = vsub.s32 %v694, %v696
      %v698 = vrot.slane %v670, %v697
      %v699 = vcombine.high %v677, %v677
      %v700 = vcombine.high %v684, %v684
      %v701 = vcombine.high %v691, %v691
      %v702 = vcombine.high %v698, %v698
      %v703 = vlaneseq
      %v704 = vshrl.u32 %v703, 7
      %v705 = vsub.s32 0, %v704
      %v706 = vrot.slane %v432, %v705
      %v707 = vlaneseq
      %v708 = vshrl.u32 %v707, 7
      %v709 = vsub.s32 0, %v708
      %v710 = vrot.slane %v446, %v709
      %v711 = vlaneseq
      %v712 = vshrl.u32 %v711, 7
      %v713 = vsub.s32 0, %v712
      %v714 = vrot.slane %v454, %v713
      %v715 = vlaneseq
      %v716 = vshrl.u32 %v715, 7
      %v717 = vsub.s32 0, %v716
      %v718 = vrot.slane %v456, %v717
      %v719 = vlaneseq
      %v720 = vshrl.u32 %v719, 7
      %v721 = vsub.s32 0, %v720
      %v722 = vrot.slane %v439, %v721
      %v723 = vlaneseq
      %v724 = vshrl.u32 %v723, 7
      %v725 = vsub.s32 0, %v724
      %v726 = vrot.slane %v453, %v725
      %v727 = vlaneseq
      %v728 = vshrl.u32 %v727, 7
      %v729 = vsub.s32 0, %v728
      %v730 = vrot.slane %v455, %v729
      %v731 = vlaneseq
      %v732 = vshrl.u32 %v731, 7
      %v733 = vsub.s32 0, %v732
      %v734 = vrot.slane %v457, %v733
      %v735 = vlaneseq
      %v736 = vshrl.u32 %v735, 7
      %v737 = vsub.s32 0, %v736
      %v738 = vrot.slane %v481, %v737
      %v739 = vlaneseq
      %v740 = vshrl.u32 %v739, 7
      %v741 = vsub.s32 0, %v740
      %v742 = vrot.slane %v495, %v741
      %v743 = vlaneseq
      %v744 = vshrl.u32 %v743, 7
      %v745 = vsub.s32 0, %v744
      %v746 = vrot.slane %v503, %v745
      %v747 = vlaneseq
      %v748 = vshrl.u32 %v747, 7
      %v749 = vsub.s32 0, %v748
      %v750 = vrot.slane %v505, %v749
      %v751 = vlaneseq
      %v752 = vshrl.u32 %v751, 7
      %v753 = vsub.s32 0, %v752
      %v754 = vrot.slane %v488, %v753
      %v755 = vlaneseq
      %v756 = vshrl.u32 %v755, 7
      %v757 = vsub.s32 0, %v756
      %v758 = vrot.slane %v502, %v757
      %v759 = vlaneseq
      %v760 = vshrl.u32 %v759, 7
      %v761 = vsub.s32 0, %v760
      %v762 = vrot.slane %v504, %v761
      %v763 = vlaneseq
      %v764 = vshrl.u32 %v763, 7
      %v765 = vsub.s32 0, %v764
      %v766 = vrot.slane %v506, %v765
      %v767 = vlaneseq
      %v768 = vshrl.u32 %v767, 7
      %v769 = vsub.s32 0, %v768
      %v770 = vrot.slane %v530, %v769
      %v771 = vlaneseq
      %v772 = vshrl.u32 %v771, 7
      %v773 = vsub.s32 0, %v772
      %v774 = vrot.slane %v544, %v773
      %v775 = vlaneseq
      %v776 = vshrl.u32 %v775, 7
      %v777 = vsub.s32 0, %v776
      %v778 = vrot.slane %v552, %v777
      %v779 = vlaneseq
      %v780 = vshrl.u32 %v779, 7
      %v781 = vsub.s32 0, %v780
      %v782 = vrot.slane %v554, %v781
      %v783 = vlaneseq
      %v784 = vshrl.u32 %v783, 7
      %v785 = vsub.s32 0, %v784
      %v786 = vrot.slane %v537, %v785
      %v787 = vlaneseq
      %v788 = vshrl.u32 %v787, 7
      %v789 = vsub.s32 0, %v788
      %v790 = vrot.slane %v551, %v789
      %v791 = vlaneseq
      %v792 = vshrl.u32 %v791, 7
      %v793 = vsub.s32 0, %v792
      %v794 = vrot.slane %v553, %v793
      %v795 = vlaneseq
      %v796 = vshrl.u32 %v795, 7
      %v797 = vsub.s32 0, %v796
      %v798 = vrot.slane %v555, %v797
      %v799 = vlaneseq
      %v800 = vshrl.u32 %v799, 7
      %v801 = vsub.s32 0, %v800
      %v802 = vrot.slane %v579, %v801
      %v803 = vlaneseq
      %v804 = vshrl.u32 %v803, 7
      %v805 = vsub.s32 0, %v804
      %v806 = vrot.slane %v593, %v805
      %v807 = vlaneseq
      %v808 = vshrl.u32 %v807, 7
      %v809 = vsub.s32 0, %v808
      %v810 = vrot.slane %v601, %v809
      %v811 = vlaneseq
      %v812 = vshrl.u32 %v811, 7
      %v813 = vsub.s32 0, %v812
      %v814 = vrot.slane %v603, %v813
      %v815 = vlaneseq
      %v816 = vshrl.u32 %v815, 7
      %v817 = vsub.s32 0, %v816
      %v818 = vrot.slane %v586, %v817
      %v819 = vlaneseq
      %v820 = vshrl.u32 %v819, 7
      %v821 = vsub.s32 0, %v820
      %v822 = vrot.slane %v600, %v821
      %v823 = vlaneseq
      %v824 = vshrl.u32 %v823, 7
      %v825 = vsub.s32 0, %v824
      %v826 = vrot.slane %v602, %v825
      %v827 = vlaneseq
      %v828 = vshrl.u32 %v827, 7
      %v829 = vsub.s32 0, %v828
      %v830 = vrot.slane %v604, %v829
      %v831 = vlaneseq
      %v832 = vshrl.u32 %v831, 7
      %v833 = vsub.s32 0, %v832
      %v834 = vrot.slane %v628, %v833
      %v835 = vlaneseq
      %v836 = vshrl.u32 %v835, 7
      %v837 = vsub.s32 0, %v836
      %v838 = vrot.slane %v642, %v837
      %v839 = vlaneseq
      %v840 = vshrl.u32 %v839, 7
      %v841 = vsub.s32 0, %v840
      %v842 = vrot.slane %v650, %v841
      %v843 = vlaneseq
      %v844 = vshrl.u32 %v843, 7
      %v845 = vsub.s32 0, %v844
      %v846 = vrot.slane %v652, %v845
      %v847 = vlaneseq
      %v848 = vshrl.u32 %v847, 7
      %v849 = vsub.s32 0, %v848
      %v850 = vrot.slane %v635, %v849
      %v851 = vlaneseq
      %v852 = vshrl.u32 %v851, 7
      %v853 = vsub.s32 0, %v852
      %v854 = vrot.slane %v649, %v853
      %v855 = vlaneseq
      %v856 = vshrl.u32 %v855, 7
      %v857 = vsub.s32 0, %v856
      %v858 = vrot.slane %v651, %v857
      %v859 = vlaneseq
      %v860 = vshrl.u32 %v859, 7
      %v861 = vsub.s32 0, %v860
      %v862 = vrot.slane %v653, %v861
      %v863 = vlaneseq
      %v864 = vshrl.u32 %v863, 7
      %v865 = vsub.s32 0, %v864
      %v866 = vrot.slane %v677, %v865
      %v867 = vlaneseq
      %v868 = vshrl.u32 %v867, 7
      %v869 = vsub.s32 0, %v868
      %v870 = vrot.slane %v691, %v869
      %v871 = vlaneseq
      %v872 = vshrl.u32 %v871, 7
      %v873 = vsub.s32 0, %v872
      %v874 = vrot.slane %v699, %v873
      %v875 = vlaneseq
      %v876 = vshrl.u32 %v875, 7
      %v877 = vsub.s32 0, %v876
      %v878 = vrot.slane %v701, %v877
      %v879 = vlaneseq
      %v880 = vshrl.u32 %v879, 7
      %v881 = vsub.s32 0, %v880
      %v882 = vrot.slane %v684, %v881
      %v883 = vlaneseq
      %v884 = vshrl.u32 %v883, 7
      %v885 = vsub.s32 0, %v884
      %v886 = vrot.slane %v698, %v885
      %v887 = vlaneseq
      %v888 = vshrl.u32 %v887, 7
      %v889 = vsub.s32 0, %v888
      %v890 = vrot.slane %v700, %v889
      %v891 = vlaneseq
      %v892 = vshrl.u32 %v891, 7
      %v893 = vsub.s32 0, %v892
      %v894 = vrot.slane %v702, %v893
      %v895 = vcombine.low %v706, %v710
      %v896 = vcombine.low %v714, %v718
      %v898 = vunpack.c.l.s4 1983009808
      %v899 = vunpack.c.0.s8 %v898
      %v900 = vlaneseq
      %v901 = vshrl.u32 %v900, 7
      %v902 = vsub.s32 %v899, %v901
      %v903 = vrot.slane %v895, %v902
      %v905 = vunpack.c.l.s4 1983009808
      %v906 = vunpack.c.0.s8 %v905
      %v907 = vlaneseq
      %v908 = vshrl.u32 %v907, 7
      %v909 = vsub.s32 %v906, %v908
      %v910 = vrot.slane %v896, %v909
      %v911 = vcombine.low %v903, %v910
      %v912 = vcombine.low %v722, %v726
      %v913 = vcombine.low %v730, %v734
      %v915 = vunpack.c.l.s4 1983009808
      %v916 = vunpack.c.0.s8 %v915
      %v917 = vlaneseq
      %v918 = vshrl.u32 %v917, 7
      %v919 = vsub.s32 %v916, %v918
      %v920 = vrot.slane %v912, %v919
      %v922 = vunpack.c.l.s4 1983009808
      %v923 = vunpack.c.0.s8 %v922
      %v924 = vlaneseq
      %v925 = vshrl.u32 %v924, 7
      %v926 = vsub.s32 %v923, %v925
      %v927 = vrot.slane %v913, %v926
      %v928 = vcombine.low %v920, %v927
      %v929 = vcombine.low %v738, %v742
      %v930 = vcombine.low %v746, %v750
      %v932 = vunpack.c.l.s4 1983009808
      %v933 = vunpack.c.0.s8 %v932
      %v934 = vlaneseq
      %v935 = vshrl.u32 %v934, 7
      %v936 = vsub.s32 %v933, %v935
      %v937 = vrot.slane %v929, %v936
      %v939 = vunpack.c.l.s4 1983009808
      %v940 = vunpack.c.0.s8 %v939
      %v941 = vlaneseq
      %v942 = vshrl.u32 %v941, 7
      %v943 = vsub.s32 %v940, %v942
      %v944 = vrot.slane %v930, %v943
      %v945 = vcombine.low %v937, %v944
      %v946 = vcombine.low %v754, %v758
      %v947 = vcombine.low %v762, %v766
      %v949 = vunpack.c.l.s4 1983009808
      %v950 = vunpack.c.0.s8 %v949
      %v951 = vlaneseq
      %v952 = vshrl.u32 %v951, 7
      %v953 = vsub.s32 %v950, %v952
      %v954 = vrot.slane %v946, %v953
      %v956 = vunpack.c.l.s4 1983009808
      %v957 = vunpack.c.0.s8 %v956
      %v958 = vlaneseq
      %v959 = vshrl.u32 %v958, 7
      %v960 = vsub.s32 %v957, %v959
      %v961 = vrot.slane %v947, %v960
      %v962 = vcombine.low %v954, %v961
      %v963 = vcombine.low %v770, %v774
      %v964 = vcombine.low %v778, %v782
      %v966 = vunpack.c.l.s4 1983009808
      %v967 = vunpack.c.0.s8 %v966
      %v968 = vlaneseq
      %v969 = vshrl.u32 %v968, 7
      %v970 = vsub.s32 %v967, %v969
      %v971 = vrot.slane %v963, %v970
      %v973 = vunpack.c.l.s4 1983009808
      %v974 = vunpack.c.0.s8 %v973
      %v975 = vlaneseq
      %v976 = vshrl.u32 %v975, 7
      %v977 = vsub.s32 %v974, %v976
      %v978 = vrot.slane %v964, %v977
      %v979 = vcombine.low %v971, %v978
      %v980 = vcombine.low %v786, %v790
      %v981 = vcombine.low %v794, %v798
      %v983 = vunpack.c.l.s4 1983009808
      %v984 = vunpack.c.0.s8 %v983
      %v985 = vlaneseq
      %v986 = vshrl.u32 %v985, 7
      %v987 = vsub.s32 %v984, %v986
      %v988 = vrot.slane %v980, %v987
      %v990 = vunpack.c.l.s4 1983009808
      %v991 = vunpack.c.0.s8 %v990
      %v992 = vlaneseq
      %v993 = vshrl.u32 %v992, 7
      %v994 = vsub.s32 %v991, %v993
      %v995 = vrot.slane %v981, %v994
      %v996 = vcombine.low %v988, %v995
      %v997 = vcombine.low %v802, %v806
      %v998 = vcombine.low %v810, %v814
      %v1000 = vunpack.c.l.s4 1983009808
      %v1001 = vunpack.c.0.s8 %v1000
      %v1002 = vlaneseq
      %v1003 = vshrl.u32 %v1002, 7
      %v1004 = vsub.s32 %v1001, %v1003
      %v1005 = vrot.slane %v997, %v1004
      %v1007 = vunpack.c.l.s4 1983009808
      %v1008 = vunpack.c.0.s8 %v1007
      %v1009 = vlaneseq
      %v1010 = vshrl.u32 %v1009, 7
      %v1011 = vsub.s32 %v1008, %v1010
      %v1012 = vrot.slane %v998, %v1011
      %v1013 = vcombine.low %v1005, %v1012
      %v1014 = vcombine.low %v818, %v822
      %v1015 = vcombine.low %v826, %v830
      %v1017 = vunpack.c.l.s4 1983009808
      %v1018 = vunpack.c.0.s8 %v1017
      %v1019 = vlaneseq
      %v1020 = vshrl.u32 %v1019, 7
      %v1021 = vsub.s32 %v1018, %v1020
      %v1022 = vrot.slane %v1014, %v1021
      %v1024 = vunpack.c.l.s4 1983009808
      %v1025 = vunpack.c.0.s8 %v1024
      %v1026 = vlaneseq
      %v1027 = vshrl.u32 %v1026, 7
      %v1028 = vsub.s32 %v1025, %v1027
      %v1029 = vrot.slane %v1015, %v1028
      %v1030 = vcombine.low %v1022, %v1029
      %v1031 = vcombine.low %v834, %v838
      %v1032 = vcombine.low %v842, %v846
      %v1034 = vunpack.c.l.s4 1983009808
      %v1035 = vunpack.c.0.s8 %v1034
      %v1036 = vlaneseq
      %v1037 = vshrl.u32 %v1036, 7
      %v1038 = vsub.s32 %v1035, %v1037
      %v1039 = vrot.slane %v1031, %v1038
      %v1041 = vunpack.c.l.s4 1983009808
      %v1042 = vunpack.c.0.s8 %v1041
      %v1043 = vlaneseq
      %v1044 = vshrl.u32 %v1043, 7
      %v1045 = vsub.s32 %v1042, %v1044
      %v1046 = vrot.slane %v1032, %v1045
      %v1047 = vcombine.low %v1039, %v1046
      %v1048 = vcombine.low %v850, %v854
      %v1049 = vcombine.low %v858, %v862
      %v1051 = vunpack.c.l.s4 1983009808
      %v1052 = vunpack.c.0.s8 %v1051
      %v1053 = vlaneseq
      %v1054 = vshrl.u32 %v1053, 7
      %v1055 = vsub.s32 %v1052, %v1054
      %v1056 = vrot.slane %v1048, %v1055
      %v1058 = vunpack.c.l.s4 1983009808
      %v1059 = vunpack.c.0.s8 %v1058
      %v1060 = vlaneseq
      %v1061 = vshrl.u32 %v1060, 7
      %v1062 = vsub.s32 %v1059, %v1061
      %v1063 = vrot.slane %v1049, %v1062
      %v1064 = vcombine.low %v1056, %v1063
      %v1065 = vcombine.low %v866, %v870
      %v1066 = vcombine.low %v874, %v878
      %v1068 = vunpack.c.l.s4 1983009808
      %v1069 = vunpack.c.0.s8 %v1068
      %v1070 = vlaneseq
      %v1071 = vshrl.u32 %v1070, 7
      %v1072 = vsub.s32 %v1069, %v1071
      %v1073 = vrot.slane %v1065, %v1072
      %v1075 = vunpack.c.l.s4 1983009808
      %v1076 = vunpack.c.0.s8 %v1075
      %v1077 = vlaneseq
      %v1078 = vshrl.u32 %v1077, 7
      %v1079 = vsub.s32 %v1076, %v1078
      %v1080 = vrot.slane %v1066, %v1079
      %v1081 = vcombine.low %v1073, %v1080
      %v1082 = vcombine.low %v882, %v886
      %v1083 = vcombine.low %v890, %v894
      %v1085 = vunpack.c.l.s4 1983009808
      %v1086 = vunpack.c.0.s8 %v1085
      %v1087 = vlaneseq
      %v1088 = vshrl.u32 %v1087, 7
      %v1089 = vsub.s32 %v1086, %v1088
      %v1090 = vrot.slane %v1082, %v1089
      %v1092 = vunpack.c.l.s4 1983009808
      %v1093 = vunpack.c.0.s8 %v1092
      %v1094 = vlaneseq
      %v1095 = vshrl.u32 %v1094, 7
      %v1096 = vsub.s32 %v1093, %v1095
      %v1097 = vrot.slane %v1083, %v1096
      %v1098 = vcombine.low %v1090, %v1097
      %v1111 = vpack.c.bf16 %v928, %v911
      %v1112 = vpack.c.bf16 %v962, %v945
      %v1113 = vpack.c.bf16 %v996, %v979
      %v1114 = vpack.c.bf16 %v1030, %v1013
      %v1115 = vpack.c.bf16 %v1064, %v1047
      %v1116 = vpack.c.bf16 %v1098, %v1081
      %v1118 = vshrl.u32 %v1111, 16
      %v1120 = vrot.slane %v1118, 7
      %v1121 = vshll.u32 %v1111, 16
      %v1123 = vor.u32 %v1120, %v1121
      %v1125 = vshrl.u32 %v1112, 16
      %v1127 = vrot.slane %v1125, 7
      %v1128 = vshll.u32 %v1112, 16
      %v1130 = vor.u32 %v1127, %v1128
      %v1132 = vshrl.u32 %v1113, 16
      %v1134 = vrot.slane %v1132, 7
      %v1135 = vshll.u32 %v1113, 16
      %v1137 = vor.u32 %v1134, %v1135
      %v1139 = vshrl.u32 %v1114, 16
      %v1141 = vrot.slane %v1139, 7
      %v1142 = vshll.u32 %v1114, 16
      %v1144 = vor.u32 %v1141, %v1142
      %v1146 = vshrl.u32 %v1115, 16
      %v1148 = vrot.slane %v1146, 7
      %v1149 = vshll.u32 %v1115, 16
      %v1151 = vor.u32 %v1148, %v1149
      %vm1157 = vcmask 1047552
      %vm1158 = vsmask.f32 7938
      %vm1159 = vmand %vm1157, %vm1158
      %v1160 = vld [vmem:[#allocation2] sm:$0xff]
      %v1161 = vsel %vm1159, %v1123, %v1160
      %1162 = vst [vmem:[#allocation2] sm:$0xff] %v1161
      %v1163 = vld [vmem:[#allocation2 + $0x48] sm:$0xff]
      %v1164 = vsel %vm1159, %v1130, %v1163
      %1165 = vst [vmem:[#allocation2 + $0x48] sm:$0xff] %v1164
      %v1166 = vld [vmem:[#allocation2 + $0x90] sm:$0xff]
      %v1167 = vsel %vm1159, %v1130, %v1166
      %1168 = vst [vmem:[#allocation2 + $0x90] sm:$0xff] %v1167
      %v1169 = vld [vmem:[#allocation2 + $0xd8] sm:$0xff]
      %v1170 = vsel %vm1159, %v1137, %v1169
      %1171 = vst [vmem:[#allocation2 + $0xd8] sm:$0xff] %v1170
      %v1172 = vld [vmem:[#allocation2 + $0x120] sm:$0xff]
      %v1173 = vsel %vm1159, %v1137, %v1172
      %1174 = vst [vmem:[#allocation2 + $0x120] sm:$0xff] %v1173
      %v1175 = vld [vmem:[#allocation2 + $0x168] sm:$0xff]
      %v1176 = vsel %vm1159, %v1144, %v1175
      %1177 = vst [vmem:[#allocation2 + $0x168] sm:$0xff] %v1176
      %v1178 = vld [vmem:[#allocation2 + $0x1b0] sm:$0xff]
      %v1179 = vsel %vm1159, %v1144, %v1178
      %1180 = vst [vmem:[#allocation2 + $0x1b0] sm:$0xff] %v1179
      %v1181 = vld [vmem:[#allocation2 + $0x1f8] sm:$0xff]
      %v1182 = vsel %vm1159, %v1151, %v1181
      %1183 = vst [vmem:[#allocation2 + $0x1f8] sm:$0xff] %v1182
      %vm1184 = vcmask 1040384
      %vm1185 = vsmask.f32 256
      %vm1186 = vmand %vm1184, %vm1185
      %v1187 = vld [vmem:[#allocation2] sm:$0x1]
      %v1188 = vsel %vm1186, 0, %v1187
      %1189 = vst [vmem:[#allocation2] sm:$0x1] %v1188
      %v1190 = vld [vmem:[#allocation2 + $0x48] sm:$0x1]
      %v1191 = vsel %vm1186, 0, %v1190
      %1192 = vst [vmem:[#allocation2 + $0x48] sm:$0x1] %v1191
      %v1193 = vld [vmem:[#allocation2 + $0x90] sm:$0x1]
      %v1194 = vsel %vm1186, 0, %v1193
      %1195 = vst [vmem:[#allocation2 + $0x90] sm:$0x1] %v1194
      %v1196 = vld [vmem:[#allocation2 + $0xd8] sm:$0x1]
      %v1197 = vsel %vm1186, 0, %v1196
      %1198 = vst [vmem:[#allocation2 + $0xd8] sm:$0x1] %v1197
      %v1199 = vld [vmem:[#allocation2 + $0x120] sm:$0x1]
      %v1200 = vsel %vm1186, 0, %v1199
      %1201 = vst [vmem:[#allocation2 + $0x120] sm:$0x1] %v1200
      %v1202 = vld [vmem:[#allocation2 + $0x168] sm:$0x1]
      %v1203 = vsel %vm1186, 0, %v1202
      %1204 = vst [vmem:[#allocation2 + $0x168] sm:$0x1] %v1203
      %v1205 = vld [vmem:[#allocation2 + $0x1b0] sm:$0x1]
      %v1206 = vsel %vm1186, 0, %v1205
      %1207 = vst [vmem:[#allocation2 + $0x1b0] sm:$0x1] %v1206
      %v1208 = vld [vmem:[#allocation2 + $0x1f8] sm:$0x1]
      %v1209 = vsel %vm1186, 0, %v1208
      %1210 = vst [vmem:[#allocation2 + $0x1f8] sm:$0x1] %v1209
      %1211 = vst [vmem:[#allocation2 + $0x8] sm:$0xff] %v1111
      %1212 = vst [vmem:[#allocation2 + $0x50] sm:$0xff] %v1112
      %1213 = vst [vmem:[#allocation2 + $0x98] sm:$0xff] %v1112
      %1214 = vst [vmem:[#allocation2 + $0xe0] sm:$0xff] %v1113
      %1215 = vst [vmem:[#allocation2 + $0x128] sm:$0xff] %v1113
      %1216 = vst [vmem:[#allocation2 + $0x170] sm:$0xff] %v1114
      %1217 = vst [vmem:[#allocation2 + $0x1b8] sm:$0xff] %v1114
      %1218 = vst [vmem:[#allocation2 + $0x200] sm:$0xff] %v1115
      %v1219 = vrot.slane %v1121, 1
      %v1220 = vor.u32 %v1118, %v1219
      %v1221 = vrot.slane %v1128, 1
      %v1222 = vor.u32 %v1125, %v1221
      %v1223 = vrot.slane %v1135, 1
      %v1224 = vor.u32 %v1132, %v1223
      %v1225 = vrot.slane %v1142, 1
      %v1226 = vor.u32 %v1139, %v1225
      %v1227 = vrot.slane %v1149, 1
      %v1228 = vor.u32 %v1146, %v1227
      %vm1234 = vsmask.f32 7424
      %vm1235 = vmand %vm1157, %vm1234
      %v1236 = vld [vmem:[#allocation2 + $0x10] sm:$0xff]
      %v1237 = vsel %vm1235, %v1220, %v1236
      %1238 = vst [vmem:[#allocation2 + $0x10] sm:$0xff] %v1237
      %v1239 = vld [vmem:[#allocation2 + $0x58] sm:$0xff]
      %v1240 = vsel %vm1235, %v1222, %v1239
      %1241 = vst [vmem:[#allocation2 + $0x58] sm:$0xff] %v1240
      %v1242 = vld [vmem:[#allocation2 + $0xa0] sm:$0xff]
      %v1243 = vsel %vm1235, %v1222, %v1242
      %1244 = vst [vmem:[#allocation2 + $0xa0] sm:$0xff] %v1243
      %v1245 = vld [vmem:[#allocation2 + $0xe8] sm:$0xff]
      %v1246 = vsel %vm1235, %v1224, %v1245
      %1247 = vst [vmem:[#allocation2 + $0xe8] sm:$0xff] %v1246
      %v1248 = vld [vmem:[#allocation2 + $0x130] sm:$0xff]
      %v1249 = vsel %vm1235, %v1224, %v1248
      %1250 = vst [vmem:[#allocation2 + $0x130] sm:$0xff] %v1249
      %v1251 = vld [vmem:[#allocation2 + $0x178] sm:$0xff]
      %v1252 = vsel %vm1235, %v1226, %v1251
      %1253 = vst [vmem:[#allocation2 + $0x178] sm:$0xff] %v1252
      %v1254 = vld [vmem:[#allocation2 + $0x1c0] sm:$0xff]
      %v1255 = vsel %vm1235, %v1226, %v1254
      %1256 = vst [vmem:[#allocation2 + $0x1c0] sm:$0xff] %v1255
      %v1257 = vld [vmem:[#allocation2 + $0x208] sm:$0xff]
      %v1258 = vsel %vm1235, %v1228, %v1257
      %1259 = vst [vmem:[#allocation2 + $0x208] sm:$0xff] %v1258
      %vm1260 = vcmask 1047559
      %vm1261 = vsmask.f32 7966
      %vm1262 = vmand %vm1260, %vm1261
      %v1263 = vld [vmem:[#allocation2 + $0x10] sm:$0x80]
      %v1264 = vsel %vm1262, 0, %v1263
      %1265 = vst [vmem:[#allocation2 + $0x10] sm:$0x80] %v1264
      %v1266 = vld [vmem:[#allocation2 + $0x58] sm:$0x80]
      %v1267 = vsel %vm1262, 0, %v1266
      %1268 = vst [vmem:[#allocation2 + $0x58] sm:$0x80] %v1267
      %v1269 = vld [vmem:[#allocation2 + $0xa0] sm:$0x80]
      %v1270 = vsel %vm1262, 0, %v1269
      %1271 = vst [vmem:[#allocation2 + $0xa0] sm:$0x80] %v1270
      %v1272 = vld [vmem:[#allocation2 + $0xe8] sm:$0x80]
      %v1273 = vsel %vm1262, 0, %v1272
      %1274 = vst [vmem:[#allocation2 + $0xe8] sm:$0x80] %v1273
      %v1275 = vld [vmem:[#allocation2 + $0x130] sm:$0x80]
      %v1276 = vsel %vm1262, 0, %v1275
      %1277 = vst [vmem:[#allocation2 + $0x130] sm:$0x80] %v1276
      %v1278 = vld [vmem:[#allocation2 + $0x178] sm:$0x80]
      %v1279 = vsel %vm1262, 0, %v1278
      %1280 = vst [vmem:[#allocation2 + $0x178] sm:$0x80] %v1279
      %v1281 = vld [vmem:[#allocation2 + $0x1c0] sm:$0x80]
      %v1282 = vsel %vm1262, 0, %v1281
      %1283 = vst [vmem:[#allocation2 + $0x1c0] sm:$0x80] %v1282
      %v1284 = vld [vmem:[#allocation2 + $0x208] sm:$0x80]
      %v1285 = vsel %vm1262, 0, %v1284
      %1286 = vst [vmem:[#allocation2 + $0x208] sm:$0x80] %v1285
      %v1287 = vld [vmem:[#allocation2 + $0x18] sm:$0xff]
      %v1288 = vsel %vm1159, %v1130, %v1287
      %1289 = vst [vmem:[#allocation2 + $0x18] sm:$0xff] %v1288
      %v1290 = vld [vmem:[#allocation2 + $0x60] sm:$0xff]
      %v1291 = vsel %vm1159, %v1130, %v1290
      %1292 = vst [vmem:[#allocation2 + $0x60] sm:$0xff] %v1291
      %v1293 = vld [vmem:[#allocation2 + $0xa8] sm:$0xff]
      %v1294 = vsel %vm1159, %v1137, %v1293
      %1295 = vst [vmem:[#allocation2 + $0xa8] sm:$0xff] %v1294
      %v1296 = vld [vmem:[#allocation2 + $0xf0] sm:$0xff]
      %v1297 = vsel %vm1159, %v1137, %v1296
      %1298 = vst [vmem:[#allocation2 + $0xf0] sm:$0xff] %v1297
      %v1299 = vld [vmem:[#allocation2 + $0x138] sm:$0xff]
      %v1300 = vsel %vm1159, %v1144, %v1299
      %1301 = vst [vmem:[#allocation2 + $0x138] sm:$0xff] %v1300
      %v1302 = vld [vmem:[#allocation2 + $0x180] sm:$0xff]
      %v1303 = vsel %vm1159, %v1144, %v1302
      %1304 = vst [vmem:[#allocation2 + $0x180] sm:$0xff] %v1303
      %v1305 = vld [vmem:[#allocation2 + $0x1c8] sm:$0xff]
      %v1306 = vsel %vm1159, %v1151, %v1305
      %1307 = vst [vmem:[#allocation2 + $0x1c8] sm:$0xff] %v1306
      %v1308 = vld [vmem:[#allocation2 + $0x210] sm:$0xff]
      %v1309 = vsel %vm1159, %v1151, %v1308
      %1310 = vst [vmem:[#allocation2 + $0x210] sm:$0xff] %v1309
      %v1311 = vld [vmem:[#allocation2 + $0x18] sm:$0x1]
      %v1312 = vsel %vm1186, 0, %v1311
      %1313 = vst [vmem:[#allocation2 + $0x18] sm:$0x1] %v1312
      %v1314 = vld [vmem:[#allocation2 + $0x60] sm:$0x1]
      %v1315 = vsel %vm1186, 0, %v1314
      %1316 = vst [vmem:[#allocation2 + $0x60] sm:$0x1] %v1315
      %v1317 = vld [vmem:[#allocation2 + $0xa8] sm:$0x1]
      %v1318 = vsel %vm1186, 0, %v1317
      %1319 = vst [vmem:[#allocation2 + $0xa8] sm:$0x1] %v1318
      %v1320 = vld [vmem:[#allocation2 + $0xf0] sm:$0x1]
      %v1321 = vsel %vm1186, 0, %v1320
      %1322 = vst [vmem:[#allocation2 + $0xf0] sm:$0x1] %v1321
      %v1323 = vld [vmem:[#allocation2 + $0x138] sm:$0x1]
      %v1324 = vsel %vm1186, 0, %v1323
      %1325 = vst [vmem:[#allocation2 + $0x138] sm:$0x1] %v1324
      %v1326 = vld [vmem:[#allocation2 + $0x180] sm:$0x1]
      %v1327 = vsel %vm1186, 0, %v1326
      %1328 = vst [vmem:[#allocation2 + $0x180] sm:$0x1] %v1327
      %v1329 = vld [vmem:[#allocation2 + $0x1c8] sm:$0x1]
      %v1330 = vsel %vm1186, 0, %v1329
      %1331 = vst [vmem:[#allocation2 + $0x1c8] sm:$0x1] %v1330
      %v1332 = vld [vmem:[#allocation2 + $0x210] sm:$0x1]
      %v1333 = vsel %vm1186, 0, %v1332
      %1334 = vst [vmem:[#allocation2 + $0x210] sm:$0x1] %v1333
      %1335 = vst [vmem:[#allocation2 + $0x20] sm:$0xff] %v1112
      %1336 = vst [vmem:[#allocation2 + $0x68] sm:$0xff] %v1112
      %1337 = vst [vmem:[#allocation2 + $0xb0] sm:$0xff] %v1113
      %1338 = vst [vmem:[#allocation2 + $0xf8] sm:$0xff] %v1113
      %1339 = vst [vmem:[#allocation2 + $0x140] sm:$0xff] %v1114
      %1340 = vst [vmem:[#allocation2 + $0x188] sm:$0xff] %v1114
      %1341 = vst [vmem:[#allocation2 + $0x1d0] sm:$0xff] %v1115
      %1342 = vst [vmem:[#allocation2 + $0x218] sm:$0xff] %v1115
      %v1343 = vld [vmem:[#allocation2 + $0x28] sm:$0xff]
      %v1344 = vsel %vm1235, %v1222, %v1343
      %1345 = vst [vmem:[#allocation2 + $0x28] sm:$0xff] %v1344
      %v1346 = vld [vmem:[#allocation2 + $0x70] sm:$0xff]
      %v1347 = vsel %vm1235, %v1222, %v1346
      %1348 = vst [vmem:[#allocation2 + $0x70] sm:$0xff] %v1347
      %v1349 = vld [vmem:[#allocation2 + $0xb8] sm:$0xff]
      %v1350 = vsel %vm1235, %v1224, %v1349
      %1351 = vst [vmem:[#allocation2 + $0xb8] sm:$0xff] %v1350
      %v1352 = vld [vmem:[#allocation2 + $0x100] sm:$0xff]
      %v1353 = vsel %vm1235, %v1224, %v1352
      %1354 = vst [vmem:[#allocation2 + $0x100] sm:$0xff] %v1353
      %v1355 = vld [vmem:[#allocation2 + $0x148] sm:$0xff]
      %v1356 = vsel %vm1235, %v1226, %v1355
      %1357 = vst [vmem:[#allocation2 + $0x148] sm:$0xff] %v1356
      %v1358 = vld [vmem:[#allocation2 + $0x190] sm:$0xff]
      %v1359 = vsel %vm1235, %v1226, %v1358
      %1360 = vst [vmem:[#allocation2 + $0x190] sm:$0xff] %v1359
      %v1361 = vld [vmem:[#allocation2 + $0x1d8] sm:$0xff]
      %v1362 = vsel %vm1235, %v1228, %v1361
      %1363 = vst [vmem:[#allocation2 + $0x1d8] sm:$0xff] %v1362
      %v1364 = vld [vmem:[#allocation2 + $0x220] sm:$0xff]
      %v1365 = vsel %vm1235, %v1228, %v1364
      %1366 = vst [vmem:[#allocation2 + $0x220] sm:$0xff] %v1365
      %v1367 = vld [vmem:[#allocation2 + $0x28] sm:$0x80]
      %v1368 = vsel %vm1262, 0, %v1367
      %1369 = vst [vmem:[#allocation2 + $0x28] sm:$0x80] %v1368
      %v1370 = vld [vmem:[#allocation2 + $0x70] sm:$0x80]
      %v1371 = vsel %vm1262, 0, %v1370
      %1372 = vst [vmem:[#allocation2 + $0x70] sm:$0x80] %v1371
      %v1373 = vld [vmem:[#allocation2 + $0xb8] sm:$0x80]
      %v1374 = vsel %vm1262, 0, %v1373
      %1375 = vst [vmem:[#allocation2 + $0xb8] sm:$0x80] %v1374
      %v1376 = vld [vmem:[#allocation2 + $0x100] sm:$0x80]
      %v1377 = vsel %vm1262, 0, %v1376
      %1378 = vst [vmem:[#allocation2 + $0x100] sm:$0x80] %v1377
      %v1379 = vld [vmem:[#allocation2 + $0x148] sm:$0x80]
      %v1380 = vsel %vm1262, 0, %v1379
      %1381 = vst [vmem:[#allocation2 + $0x148] sm:$0x80] %v1380
      %v1382 = vld [vmem:[#allocation2 + $0x190] sm:$0x80]
      %v1383 = vsel %vm1262, 0, %v1382
      %1384 = vst [vmem:[#allocation2 + $0x190] sm:$0x80] %v1383
      %v1385 = vld [vmem:[#allocation2 + $0x1d8] sm:$0x80]
      %v1386 = vsel %vm1262, 0, %v1385
      %1387 = vst [vmem:[#allocation2 + $0x1d8] sm:$0x80] %v1386
      %v1388 = vld [vmem:[#allocation2 + $0x220] sm:$0x80]
      %v1389 = vsel %vm1262, 0, %v1388
      %1390 = vst [vmem:[#allocation2 + $0x220] sm:$0x80] %v1389
      %v1392 = vshrl.u32 %v1116, 16
      %v1394 = vrot.slane %v1392, 7
      %v1395 = vshll.u32 %v1116, 16
      %v1397 = vor.u32 %v1394, %v1395
      %v1399 = vld [vmem:[#allocation2 + $0x30] sm:$0xff]
      %v1400 = vsel %vm1159, %v1130, %v1399
      %1401 = vst [vmem:[#allocation2 + $0x30] sm:$0xff] %v1400
      %v1402 = vld [vmem:[#allocation2 + $0x78] sm:$0xff]
      %v1403 = vsel %vm1159, %v1137, %v1402
      %1404 = vst [vmem:[#allocation2 + $0x78] sm:$0xff] %v1403
      %v1405 = vld [vmem:[#allocation2 + $0xc0] sm:$0xff]
      %v1406 = vsel %vm1159, %v1137, %v1405
      %1407 = vst [vmem:[#allocation2 + $0xc0] sm:$0xff] %v1406
      %v1408 = vld [vmem:[#allocation2 + $0x108] sm:$0xff]
      %v1409 = vsel %vm1159, %v1144, %v1408
      %1410 = vst [vmem:[#allocation2 + $0x108] sm:$0xff] %v1409
      %v1411 = vld [vmem:[#allocation2 + $0x150] sm:$0xff]
      %v1412 = vsel %vm1159, %v1144, %v1411
      %1413 = vst [vmem:[#allocation2 + $0x150] sm:$0xff] %v1412
      %v1414 = vld [vmem:[#allocation2 + $0x198] sm:$0xff]
      %v1415 = vsel %vm1159, %v1151, %v1414
      %1416 = vst [vmem:[#allocation2 + $0x198] sm:$0xff] %v1415
      %v1417 = vld [vmem:[#allocation2 + $0x1e0] sm:$0xff]
      %v1418 = vsel %vm1159, %v1151, %v1417
      %1419 = vst [vmem:[#allocation2 + $0x1e0] sm:$0xff] %v1418
      %v1420 = vld [vmem:[#allocation2 + $0x228] sm:$0xff]
      %v1421 = vsel %vm1159, %v1397, %v1420
      %1422 = vst [vmem:[#allocation2 + $0x228] sm:$0xff] %v1421
      %v1423 = vld [vmem:[#allocation2 + $0x30] sm:$0x1]
      %v1424 = vsel %vm1186, 0, %v1423
      %1425 = vst [vmem:[#allocation2 + $0x30] sm:$0x1] %v1424
      %v1426 = vld [vmem:[#allocation2 + $0x78] sm:$0x1]
      %v1427 = vsel %vm1186, 0, %v1426
      %1428 = vst [vmem:[#allocation2 + $0x78] sm:$0x1] %v1427
      %v1429 = vld [vmem:[#allocation2 + $0xc0] sm:$0x1]
      %v1430 = vsel %vm1186, 0, %v1429
      %1431 = vst [vmem:[#allocation2 + $0xc0] sm:$0x1] %v1430
      %v1432 = vld [vmem:[#allocation2 + $0x108] sm:$0x1]
      %v1433 = vsel %vm1186, 0, %v1432
      %1434 = vst [vmem:[#allocation2 + $0x108] sm:$0x1] %v1433
      %v1435 = vld [vmem:[#allocation2 + $0x150] sm:$0x1]
      %v1436 = vsel %vm1186, 0, %v1435
      %1437 = vst [vmem:[#allocation2 + $0x150] sm:$0x1] %v1436
      %v1438 = vld [vmem:[#allocation2 + $0x198] sm:$0x1]
      %v1439 = vsel %vm1186, 0, %v1438
      %1440 = vst [vmem:[#allocation2 + $0x198] sm:$0x1] %v1439
      %v1441 = vld [vmem:[#allocation2 + $0x1e0] sm:$0x1]
      %v1442 = vsel %vm1186, 0, %v1441
      %1443 = vst [vmem:[#allocation2 + $0x1e0] sm:$0x1] %v1442
      %v1444 = vld [vmem:[#allocation2 + $0x228] sm:$0x1]
      %v1445 = vsel %vm1186, 0, %v1444
      %1446 = vst [vmem:[#allocation2 + $0x228] sm:$0x1] %v1445
      %1447 = vst [vmem:[#allocation2 + $0x38] sm:$0xff] %v1112
      %1448 = vst [vmem:[#allocation2 + $0x80] sm:$0xff] %v1113
      %1449 = vst [vmem:[#allocation2 + $0xc8] sm:$0xff] %v1113
      %1450 = vst [vmem:[#allocation2 + $0x110] sm:$0xff] %v1114
      %1451 = vst [vmem:[#allocation2 + $0x158] sm:$0xff] %v1114
      %1452 = vst [vmem:[#allocation2 + $0x1a0] sm:$0xff] %v1115
      %1453 = vst [vmem:[#allocation2 + $0x1e8] sm:$0xff] %v1115
      %1454 = vst [vmem:[#allocation2 + $0x230] sm:$0xff] %v1116
      %v1455 = vrot.slane %v1395, 1
      %v1456 = vor.u32 %v1392, %v1455
      %v1458 = vld [vmem:[#allocation2 + $0x40] sm:$0xff]
      %v1459 = vsel %vm1235, %v1222, %v1458
      %1460 = vst [vmem:[#allocation2 + $0x40] sm:$0xff] %v1459
      %v1461 = vld [vmem:[#allocation2 + $0x88] sm:$0xff]
      %v1462 = vsel %vm1235, %v1224, %v1461
      %1463 = vst [vmem:[#allocation2 + $0x88] sm:$0xff] %v1462
      %v1464 = vld [vmem:[#allocation2 + $0xd0] sm:$0xff]
      %v1465 = vsel %vm1235, %v1224, %v1464
      %1466 = vst [vmem:[#allocation2 + $0xd0] sm:$0xff] %v1465
      %v1467 = vld [vmem:[#allocation2 + $0x118] sm:$0xff]
      %v1468 = vsel %vm1235, %v1226, %v1467
      %1469 = vst [vmem:[#allocation2 + $0x118] sm:$0xff] %v1468
      %v1470 = vld [vmem:[#allocation2 + $0x160] sm:$0xff]
      %v1471 = vsel %vm1235, %v1226, %v1470
      %1472 = vst [vmem:[#allocation2 + $0x160] sm:$0xff] %v1471
      %v1473 = vld [vmem:[#allocation2 + $0x1a8] sm:$0xff]
      %v1474 = vsel %vm1235, %v1228, %v1473
      %1475 = vst [vmem:[#allocation2 + $0x1a8] sm:$0xff] %v1474
      %v1476 = vld [vmem:[#allocation2 + $0x1f0] sm:$0xff]
      %v1477 = vsel %vm1235, %v1228, %v1476
      %1478 = vst [vmem:[#allocation2 + $0x1f0] sm:$0xff] %v1477
      %v1479 = vld [vmem:[#allocation2 + $0x238] sm:$0xff]
      %v1480 = vsel %vm1235, %v1456, %v1479
      %1481 = vst [vmem:[#allocation2 + $0x238] sm:$0xff] %v1480
      %v1482 = vld [vmem:[#allocation2 + $0x40] sm:$0x80]
      %v1483 = vsel %vm1262, 0, %v1482
      %1484 = vst [vmem:[#allocation2 + $0x40] sm:$0x80] %v1483
      %v1485 = vld [vmem:[#allocation2 + $0x88] sm:$0x80]
      %v1486 = vsel %vm1262, 0, %v1485
      %1487 = vst [vmem:[#allocation2 + $0x88] sm:$0x80] %v1486
      %v1488 = vld [vmem:[#allocation2 + $0xd0] sm:$0x80]
      %v1489 = vsel %vm1262, 0, %v1488
      %1490 = vst [vmem:[#allocation2 + $0xd0] sm:$0x80] %v1489
      %v1491 = vld [vmem:[#allocation2 + $0x118] sm:$0x80]
      %v1492 = vsel %vm1262, 0, %v1491
      %1493 = vst [vmem:[#allocation2 + $0x118] sm:$0x80] %v1492
      %v1494 = vld [vmem:[#allocation2 + $0x160] sm:$0x80]
      %v1495 = vsel %vm1262, 0, %v1494
      %1496 = vst [vmem:[#allocation2 + $0x160] sm:$0x80] %v1495
      %v1497 = vld [vmem:[#allocation2 + $0x1a8] sm:$0x80]
      %v1498 = vsel %vm1262, 0, %v1497
      %1499 = vst [vmem:[#allocation2 + $0x1a8] sm:$0x80] %v1498
      %v1500 = vld [vmem:[#allocation2 + $0x1f0] sm:$0x80]
      %v1501 = vsel %vm1262, 0, %v1500
      %1502 = vst [vmem:[#allocation2 + $0x1f0] sm:$0x80] %v1501
      %v1503 = vld [vmem:[#allocation2 + $0x238] sm:$0x80]
      %v1504 = vsel %vm1262, 0, %v1503
      %1505 = vst [vmem:[#allocation2 + $0x238] sm:$0x80] %v1504
      %v1506 = vld [vmem:[#allocation2] sm:$0xff]
      %v1507 = vld [vmem:[#allocation2 + $0x8] sm:$0xff]
      %v1508 = vld [vmem:[#allocation2 + $0x10] sm:$0xff]
      %v1509 = vld [vmem:[#allocation2 + $0x18] sm:$0xff]
      %v1510 = vld [vmem:[#allocation2 + $0x20] sm:$0xff]
      %v1511 = vld [vmem:[#allocation2 + $0x28] sm:$0xff]
      %v1512 = vld [vmem:[#allocation2 + $0x30] sm:$0xff]
      %v1513 = vld [vmem:[#allocation2 + $0x38] sm:$0xff]
      %v1514 = vld [vmem:[#allocation2 + $0x40] sm:$0xff]
      %v1515 = vld [vmem:[#allocation2 + $0x48] sm:$0xff]
      %v1516 = vld [vmem:[#allocation2 + $0x50] sm:$0xff]
      %v1517 = vld [vmem:[#allocation2 + $0x58] sm:$0xff]
      %v1518 = vld [vmem:[#allocation2 + $0x60] sm:$0xff]
      %v1519 = vld [vmem:[#allocation2 + $0x68] sm:$0xff]
      %v1520 = vld [vmem:[#allocation2 + $0x70] sm:$0xff]
      %v1521 = vld [vmem:[#allocation2 + $0x78] sm:$0xff]
      %v1522 = vld [vmem:[#allocation2 + $0x80] sm:$0xff]
      %v1523 = vld [vmem:[#allocation2 + $0x88] sm:$0xff]
      %v1524 = vld [vmem:[#allocation2 + $0x90] sm:$0xff]
      %v1525 = vld [vmem:[#allocation2 + $0x98] sm:$0xff]
      %v1526 = vld [vmem:[#allocation2 + $0xa0] sm:$0xff]
      %v1527 = vld [vmem:[#allocation2 + $0xa8] sm:$0xff]
      %v1528 = vld [vmem:[#allocation2 + $0xb0] sm:$0xff]
      %v1529 = vld [vmem:[#allocation2 + $0xb8] sm:$0xff]
      %v1530 = vld [vmem:[#allocation2 + $0xc0] sm:$0xff]
      %v1531 = vld [vmem:[#allocation2 + $0xc8] sm:$0xff]
      %v1532 = vld [vmem:[#allocation2 + $0xd0] sm:$0xff]
      %v1533 = vld [vmem:[#allocation2 + $0xd8] sm:$0xff]
      %v1534 = vld [vmem:[#allocation2 + $0xe0] sm:$0xff]
      %v1535 = vld [vmem:[#allocation2 + $0xe8] sm:$0xff]
      %v1536 = vld [vmem:[#allocation2 + $0xf0] sm:$0xff]
      %v1537 = vld [vmem:[#allocation2 + $0xf8] sm:$0xff]
      %v1538 = vld [vmem:[#allocation2 + $0x100] sm:$0xff]
      %v1539 = vld [vmem:[#allocation2 + $0x108] sm:$0xff]
      %v1540 = vld [vmem:[#allocation2 + $0x110] sm:$0xff]
      %v1541 = vld [vmem:[#allocation2 + $0x118] sm:$0xff]
      %v1542 = vld [vmem:[#allocation2 + $0x120] sm:$0xff]
      %v1543 = vld [vmem:[#allocation2 + $0x128] sm:$0xff]
      %v1544 = vld [vmem:[#allocation2 + $0x130] sm:$0xff]
      %v1545 = vld [vmem:[#allocation2 + $0x138] sm:$0xff]
      %v1546 = vld [vmem:[#allocation2 + $0x140] sm:$0xff]
      %v1547 = vld [vmem:[#allocation2 + $0x148] sm:$0xff]
      %v1548 = vld [vmem:[#allocation2 + $0x150] sm:$0xff]
      %v1549 = vld [vmem:[#allocation2 + $0x158] sm:$0xff]
      %v1550 = vld [vmem:[#allocation2 + $0x160] sm:$0xff]
      %v1551 = vld [vmem:[#allocation2 + $0x168] sm:$0xff]
      %v1552 = vld [vmem:[#allocation2 + $0x170] sm:$0xff]
      %v1553 = vld [vmem:[#allocation2 + $0x178] sm:$0xff]
      %v1554 = vld [vmem:[#allocation2 + $0x180] sm:$0xff]
      %v1555 = vld [vmem:[#allocation2 + $0x188] sm:$0xff]
      %v1556 = vld [vmem:[#allocation2 + $0x190] sm:$0xff]
      %v1557 = vld [vmem:[#allocation2 + $0x198] sm:$0xff]
      %v1558 = vld [vmem:[#allocation2 + $0x1a0] sm:$0xff]
      %v1559 = vld [vmem:[#allocation2 + $0x1a8] sm:$0xff]
      %v1560 = vld [vmem:[#allocation2 + $0x1b0] sm:$0xff]
      %v1561 = vld [vmem:[#allocation2 + $0x1b8] sm:$0xff]
      %v1562 = vld [vmem:[#allocation2 + $0x1c0] sm:$0xff]
      %v1563 = vld [vmem:[#allocation2 + $0x1c8] sm:$0xff]
      %v1564 = vld [vmem:[#allocation2 + $0x1d0] sm:$0xff]
      %v1565 = vld [vmem:[#allocation2 + $0x1d8] sm:$0xff]
      %v1566 = vld [vmem:[#allocation2 + $0x1e0] sm:$0xff]
      %v1567 = vld [vmem:[#allocation2 + $0x1e8] sm:$0xff]
      %v1568 = vld [vmem:[#allocation2 + $0x1f0] sm:$0xff]
      %v1569 = vld [vmem:[#allocation2 + $0x1f8] sm:$0xff]
      %v1570 = vld [vmem:[#allocation2 + $0x200] sm:$0xff]
      %v1571 = vld [vmem:[#allocation2 + $0x208] sm:$0xff]
      %v1572 = vld [vmem:[#allocation2 + $0x210] sm:$0xff]
      %v1573 = vld [vmem:[#allocation2 + $0x218] sm:$0xff]
      %v1574 = vld [vmem:[#allocation2 + $0x220] sm:$0xff]
      %v1575 = vld [vmem:[#allocation2 + $0x228] sm:$0xff]
      %v1576 = vld [vmem:[#allocation2 + $0x230] sm:$0xff]
      %v1577 = vld [vmem:[#allocation2 + $0x238] sm:$0xff]
      %v1578 = vld [vmem:[%s3] sm:$0xf]
      %v1579 = vld [vmem:[%s3 + $0x4] sm:$0xf]
      %v1580 = vld [vmem:[%s3 + $0x8] sm:$0xf]
      %v1581 = vld [vmem:[%s3 + $0xc] sm:$0xf]
      %v1582 = vld [vmem:[%s3 + $0x10] sm:$0xf]
      %v1583 = vld [vmem:[%s3 + $0x14] sm:$0xf]
      %v1584 = vld [vmem:[%s3 + $0x18] sm:$0xf]
      %v1585 = vld [vmem:[%s3 + $0x1c] sm:$0xf]
      %v1586 = vld [vmem:[%s3 + $0x20] sm:$0xf]
      %v1587 = vld [vmem:[%s3 + $0x24] sm:$0xf]
      %v1588 = vld [vmem:[%s3 + $0x28] sm:$0xf]
      %v1589 = vld [vmem:[%s3 + $0x2c] sm:$0xf]
      %v1590 = vld [vmem:[%s3 + $0x30] sm:$0xf]
      %v1591 = vld [vmem:[%s3 + $0x34] sm:$0xf]
      %v1592 = vld [vmem:[%s3 + $0x38] sm:$0xf]
      %v1593 = vld [vmem:[%s3 + $0x3c] sm:$0xf]
      %v1594 = vld [vmem:[%s3 + $0x40] sm:$0xf]
      %v1595 = vld [vmem:[%s3 + $0x44] sm:$0xf]
      %v1596 = vld [vmem:[%s3 + $0x48] sm:$0xf]
      %v1597 = vld [vmem:[%s3 + $0x4c] sm:$0xf]
      %v1598 = vld [vmem:[%s3 + $0x50] sm:$0xf]
      %v1599 = vld [vmem:[%s3 + $0x54] sm:$0xf]
      %v1600 = vld [vmem:[%s3 + $0x58] sm:$0xf]
      %v1601 = vld [vmem:[%s3 + $0x5c] sm:$0xf]
      %v1602 = vld [vmem:[%s3 + $0x60] sm:$0xf]
      %v1603 = vld [vmem:[%s3 + $0x64] sm:$0xf]
      %v1604 = vld [vmem:[%s3 + $0x68] sm:$0xf]
      %v1605 = vld [vmem:[%s3 + $0x6c] sm:$0xf]
      %v1606 = vld [vmem:[%s3 + $0x70] sm:$0xf]
      %v1607 = vld [vmem:[%s3 + $0x74] sm:$0xf]
      %v1608 = vld [vmem:[%s3 + $0x78] sm:$0xf]
      %v1609 = vld [vmem:[%s3 + $0x7c] sm:$0xf]
      %v1610 = vld [vmem:[%s3 + $0x80] sm:$0xf]
      %v1611 = vld [vmem:[%s3 + $0x84] sm:$0xf]
      %v1612 = vld [vmem:[%s3 + $0x88] sm:$0xf]
      %v1613 = vld [vmem:[%s3 + $0x8c] sm:$0xf]
      %v1614 = vld [vmem:[%s3 + $0x90] sm:$0xf]
      %v1615 = vld [vmem:[%s3 + $0x94] sm:$0xf]
      %v1616 = vld [vmem:[%s3 + $0x98] sm:$0xf]
      %v1617 = vld [vmem:[%s3 + $0x9c] sm:$0xf]
      %v1618 = vld [vmem:[%s3 + $0xa0] sm:$0xf]
      %v1619 = vld [vmem:[%s3 + $0xa4] sm:$0xf]
      %v1620 = vld [vmem:[%s3 + $0xa8] sm:$0xf]
      %v1621 = vld [vmem:[%s3 + $0xac] sm:$0xf]
      %v1622 = vld [vmem:[%s3 + $0xb0] sm:$0xf]
      %v1623 = vld [vmem:[%s3 + $0xb4] sm:$0xf]
      %v1624 = vld [vmem:[%s3 + $0xb8] sm:$0xf]
      %v1625 = vld [vmem:[%s3 + $0xbc] sm:$0xf]
      %v1626 = vld [vmem:[%s3 + $0xc0] sm:$0xf]
      %v1627 = vld [vmem:[%s3 + $0xc4] sm:$0xf]
      %v1628 = vld [vmem:[%s3 + $0xc8] sm:$0xf]
      %v1629 = vld [vmem:[%s3 + $0xcc] sm:$0xf]
      %v1630 = vld [vmem:[%s3 + $0xd0] sm:$0xf]
      %v1631 = vld [vmem:[%s3 + $0xd4] sm:$0xf]
      %v1632 = vld [vmem:[%s3 + $0xd8] sm:$0xf]
      %v1633 = vld [vmem:[%s3 + $0xdc] sm:$0xf]
      %v1634 = vld [vmem:[%s3 + $0xe0] sm:$0xf]
      %v1635 = vld [vmem:[%s3 + $0xe4] sm:$0xf]
      %v1636 = vld [vmem:[%s3 + $0xe8] sm:$0xf]
      %v1637 = vld [vmem:[%s3 + $0xec] sm:$0xf]
      %v1638 = vld [vmem:[%s3 + $0xf0] sm:$0xf]
      %v1639 = vld [vmem:[%s3 + $0xf4] sm:$0xf]
      %v1640 = vld [vmem:[%s3 + $0xf8] sm:$0xf]
      %v1641 = vld [vmem:[%s3 + $0xfc] sm:$0xf]
      %v1642 = vld [vmem:[%s3 + $0x100] sm:$0xf]
      %v1643 = vld [vmem:[%s3 + $0x104] sm:$0xf]
      %v1644 = vld [vmem:[%s3 + $0x108] sm:$0xf]
      %v1645 = vld [vmem:[%s3 + $0x10c] sm:$0xf]
      %v1646 = vld [vmem:[%s3 + $0x110] sm:$0xf]
      %v1647 = vld [vmem:[%s3 + $0x114] sm:$0xf]
      %v1648 = vld [vmem:[%s3 + $0x118] sm:$0xf]
      %v1649 = vld [vmem:[%s3 + $0x11c] sm:$0xf]
      %v1650 = vld [vmem:[%s3 + $0x120] sm:$0xf]
      %v1651 = vld [vmem:[%s3 + $0x124] sm:$0xf]
      %v1652 = vld [vmem:[%s3 + $0x128] sm:$0xf]
      %v1653 = vld [vmem:[%s3 + $0x12c] sm:$0xf]
      %v1654 = vld [vmem:[%s3 + $0x130] sm:$0xf]
      %v1655 = vld [vmem:[%s3 + $0x134] sm:$0xf]
      %v1656 = vld [vmem:[%s3 + $0x138] sm:$0xf]
      %v1657 = vld [vmem:[%s3 + $0x13c] sm:$0xf]
      %v1658 = vld [vmem:[%s3 + $0x140] sm:$0xf]
      %v1659 = vld [vmem:[%s3 + $0x144] sm:$0xf]
      %v1660 = vld [vmem:[%s3 + $0x148] sm:$0xf]
      %v1661 = vld [vmem:[%s3 + $0x14c] sm:$0xf]
      %v1662 = vld [vmem:[%s3 + $0x150] sm:$0xf]
      %v1663 = vld [vmem:[%s3 + $0x154] sm:$0xf]
      %v1664 = vld [vmem:[%s3 + $0x158] sm:$0xf]
      %v1665 = vld [vmem:[%s3 + $0x15c] sm:$0xf]
      %v1666 = vld [vmem:[%s3 + $0x160] sm:$0xf]
      %v1667 = vld [vmem:[%s3 + $0x164] sm:$0xf]
      %v1668 = vld [vmem:[%s3 + $0x168] sm:$0xf]
      %v1669 = vld [vmem:[%s3 + $0x16c] sm:$0xf]
      %v1670 = vld [vmem:[%s3 + $0x170] sm:$0xf]
      %v1671 = vld [vmem:[%s3 + $0x174] sm:$0xf]
      %v1672 = vld [vmem:[%s3 + $0x178] sm:$0xf]
      %v1673 = vld [vmem:[%s3 + $0x17c] sm:$0xf]
      %v1674 = vld [vmem:[%s3 + $0x180] sm:$0xf]
      %v1675 = vld [vmem:[%s3 + $0x184] sm:$0xf]
      %v1676 = vld [vmem:[%s3 + $0x188] sm:$0xf]
      %v1677 = vld [vmem:[%s3 + $0x18c] sm:$0xf]
      %v1678 = vld [vmem:[%s3 + $0x190] sm:$0xf]
      %v1679 = vld [vmem:[%s3 + $0x194] sm:$0xf]
      %v1680 = vld [vmem:[%s3 + $0x198] sm:$0xf]
      %v1681 = vld [vmem:[%s3 + $0x19c] sm:$0xf]
      %v1682 = vld [vmem:[%s3 + $0x1a0] sm:$0xf]
      %v1683 = vld [vmem:[%s3 + $0x1a4] sm:$0xf]
      %v1684 = vld [vmem:[%s3 + $0x1a8] sm:$0xf]
      %v1685 = vld [vmem:[%s3 + $0x1ac] sm:$0xf]
      %v1686 = vld [vmem:[%s3 + $0x1b0] sm:$0xf]
      %v1687 = vld [vmem:[%s3 + $0x1b4] sm:$0xf]
      %v1688 = vld [vmem:[%s3 + $0x1b8] sm:$0xf]
      %v1689 = vld [vmem:[%s3 + $0x1bc] sm:$0xf]
      %v1690 = vld [vmem:[%s3 + $0x1c0] sm:$0xf]
      %v1691 = vld [vmem:[%s3 + $0x1c4] sm:$0xf]
      %v1692 = vld [vmem:[%s3 + $0x1c8] sm:$0xf]
      %v1693 = vld [vmem:[%s3 + $0x1cc] sm:$0xf]
      %v1694 = vld [vmem:[%s3 + $0x1d0] sm:$0xf]
      %v1695 = vld [vmem:[%s3 + $0x1d4] sm:$0xf]
      %v1696 = vld [vmem:[%s3 + $0x1d8] sm:$0xf]
      %v1697 = vld [vmem:[%s3 + $0x1dc] sm:$0xf]
      %v1698 = vld [vmem:[%s3 + $0x1e0] sm:$0xf]
      %v1699 = vld [vmem:[%s3 + $0x1e4] sm:$0xf]
      %v1700 = vld [vmem:[%s3 + $0x1e8] sm:$0xf]
      %v1701 = vld [vmem:[%s3 + $0x1ec] sm:$0xf]
      %v1702 = vld [vmem:[%s3 + $0x1f0] sm:$0xf]
      %v1703 = vld [vmem:[%s3 + $0x1f4] sm:$0xf]
      %v1704 = vld [vmem:[%s3 + $0x1f8] sm:$0xf]
      %v1705 = vld [vmem:[%s3 + $0x1fc] sm:$0xf]
      %v1706 = vld [vmem:[%s3 + $0x200] sm:$0xf]
      %v1707 = vld [vmem:[%s3 + $0x204] sm:$0xf]
      %v1708 = vld [vmem:[%s3 + $0x208] sm:$0xf]
      %v1709 = vld [vmem:[%s3 + $0x20c] sm:$0xf]
      %v1710 = vld [vmem:[%s3 + $0x210] sm:$0xf]
      %v1711 = vld [vmem:[%s3 + $0x214] sm:$0xf]
      %v1712 = vld [vmem:[%s3 + $0x218] sm:$0xf]
      %v1713 = vld [vmem:[%s3 + $0x21c] sm:$0xf]
      %v1714 = vld [vmem:[%s3 + $0x220] sm:$0xf]
      %v1715 = vld [vmem:[%s3 + $0x224] sm:$0xf]
      %v1716 = vld [vmem:[%s3 + $0x228] sm:$0xf]
      %v1717 = vld [vmem:[%s3 + $0x22c] sm:$0xf]
      %v1718 = vld [vmem:[%s3 + $0x230] sm:$0xf]
      %v1719 = vld [vmem:[%s3 + $0x234] sm:$0xf]
      %v1720 = vld [vmem:[%s3 + $0x238] sm:$0xf]
      %v1721 = vld [vmem:[%s3 + $0x23c] sm:$0xf]
      %v1722 = vld [vmem:[%s4] sm:$0x1]
      %v1724 = vlaneseq
      %v1725 = vshrl.u32 %v1724, 7
      %v1726 = vsub.s32 0, %v1725
      %v1727 = vrot.slane %v1722, %v1726
      %v1873 = vunpack.c.l.b16 %v1578
      %v1874 = vunpack.c.l.b16 %v1579
      %v1875 = vunpack.c.l.b16 %v1580
      %v1876 = vunpack.c.l.b16 %v1581
      %v1877 = vunpack.c.l.b16 %v1582
      %v1878 = vunpack.c.l.b16 %v1583
      %v1879 = vunpack.c.l.b16 %v1584
      %v1880 = vunpack.c.l.b16 %v1585
      %v1881 = vunpack.c.l.b16 %v1586
      %v1882 = vunpack.c.l.b16 %v1587
      %v1883 = vunpack.c.l.b16 %v1588
      %v1884 = vunpack.c.l.b16 %v1589
      %v1885 = vunpack.c.l.b16 %v1590
      %v1886 = vunpack.c.l.b16 %v1591
      %v1887 = vunpack.c.l.b16 %v1592
      %v1888 = vunpack.c.l.b16 %v1593
      %v1889 = vunpack.c.l.b16 %v1594
      %v1890 = vunpack.c.l.b16 %v1595
      %v1891 = vunpack.c.l.b16 %v1596
      %v1892 = vunpack.c.l.b16 %v1597
      %v1893 = vunpack.c.l.b16 %v1598
      %v1894 = vunpack.c.l.b16 %v1599
      %v1895 = vunpack.c.l.b16 %v1600
      %v1896 = vunpack.c.l.b16 %v1601
      %v1897 = vunpack.c.l.b16 %v1602
      %v1898 = vunpack.c.l.b16 %v1603
      %v1899 = vunpack.c.l.b16 %v1604
      %v1900 = vunpack.c.l.b16 %v1605
      %v1901 = vunpack.c.l.b16 %v1606
      %v1902 = vunpack.c.l.b16 %v1607
      %v1903 = vunpack.c.l.b16 %v1608
      %v1904 = vunpack.c.l.b16 %v1609
      %v1905 = vunpack.c.l.b16 %v1610
      %v1906 = vunpack.c.l.b16 %v1611
      %v1907 = vunpack.c.l.b16 %v1612
      %v1908 = vunpack.c.l.b16 %v1613
      %v1909 = vunpack.c.l.b16 %v1614
      %v1910 = vunpack.c.l.b16 %v1615
      %v1911 = vunpack.c.l.b16 %v1616
      %v1912 = vunpack.c.l.b16 %v1617
      %v1913 = vunpack.c.l.b16 %v1618
      %v1914 = vunpack.c.l.b16 %v1619
      %v1915 = vunpack.c.l.b16 %v1620
      %v1916 = vunpack.c.l.b16 %v1621
      %v1917 = vunpack.c.l.b16 %v1622
      %v1918 = vunpack.c.l.b16 %v1623
      %v1919 = vunpack.c.l.b16 %v1624
      %v1920 = vunpack.c.l.b16 %v1625
      %v1921 = vunpack.c.l.b16 %v1626
      %v1922 = vunpack.c.l.b16 %v1627
      %v1923 = vunpack.c.l.b16 %v1628
      %v1924 = vunpack.c.l.b16 %v1629
      %v1925 = vunpack.c.l.b16 %v1630
      %v1926 = vunpack.c.l.b16 %v1631
      %v1927 = vunpack.c.l.b16 %v1632
      %v1928 = vunpack.c.l.b16 %v1633
      %v1929 = vunpack.c.l.b16 %v1634
      %v1930 = vunpack.c.l.b16 %v1635
      %v1931 = vunpack.c.l.b16 %v1636
      %v1932 = vunpack.c.l.b16 %v1637
      %v1933 = vunpack.c.l.b16 %v1638
      %v1934 = vunpack.c.l.b16 %v1639
      %v1935 = vunpack.c.l.b16 %v1640
      %v1936 = vunpack.c.l.b16 %v1641
      %v1937 = vunpack.c.l.b16 %v1642
      %v1938 = vunpack.c.l.b16 %v1643
      %v1939 = vunpack.c.l.b16 %v1644
      %v1940 = vunpack.c.l.b16 %v1645
      %v1941 = vunpack.c.l.b16 %v1646
      %v1942 = vunpack.c.l.b16 %v1647
      %v1943 = vunpack.c.l.b16 %v1648
      %v1944 = vunpack.c.l.b16 %v1649
      %v1945 = vunpack.c.l.b16 %v1650
      %v1946 = vunpack.c.l.b16 %v1651
      %v1947 = vunpack.c.l.b16 %v1652
      %v1948 = vunpack.c.l.b16 %v1653
      %v1949 = vunpack.c.l.b16 %v1654
      %v1950 = vunpack.c.l.b16 %v1655
      %v1951 = vunpack.c.l.b16 %v1656
      %v1952 = vunpack.c.l.b16 %v1657
      %v1953 = vunpack.c.l.b16 %v1658
      %v1954 = vunpack.c.l.b16 %v1659
      %v1955 = vunpack.c.l.b16 %v1660
      %v1956 = vunpack.c.l.b16 %v1661
      %v1957 = vunpack.c.l.b16 %v1662
      %v1958 = vunpack.c.l.b16 %v1663
      %v1959 = vunpack.c.l.b16 %v1664
      %v1960 = vunpack.c.l.b16 %v1665
      %v1961 = vunpack.c.l.b16 %v1666
      %v1962 = vunpack.c.l.b16 %v1667
      %v1963 = vunpack.c.l.b16 %v1668
      %v1964 = vunpack.c.l.b16 %v1669
      %v1965 = vunpack.c.l.b16 %v1670
      %v1966 = vunpack.c.l.b16 %v1671
      %v1967 = vunpack.c.l.b16 %v1672
      %v1968 = vunpack.c.l.b16 %v1673
      %v1969 = vunpack.c.l.b16 %v1674
      %v1970 = vunpack.c.l.b16 %v1675
      %v1971 = vunpack.c.l.b16 %v1676
      %v1972 = vunpack.c.l.b16 %v1677
      %v1973 = vunpack.c.l.b16 %v1678
      %v1974 = vunpack.c.l.b16 %v1679
      %v1975 = vunpack.c.l.b16 %v1680
      %v1976 = vunpack.c.l.b16 %v1681
      %v1977 = vunpack.c.l.b16 %v1682
      %v1978 = vunpack.c.l.b16 %v1683
      %v1979 = vunpack.c.l.b16 %v1684
      %v1980 = vunpack.c.l.b16 %v1685
      %v1981 = vunpack.c.l.b16 %v1686
      %v1982 = vunpack.c.l.b16 %v1687
      %v1983 = vunpack.c.l.b16 %v1688
      %v1984 = vunpack.c.l.b16 %v1689
      %v1985 = vunpack.c.l.b16 %v1690
      %v1986 = vunpack.c.l.b16 %v1691
      %v1987 = vunpack.c.l.b16 %v1692
      %v1988 = vunpack.c.l.b16 %v1693
      %v1989 = vunpack.c.l.b16 %v1694
      %v1990 = vunpack.c.l.b16 %v1695
      %v1991 = vunpack.c.l.b16 %v1696
      %v1992 = vunpack.c.l.b16 %v1697
      %v1993 = vunpack.c.l.b16 %v1698
      %v1994 = vunpack.c.l.b16 %v1699
      %v1995 = vunpack.c.l.b16 %v1700
      %v1996 = vunpack.c.l.b16 %v1701
      %v1997 = vunpack.c.l.b16 %v1702
      %v1998 = vunpack.c.l.b16 %v1703
      %v1999 = vunpack.c.l.b16 %v1704
      %v2000 = vunpack.c.l.b16 %v1705
      %v2001 = vunpack.c.l.b16 %v1706
      %v2002 = vunpack.c.l.b16 %v1707
      %v2003 = vunpack.c.l.b16 %v1708
      %v2004 = vunpack.c.l.b16 %v1709
      %v2005 = vunpack.c.l.b16 %v1710
      %v2006 = vunpack.c.l.b16 %v1711
      %v2007 = vunpack.c.l.b16 %v1712
      %v2008 = vunpack.c.l.b16 %v1713
      %v2009 = vunpack.c.l.b16 %v1714
      %v2010 = vunpack.c.l.b16 %v1715
      %v2011 = vunpack.c.l.b16 %v1716
      %v2012 = vunpack.c.l.b16 %v1717
      %v2013 = vunpack.c.l.b16 %v1718
      %v2014 = vunpack.c.l.b16 %v1719
      %v2015 = vunpack.c.l.b16 %v1720
      %v2016 = vunpack.c.l.b16 %v1721
      %v2017 = vpack.c.b16 %v1874, %v1873
      %v2018 = vpack.c.b16 %v1876, %v1875
      %v2019 = vpack.c.b16 %v1878, %v1877
      %v2020 = vpack.c.b16 %v1880, %v1879
      %v2021 = vpack.c.b16 %v1882, %v1881
      %v2022 = vpack.c.b16 %v1884, %v1883
      %v2023 = vpack.c.b16 %v1886, %v1885
      %v2024 = vpack.c.b16 %v1888, %v1887
      %v2025 = vpack.c.b16 %v1890, %v1889
      %v2026 = vpack.c.b16 %v1892, %v1891
      %v2027 = vpack.c.b16 %v1894, %v1893
      %v2028 = vpack.c.b16 %v1896, %v1895
      %v2029 = vpack.c.b16 %v1898, %v1897
      %v2030 = vpack.c.b16 %v1900, %v1899
      %v2031 = vpack.c.b16 %v1902, %v1901
      %v2032 = vpack.c.b16 %v1904, %v1903
      %v2033 = vpack.c.b16 %v1906, %v1905
      %v2034 = vpack.c.b16 %v1908, %v1907
      %v2035 = vpack.c.b16 %v1910, %v1909
      %v2036 = vpack.c.b16 %v1912, %v1911
      %v2037 = vpack.c.b16 %v1914, %v1913
      %v2038 = vpack.c.b16 %v1916, %v1915
      %v2039 = vpack.c.b16 %v1918, %v1917
      %v2040 = vpack.c.b16 %v1920, %v1919
      %v2041 = vpack.c.b16 %v1922, %v1921
      %v2042 = vpack.c.b16 %v1924, %v1923
      %v2043 = vpack.c.b16 %v1926, %v1925
      %v2044 = vpack.c.b16 %v1928, %v1927
      %v2045 = vpack.c.b16 %v1930, %v1929
      %v2046 = vpack.c.b16 %v1932, %v1931
      %v2047 = vpack.c.b16 %v1934, %v1933
      %v2048 = vpack.c.b16 %v1936, %v1935
      %v2049 = vpack.c.b16 %v1938, %v1937
      %v2050 = vpack.c.b16 %v1940, %v1939
      %v2051 = vpack.c.b16 %v1942, %v1941
      %v2052 = vpack.c.b16 %v1944, %v1943
      %v2053 = vpack.c.b16 %v1946, %v1945
      %v2054 = vpack.c.b16 %v1948, %v1947
      %v2055 = vpack.c.b16 %v1950, %v1949
      %v2056 = vpack.c.b16 %v1952, %v1951
      %v2057 = vpack.c.b16 %v1954, %v1953
      %v2058 = vpack.c.b16 %v1956, %v1955
      %v2059 = vpack.c.b16 %v1958, %v1957
      %v2060 = vpack.c.b16 %v1960, %v1959
      %v2061 = vpack.c.b16 %v1962, %v1961
      %v2062 = vpack.c.b16 %v1964, %v1963
      %v2063 = vpack.c.b16 %v1966, %v1965
      %v2064 = vpack.c.b16 %v1968, %v1967
      %v2065 = vpack.c.b16 %v1970, %v1969
      %v2066 = vpack.c.b16 %v1972, %v1971
      %v2067 = vpack.c.b16 %v1974, %v1973
      %v2068 = vpack.c.b16 %v1976, %v1975
      %v2069 = vpack.c.b16 %v1978, %v1977
      %v2070 = vpack.c.b16 %v1980, %v1979
      %v2071 = vpack.c.b16 %v1982, %v1981
      %v2072 = vpack.c.b16 %v1984, %v1983
      %v2073 = vpack.c.b16 %v1986, %v1985
      %v2074 = vpack.c.b16 %v1988, %v1987
      %v2075 = vpack.c.b16 %v1990, %v1989
      %v2076 = vpack.c.b16 %v1992, %v1991
      %v2077 = vpack.c.b16 %v1994, %v1993
      %v2078 = vpack.c.b16 %v1996, %v1995
      %v2079 = vpack.c.b16 %v1998, %v1997
      %v2080 = vpack.c.b16 %v2000, %v1999
      %v2081 = vpack.c.b16 %v2002, %v2001
      %v2082 = vpack.c.b16 %v2004, %v2003
      %v2083 = vpack.c.b16 %v2006, %v2005
      %v2084 = vpack.c.b16 %v2008, %v2007
      %v2085 = vpack.c.b16 %v2010, %v2009
      %v2086 = vpack.c.b16 %v2012, %v2011
      %v2087 = vpack.c.b16 %v2014, %v2013
      %v2088 = vpack.c.b16 %v2016, %v2015
      %2161 = vmatprep.subr.bf16.mxu0 0
      %2162 = vmatpush1.bf16.msra.mxu0 %v2017
      %2163 = vmatprep.subr.bf16.mxu0 0
      %2164 = vmatpush1.bf16.msra.mxu0 %v2018
      %2165 = vmatprep.subr.bf16.mxu0 0
      %2166 = vmatpush1.bf16.msra.mxu0 %v2019
      %2167 = vmatprep.subr.bf16.mxu0 0
      %2168 = vmatpush1.bf16.msra.mxu0 %v2020
      %2169 = vmatprep.subr.bf16.mxu0 0
      %2170 = vmatpush1.bf16.msra.mxu0 %v2021
      %2171 = vmatprep.subr.bf16.mxu0 0
      %2172 = vmatpush1.bf16.msra.mxu0 %v2022
      %2173 = vmatprep.subr.bf16.mxu0 0
      %2174 = vmatpush1.bf16.msra.mxu0 %v2023
      %2175 = vmatprep.subr.bf16.mxu0 0
      %2176 = vmatpush1.bf16.msra.mxu0 %v2024
      %2177 = vmatprep.subr.bf16.mxu0 0
      %2178 = vmatpush1.bf16.msra.mxu0 %v2025
      %2179 = vmatprep.subr.bf16.mxu0 0
      %2180 = vmatpush1.bf16.msra.mxu0 %v2026
      %2181 = vmatprep.subr.bf16.mxu0 0
      %2182 = vmatpush1.bf16.msra.mxu0 %v2027
      %2183 = vmatprep.subr.bf16.mxu0 0
      %2184 = vmatpush1.bf16.msra.mxu0 %v2028
      %2185 = vmatprep.subr.bf16.mxu0 0
      %2186 = vmatpush1.bf16.msra.mxu0 %v2029
      %2187 = vmatprep.subr.bf16.mxu0 0
      %2188 = vmatpush1.bf16.msra.mxu0 %v2030
      %2189 = vmatprep.subr.bf16.mxu0 0
      %2190 = vmatpush1.bf16.msra.mxu0 %v2031
      %2191 = vmatprep.subr.bf16.mxu0 0
      %2192 = vmatpush1.bf16.msra.mxu0 %v2032
      %2193 = vmatprep.mubr.bf16.mxu0 %v1507
      %2194 = vmatmul.mubr.bf16.gmra.mrb[0].mxu0 %v1506
      %v2195 = vpop.f32.mrb[0].mxu0
      %v2196 = vadd.f32 %v1727, %v2195
      %v2197 = vpop.f32.mrb[0].mxu0
      %v2198 = vpop.f32.mrb[0].mxu0
      %v2199 = vadd.f32 %v1727, %v2198
      %v2200 = vpop.f32.mrb[0].mxu0
      %2201 = vmatprep.mubr.bf16.mxu0 %v1516
      %2202 = vmatmul.mubr.bf16.gmra.mrb[0].mxu0 %v1515
      %v2203 = vpop.f32.mrb[0].mxu0
      %v2204 = vadd.f32 %v1727, %v2203
      %v2205 = vpop.f32.mrb[0].mxu0
      %v2206 = vpop.f32.mrb[0].mxu0
      %v2207 = vadd.f32 %v1727, %v2206
      %v2208 = vpop.f32.mrb[0].mxu0
      %2209 = vmatprep.mubr.bf16.mxu0 %v1525
      %2210 = vmatmul.mubr.bf16.gmra.mrb[0].mxu0 %v1524
      %v2211 = vpop.f32.mrb[0].mxu0
      %v2212 = vadd.f32 %v1727, %v2211
      %v2213 = vpop.f32.mrb[0].mxu0
      %v2214 = vpop.f32.mrb[0].mxu0
      %v2215 = vadd.f32 %v1727, %v2214
      %v2216 = vpop.f32.mrb[0].mxu0
      %2217 = vmatprep.mubr.bf16.mxu0 %v1534
      %2218 = vmatmul.mubr.bf16.gmra.mrb[0].mxu0 %v1533
      %v2219 = vpop.f32.mrb[0].mxu0
      %v2220 = vadd.f32 %v1727, %v2219
      %v2221 = vpop.f32.mrb[0].mxu0
      %v2222 = vpop.f32.mrb[0].mxu0
      %v2223 = vadd.f32 %v1727, %v2222
      %v2224 = vpop.f32.mrb[0].mxu0
      %2225 = vmatprep.mubr.bf16.mxu0 %v1543
      %2226 = vmatmul.mubr.bf16.gmra.mrb[0].mxu0 %v1542
      %v2227 = vpop.f32.mrb[0].mxu0
      %v2228 = vadd.f32 %v1727, %v2227
      %v2229 = vpop.f32.mrb[0].mxu0
      %v2230 = vpop.f32.mrb[0].mxu0
      %v2231 = vadd.f32 %v1727, %v2230
      %v2232 = vpop.f32.mrb[0].mxu0
      %2233 = vmatprep.mubr.bf16.mxu0 %v1552
      %2234 = vmatmul.mubr.bf16.gmra.mrb[0].mxu0 %v1551
      %v2235 = vpop.f32.mrb[0].mxu0
      %v2236 = vadd.f32 %v1727, %v2235
      %v2237 = vpop.f32.mrb[0].mxu0
      %v2238 = vpop.f32.mrb[0].mxu0
      %v2239 = vadd.f32 %v1727, %v2238
      %v2240 = vpop.f32.mrb[0].mxu0
      %2241 = vmatprep.mubr.bf16.mxu0 %v1561
      %2242 = vmatmul.mubr.bf16.gmra.mrb[0].mxu0 %v1560
      %v2243 = vpop.f32.mrb[0].mxu0
      %v2244 = vadd.f32 %v1727, %v2243
      %v2245 = vpop.f32.mrb[0].mxu0
      %v2246 = vpop.f32.mrb[0].mxu0
      %v2247 = vadd.f32 %v1727, %v2246
      %v2248 = vpop.f32.mrb[0].mxu0
      %2249 = vmatprep.mubr.bf16.mxu0 %v1570
      %2250 = vmatmul.mubr.bf16.gmra.mrb[0].mxu0 %v1569
      %v2251 = vpop.f32.mrb[0].mxu0
      %v2252 = vadd.f32 %v1727, %v2251
      %v2253 = vpop.f32.mrb[0].mxu0
      %v2254 = vpop.f32.mrb[0].mxu0
      %v2255 = vadd.f32 %v1727, %v2254
      %v2256 = vpop.f32.mrb[0].mxu0
      %2257 = vdwg.mxu0
      %2258 = vmatprep.subr.bf16.mxu0 0
      %2259 = vmatpush1.bf16.msra.mxu0 %v2033
      %2260 = vmatprep.subr.bf16.mxu0 0
      %2261 = vmatpush1.bf16.msra.mxu0 %v2034
      %2262 = vmatprep.subr.bf16.mxu0 0
      %2263 = vmatpush1.bf16.msra.mxu0 %v2035
      %2264 = vmatprep.subr.bf16.mxu0 0
      %2265 = vmatpush1.bf16.msra.mxu0 %v2036
      %2266 = vmatprep.subr.bf16.mxu0 0
      %2267 = vmatpush1.bf16.msra.mxu0 %v2037
      %2268 = vmatprep.subr.bf16.mxu0 0
      %2269 = vmatpush1.bf16.msra.mxu0 %v2038
      %2270 = vmatprep.subr.bf16.mxu0 0
      %2271 = vmatpush1.bf16.msra.mxu0 %v2039
      %2272 = vmatprep.subr.bf16.mxu0 0
      %2273 = vmatpush1.bf16.msra.mxu0 %v2040
      %2274 = vmatprep.subr.bf16.mxu0 0
      %2275 = vmatpush1.bf16.msra.mxu0 %v2041
      %2276 = vmatprep.subr.bf16.mxu0 0
      %2277 = vmatpush1.bf16.msra.mxu0 %v2042
      %2278 = vmatprep.subr.bf16.mxu0 0
      %2279 = vmatpush1.bf16.msra.mxu0 %v2043
      %2280 = vmatprep.subr.bf16.mxu0 0
      %2281 = vmatpush1.bf16.msra.mxu0 %v2044
      %2282 = vmatprep.subr.bf16.mxu0 0
      %2283 = vmatpush1.bf16.msra.mxu0 %v2045
      %2284 = vmatprep.subr.bf16.mxu0 0
      %2285 = vmatpush1.bf16.msra.mxu0 %v2046
      %2286 = vmatprep.subr.bf16.mxu0 0
      %2287 = vmatpush1.bf16.msra.mxu0 %v2047
      %2288 = vmatprep.subr.bf16.mxu0 0
      %2289 = vmatpush1.bf16.msra.mxu0 %v2048
      %2290 = vmatprep.mubr.bf16.mxu0 %v1509
      %2291 = vmatmul.mubr.bf16.gmra.mrb[0].mxu0 %v1508
      %v2292 = vpop.f32.mrb[0].mxu0
      %v2293 = vadd.f32 %v2196, %v2292
      %v2294 = vpop.f32.mrb[0].mxu0
      %v2295 = vpop.f32.mrb[0].mxu0
      %v2296 = vadd.f32 %v2199, %v2295
      %v2297 = vpop.f32.mrb[0].mxu0
      %2298 = vmatprep.mubr.bf16.mxu0 %v1518
      %2299 = vmatmul.mubr.bf16.gmra.mrb[0].mxu0 %v1517
      %v2300 = vpop.f32.mrb[0].mxu0
      %v2301 = vadd.f32 %v2204, %v2300
      %v2302 = vpop.f32.mrb[0].mxu0
      %v2303 = vpop.f32.mrb[0].mxu0
      %v2304 = vadd.f32 %v2207, %v2303
      %v2305 = vpop.f32.mrb[0].mxu0
      %2306 = vmatprep.mubr.bf16.mxu0 %v1527
      %2307 = vmatmul.mubr.bf16.gmra.mrb[0].mxu0 %v1526
      %v2308 = vpop.f32.mrb[0].mxu0
      %v2309 = vadd.f32 %v2212, %v2308
      %v2310 = vpop.f32.mrb[0].mxu0
      %v2311 = vpop.f32.mrb[0].mxu0
      %v2312 = vadd.f32 %v2215, %v2311
      %v2313 = vpop.f32.mrb[0].mxu0
      %2314 = vmatprep.mubr.bf16.mxu0 %v1536
      %2315 = vmatmul.mubr.bf16.gmra.mrb[0].mxu0 %v1535
      %v2316 = vpop.f32.mrb[0].mxu0
      %v2317 = vadd.f32 %v2220, %v2316
      %v2318 = vpop.f32.mrb[0].mxu0
      %v2319 = vpop.f32.mrb[0].mxu0
      %v2320 = vadd.f32 %v2223, %v2319
      %v2321 = vpop.f32.mrb[0].mxu0
      %2322 = vmatprep.mubr.bf16.mxu0 %v1545
      %2323 = vmatmul.mubr.bf16.gmra.mrb[0].mxu0 %v1544
      %v2324 = vpop.f32.mrb[0].mxu0
      %v2325 = vadd.f32 %v2228, %v2324
      %v2326 = vpop.f32.mrb[0].mxu0
      %v2327 = vpop.f32.mrb[0].mxu0
      %v2328 = vadd.f32 %v2231, %v2327
      %v2329 = vpop.f32.mrb[0].mxu0
      %2330 = vmatprep.mubr.bf16.mxu0 %v1554
      %2331 = vmatmul.mubr.bf16.gmra.mrb[0].mxu0 %v1553
      %v2332 = vpop.f32.mrb[0].mxu0
      %v2333 = vadd.f32 %v2236, %v2332
      %v2334 = vpop.f32.mrb[0].mxu0
      %v2335 = vpop.f32.mrb[0].mxu0
      %v2336 = vadd.f32 %v2239, %v2335
      %v2337 = vpop.f32.mrb[0].mxu0
      %2338 = vmatprep.mubr.bf16.mxu0 %v1563
      %2339 = vmatmul.mubr.bf16.gmra.mrb[0].mxu0 %v1562
      %v2340 = vpop.f32.mrb[0].mxu0
      %v2341 = vadd.f32 %v2244, %v2340
      %v2342 = vpop.f32.mrb[0].mxu0
      %v2343 = vpop.f32.mrb[0].mxu0
      %v2344 = vadd.f32 %v2247, %v2343
      %v2345 = vpop.f32.mrb[0].mxu0
      %2346 = vmatprep.mubr.bf16.mxu0 %v1572
      %2347 = vmatmul.mubr.bf16.gmra.mrb[0].mxu0 %v1571
      %v2348 = vpop.f32.mrb[0].mxu0
      %v2349 = vadd.f32 %v2252, %v2348
      %v2350 = vpop.f32.mrb[0].mxu0
      %v2351 = vpop.f32.mrb[0].mxu0
      %v2352 = vadd.f32 %v2255, %v2351
      %v2353 = vpop.f32.mrb[0].mxu0
      %2354 = vdwg.mxu0
      %2355 = vmatprep.subr.bf16.mxu0 0
      %2356 = vmatpush1.bf16.msra.mxu0 %v2049
      %2357 = vmatprep.subr.bf16.mxu0 0
      %2358 = vmatpush1.bf16.msra.mxu0 %v2050
      %2359 = vmatprep.subr.bf16.mxu0 0
      %2360 = vmatpush1.bf16.msra.mxu0 %v2051
      %2361 = vmatprep.subr.bf16.mxu0 0
      %2362 = vmatpush1.bf16.msra.mxu0 %v2052
      %2363 = vmatprep.subr.bf16.mxu0 0
      %2364 = vmatpush1.bf16.msra.mxu0 %v2053
      %2365 = vmatprep.subr.bf16.mxu0 0
      %2366 = vmatpush1.bf16.msra.mxu0 %v2054
      %2367 = vmatprep.subr.bf16.mxu0 0
      %2368 = vmatpush1.bf16.msra.mxu0 %v2055
      %2369 = vmatprep.subr.bf16.mxu0 0
      %2370 = vmatpush1.bf16.msra.mxu0 %v2056
      %2371 = vmatprep.subr.bf16.mxu0 0
      %2372 = vmatpush1.bf16.msra.mxu0 %v2057
      %2373 = vmatprep.subr.bf16.mxu0 0
      %2374 = vmatpush1.bf16.msra.mxu0 %v2058
      %2375 = vmatprep.subr.bf16.mxu0 0
      %2376 = vmatpush1.bf16.msra.mxu0 %v2059
      %2377 = vmatprep.subr.bf16.mxu0 0
      %2378 = vmatpush1.bf16.msra.mxu0 %v2060
      %2379 = vmatprep.subr.bf16.mxu0 0
      %2380 = vmatpush1.bf16.msra.mxu0 %v2061
      %2381 = vmatprep.subr.bf16.mxu0 0
      %2382 = vmatpush1.bf16.msra.mxu0 %v2062
      %2383 = vmatprep.subr.bf16.mxu0 0
      %2384 = vmatpush1.bf16.msra.mxu0 %v2063
      %2385 = vmatprep.subr.bf16.mxu0 0
      %2386 = vmatpush1.bf16.msra.mxu0 %v2064
      %2387 = vmatprep.mubr.bf16.mxu0 %v1511
      %2388 = vmatmul.mubr.bf16.gmra.mrb[0].mxu0 %v1510
      %v2389 = vpop.f32.mrb[0].mxu0
      %v2390 = vadd.f32 %v2293, %v2389
      %v2391 = vpop.f32.mrb[0].mxu0
      %v2392 = vpop.f32.mrb[0].mxu0
      %v2393 = vadd.f32 %v2296, %v2392
      %v2394 = vpop.f32.mrb[0].mxu0
      %2395 = vmatprep.mubr.bf16.mxu0 %v1520
      %2396 = vmatmul.mubr.bf16.gmra.mrb[0].mxu0 %v1519
      %v2397 = vpop.f32.mrb[0].mxu0
      %v2398 = vadd.f32 %v2301, %v2397
      %v2399 = vpop.f32.mrb[0].mxu0
      %v2400 = vpop.f32.mrb[0].mxu0
      %v2401 = vadd.f32 %v2304, %v2400
      %v2402 = vpop.f32.mrb[0].mxu0
      %2403 = vmatprep.mubr.bf16.mxu0 %v1529
      %2404 = vmatmul.mubr.bf16.gmra.mrb[0].mxu0 %v1528
      %v2405 = vpop.f32.mrb[0].mxu0
      %v2406 = vadd.f32 %v2309, %v2405
      %v2407 = vpop.f32.mrb[0].mxu0
      %v2408 = vpop.f32.mrb[0].mxu0
      %v2409 = vadd.f32 %v2312, %v2408
      %v2410 = vpop.f32.mrb[0].mxu0
      %2411 = vmatprep.mubr.bf16.mxu0 %v1538
      %2412 = vmatmul.mubr.bf16.gmra.mrb[0].mxu0 %v1537
      %v2413 = vpop.f32.mrb[0].mxu0
      %v2414 = vadd.f32 %v2317, %v2413
      %v2415 = vpop.f32.mrb[0].mxu0
      %v2416 = vpop.f32.mrb[0].mxu0
      %v2417 = vadd.f32 %v2320, %v2416
      %v2418 = vpop.f32.mrb[0].mxu0
      %2419 = vmatprep.mubr.bf16.mxu0 %v1547
      %2420 = vmatmul.mubr.bf16.gmra.mrb[0].mxu0 %v1546
      %v2421 = vpop.f32.mrb[0].mxu0
      %v2422 = vadd.f32 %v2325, %v2421
      %v2423 = vpop.f32.mrb[0].mxu0
      %v2424 = vpop.f32.mrb[0].mxu0
      %v2425 = vadd.f32 %v2328, %v2424
      %v2426 = vpop.f32.mrb[0].mxu0
      %2427 = vmatprep.mubr.bf16.mxu0 %v1556
      %2428 = vmatmul.mubr.bf16.gmra.mrb[0].mxu0 %v1555
      %v2429 = vpop.f32.mrb[0].mxu0
      %v2430 = vadd.f32 %v2333, %v2429
      %v2431 = vpop.f32.mrb[0].mxu0
      %v2432 = vpop.f32.mrb[0].mxu0
      %v2433 = vadd.f32 %v2336, %v2432
      %v2434 = vpop.f32.mrb[0].mxu0
      %2435 = vmatprep.mubr.bf16.mxu0 %v1565
      %2436 = vmatmul.mubr.bf16.gmra.mrb[0].mxu0 %v1564
      %v2437 = vpop.f32.mrb[0].mxu0
      %v2438 = vadd.f32 %v2341, %v2437
      %v2439 = vpop.f32.mrb[0].mxu0
      %v2440 = vpop.f32.mrb[0].mxu0
      %v2441 = vadd.f32 %v2344, %v2440
      %v2442 = vpop.f32.mrb[0].mxu0
      %2443 = vmatprep.mubr.bf16.mxu0 %v1574
      %2444 = vmatmul.mubr.bf16.gmra.mrb[0].mxu0 %v1573
      %v2445 = vpop.f32.mrb[0].mxu0
      %v2446 = vadd.f32 %v2349, %v2445
      %v2447 = vpop.f32.mrb[0].mxu0
      %v2448 = vpop.f32.mrb[0].mxu0
      %v2449 = vadd.f32 %v2352, %v2448
      %v2450 = vpop.f32.mrb[0].mxu0
      %2451 = vdwg.mxu0
      %2452 = vmatprep.subr.bf16.mxu0 0
      %2453 = vmatpush1.bf16.msra.mxu0 %v2065
      %2454 = vmatprep.subr.bf16.mxu0 0
      %2455 = vmatpush1.bf16.msra.mxu0 %v2066
      %2456 = vmatprep.subr.bf16.mxu0 0
      %2457 = vmatpush1.bf16.msra.mxu0 %v2067
      %2458 = vmatprep.subr.bf16.mxu0 0
      %2459 = vmatpush1.bf16.msra.mxu0 %v2068
      %2460 = vmatprep.subr.bf16.mxu0 0
      %2461 = vmatpush1.bf16.msra.mxu0 %v2069
      %2462 = vmatprep.subr.bf16.mxu0 0
      %2463 = vmatpush1.bf16.msra.mxu0 %v2070
      %2464 = vmatprep.subr.bf16.mxu0 0
      %2465 = vmatpush1.bf16.msra.mxu0 %v2071
      %2466 = vmatprep.subr.bf16.mxu0 0
      %2467 = vmatpush1.bf16.msra.mxu0 %v2072
      %2468 = vmatprep.subr.bf16.mxu0 0
      %2469 = vmatpush1.bf16.msra.mxu0 %v2073
      %2470 = vmatprep.subr.bf16.mxu0 0
      %2471 = vmatpush1.bf16.msra.mxu0 %v2074
      %2472 = vmatprep.subr.bf16.mxu0 0
      %2473 = vmatpush1.bf16.msra.mxu0 %v2075
      %2474 = vmatprep.subr.bf16.mxu0 0
      %2475 = vmatpush1.bf16.msra.mxu0 %v2076
      %2476 = vmatprep.subr.bf16.mxu0 0
      %2477 = vmatpush1.bf16.msra.mxu0 %v2077
      %2478 = vmatprep.subr.bf16.mxu0 0
      %2479 = vmatpush1.bf16.msra.mxu0 %v2078
      %2480 = vmatprep.subr.bf16.mxu0 0
      %2481 = vmatpush1.bf16.msra.mxu0 %v2079
      %2482 = vmatprep.subr.bf16.mxu0 0
      %2483 = vmatpush1.bf16.msra.mxu0 %v2080
      %2484 = vmatprep.mubr.bf16.mxu0 %v1513
      %2485 = vmatmul.mubr.bf16.gmra.mrb[0].mxu0 %v1512
      %v2486 = vpop.f32.mrb[0].mxu0
      %v2487 = vadd.f32 %v2390, %v2486
      %v2488 = vpop.f32.mrb[0].mxu0
      %v2489 = vpop.f32.mrb[0].mxu0
      %v2490 = vadd.f32 %v2393, %v2489
      %v2491 = vpop.f32.mrb[0].mxu0
      %2492 = vmatprep.mubr.bf16.mxu0 %v1522
      %2493 = vmatmul.mubr.bf16.gmra.mrb[0].mxu0 %v1521
      %v2494 = vpop.f32.mrb[0].mxu0
      %v2495 = vadd.f32 %v2398, %v2494
      %v2496 = vpop.f32.mrb[0].mxu0
      %v2497 = vpop.f32.mrb[0].mxu0
      %v2498 = vadd.f32 %v2401, %v2497
      %v2499 = vpop.f32.mrb[0].mxu0
      %2500 = vmatprep.mubr.bf16.mxu0 %v1531
      %2501 = vmatmul.mubr.bf16.gmra.mrb[0].mxu0 %v1530
      %v2502 = vpop.f32.mrb[0].mxu0
      %v2503 = vadd.f32 %v2406, %v2502
      %v2504 = vpop.f32.mrb[0].mxu0
      %v2505 = vpop.f32.mrb[0].mxu0
      %v2506 = vadd.f32 %v2409, %v2505
      %v2507 = vpop.f32.mrb[0].mxu0
      %2508 = vmatprep.mubr.bf16.mxu0 %v1540
      %2509 = vmatmul.mubr.bf16.gmra.mrb[0].mxu0 %v1539
      %v2510 = vpop.f32.mrb[0].mxu0
      %v2511 = vadd.f32 %v2414, %v2510
      %v2512 = vpop.f32.mrb[0].mxu0
      %v2513 = vpop.f32.mrb[0].mxu0
      %v2514 = vadd.f32 %v2417, %v2513
      %v2515 = vpop.f32.mrb[0].mxu0
      %2516 = vmatprep.mubr.bf16.mxu0 %v1549
      %2517 = vmatmul.mubr.bf16.gmra.mrb[0].mxu0 %v1548
      %v2518 = vpop.f32.mrb[0].mxu0
      %v2519 = vadd.f32 %v2422, %v2518
      %v2520 = vpop.f32.mrb[0].mxu0
      %v2521 = vpop.f32.mrb[0].mxu0
      %v2522 = vadd.f32 %v2425, %v2521
      %v2523 = vpop.f32.mrb[0].mxu0
      %2524 = vmatprep.mubr.bf16.mxu0 %v1558
      %2525 = vmatmul.mubr.bf16.gmra.mrb[0].mxu0 %v1557
      %v2526 = vpop.f32.mrb[0].mxu0
      %v2527 = vadd.f32 %v2430, %v2526
      %v2528 = vpop.f32.mrb[0].mxu0
      %v2529 = vpop.f32.mrb[0].mxu0
      %v2530 = vadd.f32 %v2433, %v2529
      %v2531 = vpop.f32.mrb[0].mxu0
      %2532 = vmatprep.mubr.bf16.mxu0 %v1567
      %2533 = vmatmul.mubr.bf16.gmra.mrb[0].mxu0 %v1566
      %v2534 = vpop.f32.mrb[0].mxu0
      %v2535 = vadd.f32 %v2438, %v2534
      %v2536 = vpop.f32.mrb[0].mxu0
      %v2537 = vpop.f32.mrb[0].mxu0
      %v2538 = vadd.f32 %v2441, %v2537
      %v2539 = vpop.f32.mrb[0].mxu0
      %2540 = vmatprep.mubr.bf16.mxu0 %v1576
      %2541 = vmatmul.mubr.bf16.gmra.mrb[0].mxu0 %v1575
      %v2542 = vpop.f32.mrb[0].mxu0
      %v2543 = vadd.f32 %v2446, %v2542
      %v2544 = vpop.f32.mrb[0].mxu0
      %v2545 = vpop.f32.mrb[0].mxu0
      %v2546 = vadd.f32 %v2449, %v2545
      %v2547 = vpop.f32.mrb[0].mxu0
      %2548 = vdwg.mxu0
      %2549 = vmatprep.subr.bf16.mxu0 0
      %2550 = vmatpush1.bf16.msra.mxu0 %v2081
      %2551 = vmatprep.subr.bf16.mxu0 0
      %2552 = vmatpush1.bf16.msra.mxu0 %v2082
      %2553 = vmatprep.subr.bf16.mxu0 0
      %2554 = vmatpush1.bf16.msra.mxu0 %v2083
      %2555 = vmatprep.subr.bf16.mxu0 0
      %2556 = vmatpush1.bf16.msra.mxu0 %v2084
      %2557 = vmatprep.subr.bf16.mxu0 0
      %2558 = vmatpush1.bf16.msra.mxu0 %v2085
      %2559 = vmatprep.subr.bf16.mxu0 0
      %2560 = vmatpush1.bf16.msra.mxu0 %v2086
      %2561 = vmatprep.subr.bf16.mxu0 0
      %2562 = vmatpush1.bf16.msra.mxu0 %v2087
      %2563 = vmatprep.subr.bf16.mxu0 0
      %2564 = vmatpush1.bf16.msra.mxu0 %v2088
      %2565 = vmatprep.subr.bf16.mxu0 0
      %2566 = vmatpush1.bf16.msra.mxu0 0
      %2567 = vmatprep.subr.bf16.mxu0 0
      %2568 = vmatpush1.bf16.msra.mxu0 0
      %2569 = vmatprep.subr.bf16.mxu0 0
      %2570 = vmatpush1.bf16.msra.mxu0 0
      %2571 = vmatprep.subr.bf16.mxu0 0
      %2572 = vmatpush1.bf16.msra.mxu0 0
      %2573 = vmatprep.subr.bf16.mxu0 0
      %2574 = vmatpush1.bf16.msra.mxu0 0
      %2575 = vmatprep.subr.bf16.mxu0 0
      %2576 = vmatpush1.bf16.msra.mxu0 0
      %2577 = vmatprep.subr.bf16.mxu0 0
      %2578 = vmatpush1.bf16.msra.mxu0 0
      %2579 = vmatprep.subr.bf16.mxu0 0
      %2580 = vmatpush1.bf16.msra.mxu0 0
      %2581 = vmatprep.mubr.bf16.mxu0 0
      %2582 = vmatmul.mubr.bf16.gmra.mrb[0].mxu0 %v1514
      %v2583 = vpop.f32.mrb[0].mxu0
      %v2584 = vadd.f32 %v2487, %v2583
      %v2585 = vpop.f32.mrb[0].mxu0
      %v2586 = vpop.f32.mrb[0].mxu0
      %v2587 = vadd.f32 %v2490, %v2586
      %v2588 = vpop.f32.mrb[0].mxu0
      %2589 = vmatprep.mubr.bf16.mxu0 0
      %2590 = vmatmul.mubr.bf16.gmra.mrb[0].mxu0 %v1523
      %v2591 = vpop.f32.mrb[0].mxu0
      %v2592 = vadd.f32 %v2495, %v2591
      %v2593 = vpop.f32.mrb[0].mxu0
      %v2594 = vpop.f32.mrb[0].mxu0
      %v2595 = vadd.f32 %v2498, %v2594
      %v2596 = vpop.f32.mrb[0].mxu0
      %2597 = vmatprep.mubr.bf16.mxu0 0
      %2598 = vmatmul.mubr.bf16.gmra.mrb[0].mxu0 %v1532
      %v2599 = vpop.f32.mrb[0].mxu0
      %v2600 = vadd.f32 %v2503, %v2599
      %v2601 = vpop.f32.mrb[0].mxu0
      %v2602 = vpop.f32.mrb[0].mxu0
      %v2603 = vadd.f32 %v2506, %v2602
      %v2604 = vpop.f32.mrb[0].mxu0
      %2605 = vmatprep.mubr.bf16.mxu0 0
      %2606 = vmatmul.mubr.bf16.gmra.mrb[0].mxu0 %v1541
      %v2607 = vpop.f32.mrb[0].mxu0
      %v2608 = vadd.f32 %v2511, %v2607
      %v2609 = vpop.f32.mrb[0].mxu0
      %v2610 = vpop.f32.mrb[0].mxu0
      %v2611 = vadd.f32 %v2514, %v2610
      %v2612 = vpop.f32.mrb[0].mxu0
      %2613 = vmatprep.mubr.bf16.mxu0 0
      %2614 = vmatmul.mubr.bf16.gmra.mrb[0].mxu0 %v1550
      %v2615 = vpop.f32.mrb[0].mxu0
      %v2616 = vadd.f32 %v2519, %v2615
      %v2617 = vpop.f32.mrb[0].mxu0
      %v2618 = vpop.f32.mrb[0].mxu0
      %v2619 = vadd.f32 %v2522, %v2618
      %v2620 = vpop.f32.mrb[0].mxu0
      %2621 = vmatprep.mubr.bf16.mxu0 0
      %2622 = vmatmul.mubr.bf16.gmra.mrb[0].mxu0 %v1559
      %v2623 = vpop.f32.mrb[0].mxu0
      %v2624 = vadd.f32 %v2527, %v2623
      %v2625 = vpop.f32.mrb[0].mxu0
      %v2626 = vpop.f32.mrb[0].mxu0
      %v2627 = vadd.f32 %v2530, %v2626
      %v2628 = vpop.f32.mrb[0].mxu0
      %2629 = vmatprep.mubr.bf16.mxu0 0
      %2630 = vmatmul.mubr.bf16.gmra.mrb[0].mxu0 %v1568
      %v2631 = vpop.f32.mrb[0].mxu0
      %v2632 = vadd.f32 %v2535, %v2631
      %v2633 = vpop.f32.mrb[0].mxu0
      %v2634 = vpop.f32.mrb[0].mxu0
      %v2635 = vadd.f32 %v2538, %v2634
      %v2636 = vpop.f32.mrb[0].mxu0
      %2637 = vmatprep.mubr.bf16.mxu0 0
      %2638 = vmatmul.mubr.bf16.gmra.mrb[0].mxu0 %v1577
      %v2639 = vpop.f32.mrb[0].mxu0
      %v2640 = vadd.f32 %v2543, %v2639
      %v2641 = vpop.f32.mrb[0].mxu0
      %v2642 = vpop.f32.mrb[0].mxu0
      %v2643 = vadd.f32 %v2546, %v2642
      %v2644 = vpop.f32.mrb[0].mxu0
      %2645 = vdwg.mxu0
      %v2646 = vpack.c.bf16 %v2587, %v2584
      %v2647 = vpack.c.bf16 %v2595, %v2592
      %v2648 = vpack.c.bf16 %v2603, %v2600
      %v2649 = vpack.c.bf16 %v2611, %v2608
      %v2650 = vpack.c.bf16 %v2619, %v2616
      %v2651 = vpack.c.bf16 %v2627, %v2624
      %v2652 = vpack.c.bf16 %v2635, %v2632
      %v2653 = vpack.c.bf16 %v2643, %v2640
      %v2662 = vunpack.c.l.b16 %v2646
      %v2663 = vunpack.c.h.b16 %v2646
      %v2664 = vunpack.c.l.b16 %v2647
      %v2665 = vunpack.c.h.b16 %v2647
      %v2666 = vunpack.c.l.b16 %v2648
      %v2667 = vunpack.c.h.b16 %v2648
      %v2668 = vunpack.c.l.b16 %v2649
      %v2669 = vunpack.c.h.b16 %v2649
      %v2670 = vunpack.c.l.b16 %v2650
      %v2671 = vunpack.c.h.b16 %v2650
      %v2672 = vunpack.c.l.b16 %v2651
      %v2673 = vunpack.c.h.b16 %v2651
      %v2674 = vunpack.c.l.b16 %v2652
      %v2675 = vunpack.c.h.b16 %v2652
      %v2676 = vunpack.c.l.b16 %v2653
      %v2677 = vunpack.c.h.b16 %v2653
      %v2678 = vpack.c.b16 %v2662, %v2662
      %v2679 = vpack.c.b16 %v2663, %v2663
      %v2680 = vpack.c.b16 %v2664, %v2664
      %v2681 = vpack.c.b16 %v2665, %v2665
      %v2682 = vpack.c.b16 %v2666, %v2666
      %v2683 = vpack.c.b16 %v2667, %v2667
      %v2684 = vpack.c.b16 %v2668, %v2668
      %v2685 = vpack.c.b16 %v2669, %v2669
      %v2686 = vpack.c.b16 %v2670, %v2670
      %v2687 = vpack.c.b16 %v2671, %v2671
      %v2688 = vpack.c.b16 %v2672, %v2672
      %v2689 = vpack.c.b16 %v2673, %v2673
      %v2690 = vpack.c.b16 %v2674, %v2674
      %v2691 = vpack.c.b16 %v2675, %v2675
      %v2692 = vpack.c.b16 %v2676, %v2676
      %v2693 = vpack.c.b16 %v2677, %v2677
      %2710 = vst [vmem:[%s325] sm:$0xf] %v2678
      %2711 = vst [vmem:[%s325 + $0x4] sm:$0xf] %v2679
      %2712 = vst [vmem:[%s325 + $0x8] sm:$0xf] %v2680
      %2713 = vst [vmem:[%s325 + $0xc] sm:$0xf] %v2681
      %2714 = vst [vmem:[%s325 + $0x10] sm:$0xf] %v2682
      %2715 = vst [vmem:[%s325 + $0x14] sm:$0xf] %v2683
      %2716 = vst [vmem:[%s325 + $0x18] sm:$0xf] %v2684
      %2717 = vst [vmem:[%s325 + $0x1c] sm:$0xf] %v2685
      %2718 = vst [vmem:[%s325 + $0x20] sm:$0xf] %v2686
      %2719 = vst [vmem:[%s325 + $0x24] sm:$0xf] %v2687
      %2720 = vst [vmem:[%s325 + $0x28] sm:$0xf] %v2688
      %2721 = vst [vmem:[%s325 + $0x2c] sm:$0xf] %v2689
      %2722 = vst [vmem:[%s325 + $0x30] sm:$0xf] %v2690
      %2723 = vst [vmem:[%s325 + $0x34] sm:$0xf] %v2691
      %2724 = vst [vmem:[%s325 + $0x38] sm:$0xf] %v2692
      %2725 = vst [vmem:[%s325 + $0x3c] sm:$0xf] %v2693
      %v2726 = vadd.f32 %v2584, %v2587
      %v2727 = vadd.f32 %v2726, %v2592
      %v2728 = vadd.f32 %v2727, %v2595
      %v2729 = vadd.f32 %v2728, %v2600
      %v2730 = vadd.f32 %v2729, %v2603
      %v2731 = vadd.f32 %v2730, %v2608
      %v2732 = vadd.f32 %v2731, %v2611
      %v2733 = vadd.f32 %v2732, %v2616
      %v2734 = vadd.f32 %v2733, %v2619
      %v2735 = vadd.f32 %v2734, %v2624
      %v2736 = vadd.f32 %v2735, %v2627
      %v2737 = vadd.f32 %v2736, %v2632
      %v2738 = vadd.f32 %v2737, %v2635
      %v2739 = vadd.f32 %v2738, %v2640
      %v2740 = vadd.f32 %v2739, %v2643
      %v2741 = vrot.slane %v2740, 4
      %v2742 = vadd.f32 %v2740, %v2741
      %v2743 = vrot.slane %v2742, 2
      %v2744 = vadd.f32 %v2742, %v2743
      %v2745 = vrot.slane %v2744, 1
      %v2746 = vadd.f32 %v2744, %v2745
      %v2747 = vmul.f32 %v2746, 0.0078125
      %v2748 = vsub.f32 %v2584, %v2747
      %v2749 = vsub.f32 %v2587, %v2747
      %v2750 = vsub.f32 %v2592, %v2747
      %v2751 = vsub.f32 %v2595, %v2747
      %v2752 = vsub.f32 %v2600, %v2747
      %v2753 = vsub.f32 %v2603, %v2747
      %v2754 = vsub.f32 %v2608, %v2747
      %v2755 = vsub.f32 %v2611, %v2747
      %v2756 = vsub.f32 %v2616, %v2747
      %v2757 = vsub.f32 %v2619, %v2747
      %v2758 = vsub.f32 %v2624, %v2747
      %v2759 = vsub.f32 %v2627, %v2747
      %v2760 = vsub.f32 %v2632, %v2747
      %v2761 = vsub.f32 %v2635, %v2747
      %v2762 = vsub.f32 %v2640, %v2747
      %v2763 = vsub.f32 %v2643, %v2747
      %2764 = vst [vmem:[%s333] sm:$0x1] %v2746
      %v2765 = vmul.f32 %v2748, %v2748
      %v2766 = vmul.f32 %v2749, %v2749
      %v2767 = vmul.f32 %v2750, %v2750
      %v2768 = vmul.f32 %v2751, %v2751
      %v2769 = vmul.f32 %v2752, %v2752
      %v2770 = vmul.f32 %v2753, %v2753
      %v2771 = vmul.f32 %v2754, %v2754
      %v2772 = vmul.f32 %v2755, %v2755
      %v2773 = vmul.f32 %v2756, %v2756
      %v2774 = vmul.f32 %v2757, %v2757
      %v2775 = vmul.f32 %v2758, %v2758
      %v2776 = vmul.f32 %v2759, %v2759
      %v2777 = vmul.f32 %v2760, %v2760
      %v2778 = vmul.f32 %v2761, %v2761
      %v2779 = vmul.f32 %v2762, %v2762
      %v2780 = vmul.f32 %v2763, %v2763
      %v2781 = vadd.f32 %v2765, %v2766
      %v2782 = vadd.f32 %v2781, %v2767
      %v2783 = vadd.f32 %v2782, %v2768
      %v2784 = vadd.f32 %v2783, %v2769
      %v2785 = vadd.f32 %v2784, %v2770
      %v2786 = vadd.f32 %v2785, %v2771
      %v2787 = vadd.f32 %v2786, %v2772
      %v2788 = vadd.f32 %v2787, %v2773
      %v2789 = vadd.f32 %v2788, %v2774
      %v2790 = vadd.f32 %v2789, %v2775
      %v2791 = vadd.f32 %v2790, %v2776
      %v2792 = vadd.f32 %v2791, %v2777
      %v2793 = vadd.f32 %v2792, %v2778
      %v2794 = vadd.f32 %v2793, %v2779
      %v2795 = vadd.f32 %v2794, %v2780
      %v2796 = vrot.slane %v2795, 4
      %v2797 = vadd.f32 %v2795, %v2796
      %v2798 = vrot.slane %v2797, 2
      %v2799 = vadd.f32 %v2797, %v2798
      %v2800 = vrot.slane %v2799, 1
      %v2801 = vadd.f32 %v2799, %v2800
      %2802 = vst [vmem:[%s340] sm:$0x1] %v2801
      %s2803 = smul.u32 8, %s24
      %p2804 = scmp.lt.s32.totalorder %s23, 1
      %s2805 = scalar_select %p2804, %s23, 1
      %p2806 = scmp.lt.s32.totalorder %s2803, 15
      %s2807 = scalar_select %p2806, %s2803, 15
      %s2808 = smul.addr %s2807, 2
      %s2809 = smul.addr %s2805, 32
      %s2810 = sadd.s32 %s2808, %s2809
      %s2811 = smul.addr %s2810, 4
      %s2812 = scalar_lea.vmem %s5, %s2811
      %p2813 = scmp.lt.s32.totalorder %s23, 1
      %s2814 = scalar_select %p2813, %s23, 1
      %p2815 = scmp.lt.s32.totalorder %s24, 1
      %s2816 = scalar_select %p2815, %s24, 1
      %s2817 = smul.addr %s2814, 2
      %s2818 = sadd.s32 %s2816, %s2817
      %s2819 = scalar_lea.vmem %s6, %s2818
      %p2820 = scmp.lt.s32.totalorder %s23, 1
      %s2821 = scalar_select %p2820, %s23, 1
      %p2822 = scmp.lt.s32.totalorder %s24, 1
      %s2823 = scalar_select %p2822, %s24, 1
      %s2824 = smul.addr %s2821, 2
      %s2825 = sadd.s32 %s2823, %s2824
      %s2826 = scalar_lea.vmem %s7, %s2825
      // Predicated region
      $region41: #{up_block_forward.2} parent=39 // pred_check
        %p2827 = pneg %p161
      $region42: #{up_block_forward.2} parent=39 // pred_check_branch
        %2829 = sbr.rel (%p2827) target = $region44
      $region43: #{up_block_forward.2} parent=39 // pred_region
        %s2830 = smul.u32 8, %s24
      $region44: #{up_block_forward.2} parent=39 // pred_fallthru
        _
      // Predicated region
      $region45: #{up_block_forward.2} parent=39 // pred_check
        %p2831 = pneg %p189
      $region46: #{up_block_forward.2} parent=39 // pred_check_branch
        %2833 = sbr.rel (%p2831) target = $region48
      $region47: #{up_block_forward.2} parent=39 // pred_region
        _
      $region48: #{up_block_forward.2} parent=39 // pred_fallthru
        _
      // Predicated region
      $region49: #{up_block_forward.2} parent=39 // pred_check
        %p2834 = pneg %p217
      $region50: #{up_block_forward.2} parent=39 // pred_check_branch
        %2836 = sbr.rel (%p2834) target = $region52
      $region51: #{up_block_forward.2} parent=39 // pred_region
        _
      $region52: #{up_block_forward.2} parent=39 // pred_fallthru
        _
    $region40: #{up_block_forward.2} parent=5 // pred_fallthru
      _
    %p2837 = scmp.le.s32.totalorder 2, %s14
    // Predicated region
    $region53: #{up_block_forward.2} parent=5 // pred_check
      %p2838 = pneg %p2837
    $region54: #{up_block_forward.2} parent=5 // pred_check_branch
      %2840 = sbr.rel (%p2838) target = $region56
    $region55: #{up_block_forward.2} parent=5 // pred_region
      %s2841 = ssub.s32 %s14, 2
      // Predicated region
      $region57: #{up_block_forward.2} parent=55 // pred_check
        %p2842 = pneg %p167
      $region58: #{up_block_forward.2} parent=55 // pred_check_branch
        %2844 = sbr.rel (%p2842) target = $region60
      $region59: #{up_block_forward.2} parent=55 // pred_region
        %s2845 = smul.u32 8, %s26
        %p2846 = scmp.lt.s32.totalorder %s25, 1
        %s2847 = scalar_select %p2846, %s25, 1
        %p2848 = scmp.lt.s32.totalorder %s2845, 15
        %s2849 = scalar_select %p2848, %s2845, 15
        %s2850 = smul.addr %s2849, 2
        %s2851 = smul.addr %s2847, 32
        %s2852 = sadd.s32 %s2850, %s2851
        %s2853 = smul.addr %s2852, 4
        %s2854 = scalar_lea.vmem %s5, %s2853
      $region60: #{up_block_forward.2} parent=55 // pred_fallthru
        _
      // Predicated region
      $region61: #{up_block_forward.2} parent=55 // pred_check
        %p2855 = pneg %p195
      $region62: #{up_block_forward.2} parent=55 // pred_check_branch
        %2857 = sbr.rel (%p2855) target = $region64
      $region63: #{up_block_forward.2} parent=55 // pred_region
        %p2858 = scmp.lt.s32.totalorder %s25, 1
        %s2859 = scalar_select %p2858, %s25, 1
        %p2860 = scmp.lt.s32.totalorder %s26, 1
        %s2861 = scalar_select %p2860, %s26, 1
        %s2862 = smul.addr %s2859, 2
        %s2863 = sadd.s32 %s2861, %s2862
        %s2864 = scalar_lea.vmem %s6, %s2863
      $region64: #{up_block_forward.2} parent=55 // pred_fallthru
        _
      // Predicated region
      $region65: #{up_block_forward.2} parent=55 // pred_check
        %p2865 = pneg %p223
      $region66: #{up_block_forward.2} parent=55 // pred_check_branch
        %2867 = sbr.rel (%p2865) target = $region68
      $region67: #{up_block_forward.2} parent=55 // pred_region
        %p2868 = scmp.lt.s32.totalorder %s25, 1
        %s2869 = scalar_select %p2868, %s25, 1
        %p2870 = scmp.lt.s32.totalorder %s26, 1
        %s2871 = scalar_select %p2870, %s26, 1
        %s2872 = smul.addr %s2869, 2
        %s2873 = sadd.s32 %s2871, %s2872
        %s2874 = scalar_lea.vmem %s7, %s2873
      $region68: #{up_block_forward.2} parent=55 // pred_fallthru
        _
    $region56: #{up_block_forward.2} parent=5 // pred_fallthru
      _
  $region6: #{up_block_forward.2} parent=0 // loop_footer
    %s18 = sadd.s32 1, %s14
  $region7: #{up_block_forward.2} parent=0 // loop_footer_branch
    %13 = sbr.rel target = $region3
  $region8: #{up_block_forward.2} parent=0 // loop_exit
    _

// kernel: up_block_forward.3
$region0: #{up_block_forward.3}
  #allocation0 [shape = 'u32[]', space=smem, size = 0x4, offset = 0x4, fixed_abs, tag = 'smem constant byte address 0x4 - core index']
  #allocation1 [shape = 'u32[144,128]{1,0:T(1,128)}', space=vmem, size = 0x12000, scoped, tag = 'internal scratch']
  #allocation2 [shape = 'bf16[8,16,1280]{2,1,0:T(16,128)(2,1)}', space=vmem, size = 0x50000, scoped, tag = 'scratch operand']
  %s0 = inlined_call_operand.vmem [shape: bf16[2,16,16,128], index: 0, kind: input, shape index: {}]
  %s1 = inlined_call_operand.vmem [shape: f32[2,8,8,128], index: 1, kind: input, shape index: {}]
  %s2 = inlined_call_operand.vmem [shape: f32[1,128], index: 2, kind: input, shape index: {}]
  %s3 = inlined_call_operand.vmem [shape: f32[1,128], index: 3, kind: input, shape index: {}]
  %s4 = inlined_call_operand.vmem [shape: bf16[1280,128], index: 4, kind: input, shape index: {}]
  %s5 = inlined_call_operand.vmem [shape: f32[1,128], index: 5, kind: input, shape index: {}]
  %s6 = inlined_call_operand.vmem [shape: f32[2,16,16,128], index: 6, kind: output, shape index: {}]
  %s7 = sld [smem:[#allocation0]]
  $region57: #{up_block_forward.3} parent=0
    _
  %s9 = ssub.s32 1, %s7
  %s10 = scalar_select 0, %s9, %s7
  loop: start=0, step=1, limit=6
  $region2: #{up_block_forward.3} parent=0 // loop_pre_header
    _
  $region3: #{up_block_forward.3} parent=0 // loop_header
    %s12 = sphi 0, %s16
    %p13 = scmp.ge.s32.totalorder %s12, 6
    %s19 = sphi 0, %s31
    %s20 = sphi 0, %s27
    %s21 = sphi 0, %s19
    %s22 = sphi 0, %s20
    %s23 = sphi 0, %s21
    %s24 = sphi 0, %s22
    %s34 = sphi 0, %s36
    %s37 = sphi 0, %s34
    %s38 = sphi 0, %s37
    %s54 = sphi 0, %s38
    %s60 = sphi 0, %s62
    %s63 = sphi 0, %s60
    %s64 = sphi 0, %s63
    %s80 = sphi 0, %s64
    %s84 = sphi 0, %s84
    %s86 = sphi 0, %s84
    %s87 = sphi 0, %s86
    %s101 = sphi 0, %s87
    %s105 = sphi 0, %s105
    %s107 = sphi 0, %s105
    %s108 = sphi 0, %s107
    %s122 = sphi 0, %s108
    %s126 = sphi 0, %s126
    %s128 = sphi 0, %s126
    %s129 = sphi 0, %s128
    %s143 = sphi 0, %s129
    %s147 = sphi 0, %s147
    %s149 = sphi 0, %s147
    %s150 = sphi 0, %s149
    %s164 = sphi 0, %s150
    %s172 = sphi 0, %s174
    %s175 = sphi 0, %s172
    %s176 = sphi 0, %s175
    %s192 = sphi 0, %s176
  $region4: #{up_block_forward.3} parent=0 // loop_header_branch
    %15 = sbr.rel (%p13) target = $region8
  $region5: #{up_block_forward.3} parent=0 // loop_body
    %s17 = ssub.s32 %s12, 1
    %s18 = ssub.s32 %s12, 2
    %s25 = sadd.s32 1, %s20
    %p26 = scmp.ge.s32.totalorder %s25, 2
    %s27 = scalar_select %p26, 0, %s25
    %s28 = sadd.s32 1, %s19
    %s29 = scalar_select %p26, %s28, %s19
    %p30 = scmp.ge.s32.totalorder %s29, 2
    %s31 = scalar_select %p30, 0, %s29
    %s32 = ssub.s32 %s19, %s31
    %p33 = scmp.eq.s32.totalorder %s32, 0
    %s35 = sadd.s32 %s34, 1
    %s36 = scalar_select %p33, %s34, %s35
    %p39 = pneg %p33
    %p40 = scmp.eq.s32.totalorder %s12, 3
    %p41 = por %p39, %p40
    %p42 = scmp.ne.s32.totalorder %s34, %s37
    %p43 = scmp.eq.s32.totalorder %s12, 0
    %p44 = por %p42, %p43
    %p45 = scmp.ne.s32.totalorder %s34, %s37
    %p46 = scmp.eq.s32.totalorder %s17, 3
    %p47 = por %p45, %p46
    %p48 = scmp.ne.s32.totalorder %s37, %s38
    %p49 = scmp.eq.s32.totalorder %s17, 0
    %p50 = por %p48, %p49
    %p51 = scmp.ne.s32.totalorder %s37, %s38
    %p52 = scmp.eq.s32.totalorder %s18, 3
    %p53 = por %p51, %p52
    %p55 = scmp.ne.s32.totalorder %s38, %s54
    %p56 = scmp.eq.s32.totalorder %s18, 0
    %p57 = por %p55, %p56
    %s58 = ssub.s32 %s19, %s31
    %p59 = scmp.eq.s32.totalorder %s58, 0
    %s61 = sadd.s32 %s60, 1
    %s62 = scalar_select %p59, %s60, %s61
    %p65 = pneg %p59
    %p66 = scmp.eq.s32.totalorder %s12, 3
    %p67 = por %p65, %p66
    %p68 = scmp.ne.s32.totalorder %s60, %s63
    %p69 = scmp.eq.s32.totalorder %s12, 0
    %p70 = por %p68, %p69
    %p71 = scmp.ne.s32.totalorder %s60, %s63
    %p72 = scmp.eq.s32.totalorder %s17, 3
    %p73 = por %p71, %p72
    %p74 = scmp.ne.s32.totalorder %s63, %s64
    %p75 = scmp.eq.s32.totalorder %s17, 0
    %p76 = por %p74, %p75
    %p77 = scmp.ne.s32.totalorder %s63, %s64
    %p78 = scmp.eq.s32.totalorder %s18, 3
    %p79 = por %p77, %p78
    %p81 = scmp.ne.s32.totalorder %s64, %s80
    %p82 = scmp.eq.s32.totalorder %s18, 0
    %p83 = por %p81, %p82
    %s85 = sadd.s32 %s84, 1
    %p88 = scmp.eq.s32.totalorder %s12, 3
    %p89 = scmp.ne.s32.totalorder %s84, %s86
    %p90 = scmp.eq.s32.totalorder %s12, 0
    %p91 = por %p89, %p90
    %p92 = scmp.ne.s32.totalorder %s84, %s86
    %p93 = scmp.eq.s32.totalorder %s17, 3
    %p94 = por %p92, %p93
    %p95 = scmp.ne.s32.totalorder %s86, %s87
    %p96 = scmp.eq.s32.totalorder %s17, 0
    %p97 = por %p95, %p96
    %p98 = scmp.ne.s32.totalorder %s86, %s87
    %p99 = scmp.eq.s32.totalorder %s18, 3
    %p100 = por %p98, %p99
    %p102 = scmp.ne.s32.totalorder %s87, %s101
    %p103 = scmp.eq.s32.totalorder %s18, 0
    %p104 = por %p102, %p103
    %s106 = sadd.s32 %s105, 1
    %p109 = scmp.eq.s32.totalorder %s12, 3
    %p110 = scmp.ne.s32.totalorder %s105, %s107
    %p111 = scmp.eq.s32.totalorder %s12, 0
    %p112 = por %p110, %p111
    %p113 = scmp.ne.s32.totalorder %s105, %s107
    %p114 = scmp.eq.s32.totalorder %s17, 3
    %p115 = por %p113, %p114
    %p116 = scmp.ne.s32.totalorder %s107, %s108
    %p117 = scmp.eq.s32.totalorder %s17, 0
    %p118 = por %p116, %p117
    %p119 = scmp.ne.s32.totalorder %s107, %s108
    %p120 = scmp.eq.s32.totalorder %s18, 3
    %p121 = por %p119, %p120
    %p123 = scmp.ne.s32.totalorder %s108, %s122
    %p124 = scmp.eq.s32.totalorder %s18, 0
    %p125 = por %p123, %p124
    %s127 = sadd.s32 %s126, 1
    %p130 = scmp.eq.s32.totalorder %s12, 3
    %p131 = scmp.ne.s32.totalorder %s126, %s128
    %p132 = scmp.eq.s32.totalorder %s12, 0
    %p133 = por %p131, %p132
    %p134 = scmp.ne.s32.totalorder %s126, %s128
    %p135 = scmp.eq.s32.totalorder %s17, 3
    %p136 = por %p134, %p135
    %p137 = scmp.ne.s32.totalorder %s128, %s129
    %p138 = scmp.eq.s32.totalorder %s17, 0
    %p139 = por %p137, %p138
    %p140 = scmp.ne.s32.totalorder %s128, %s129
    %p141 = scmp.eq.s32.totalorder %s18, 3
    %p142 = por %p140, %p141
    %p144 = scmp.ne.s32.totalorder %s129, %s143
    %p145 = scmp.eq.s32.totalorder %s18, 0
    %p146 = por %p144, %p145
    %s148 = sadd.s32 %s147, 1
    %p151 = scmp.eq.s32.totalorder %s12, 3
    %p152 = scmp.ne.s32.totalorder %s147, %s149
    %p153 = scmp.eq.s32.totalorder %s12, 0
    %p154 = por %p152, %p153
    %p155 = scmp.ne.s32.totalorder %s147, %s149
    %p156 = scmp.eq.s32.totalorder %s17, 3
    %p157 = por %p155, %p156
    %p158 = scmp.ne.s32.totalorder %s149, %s150
    %p159 = scmp.eq.s32.totalorder %s17, 0
    %p160 = por %p158, %p159
    %p161 = scmp.ne.s32.totalorder %s149, %s150
    %p162 = scmp.eq.s32.totalorder %s18, 3
    %p163 = por %p161, %p162
    %p165 = scmp.ne.s32.totalorder %s150, %s164
    %p166 = scmp.eq.s32.totalorder %s18, 0
    %p167 = por %p165, %p166
    %s168 = ssub.s32 %s19, %s31
    %s169 = ssub.s32 %s20, %s27
    %s170 = sor.u32 %s168, %s169
    %p171 = scmp.eq.s32.totalorder %s170, 0
    %s173 = sadd.s32 %s172, 1
    %s174 = scalar_select %p171, %s172, %s173
    %p177 = pneg %p171
    %p178 = scmp.eq.s32.totalorder %s12, 3
    %p179 = por %p177, %p178
    %p180 = scmp.ne.s32.totalorder %s172, %s175
    %p181 = scmp.eq.s32.totalorder %s12, 0
    %p182 = por %p180, %p181
    %p183 = scmp.ne.s32.totalorder %s172, %s175
    %p184 = scmp.eq.s32.totalorder %s17, 3
    %p185 = por %p183, %p184
    %p186 = scmp.ne.s32.totalorder %s175, %s176
    %p187 = scmp.eq.s32.totalorder %s17, 0
    %p188 = por %p186, %p187
    %p189 = scmp.ne.s32.totalorder %s175, %s176
    %p190 = scmp.eq.s32.totalorder %s18, 3
    %p191 = por %p189, %p190
    %p193 = scmp.ne.s32.totalorder %s176, %s192
    %p194 = scmp.eq.s32.totalorder %s18, 0
    %p195 = por %p193, %p194
    %p196 = scmp.le.s32.totalorder 1, %s12
    %p197 = scmp.lt.s32.totalorder %s12, 5
    %p198 = pnand %p196, %p197
    %p199 = pneg %p198
    // Predicated region
    $region9: #{up_block_forward.3} parent=5 // pred_check
      _
    $region10: #{up_block_forward.3} parent=5 // pred_check_branch
      %201 = sbr.rel (%p198) target = $region12
    $region11: #{up_block_forward.3} parent=5 // pred_region
      %s202 = ssub.s32 %s12, 1
      // Predicated region
      $region13: #{up_block_forward.3} parent=11 // pred_check
        %p203 = pneg %p97
      $region14: #{up_block_forward.3} parent=11 // pred_check_branch
        %205 = sbr.rel (%p203) target = $region16
      $region15: #{up_block_forward.3} parent=11 // pred_region
        _
      $region16: #{up_block_forward.3} parent=11 // pred_fallthru
        _
      // Predicated region
      $region17: #{up_block_forward.3} parent=11 // pred_check
        %p206 = pneg %p118
      $region18: #{up_block_forward.3} parent=11 // pred_check_branch
        %208 = sbr.rel (%p206) target = $region20
      $region19: #{up_block_forward.3} parent=11 // pred_region
        _
      $region20: #{up_block_forward.3} parent=11 // pred_fallthru
        _
      // Predicated region
      $region21: #{up_block_forward.3} parent=11 // pred_check
        %p209 = pneg %p139
      $region22: #{up_block_forward.3} parent=11 // pred_check_branch
        %211 = sbr.rel (%p209) target = $region24
      $region23: #{up_block_forward.3} parent=11 // pred_region
        _
      $region24: #{up_block_forward.3} parent=11 // pred_fallthru
        _
      // Predicated region
      $region25: #{up_block_forward.3} parent=11 // pred_check
        %p212 = pneg %p160
      $region26: #{up_block_forward.3} parent=11 // pred_check_branch
        %214 = sbr.rel (%p212) target = $region28
      $region27: #{up_block_forward.3} parent=11 // pred_region
        _
      $region28: #{up_block_forward.3} parent=11 // pred_fallthru
        _
    $region12: #{up_block_forward.3} parent=5 // pred_fallthru
      _
    %p215 = scmp.lt.s32.totalorder %s12, 4
    // Predicated region
    $region29: #{up_block_forward.3} parent=5 // pred_check
      %p216 = pneg %p215
    $region30: #{up_block_forward.3} parent=5 // pred_check_branch
      %218 = sbr.rel (%p216) target = $region32
    $region31: #{up_block_forward.3} parent=5 // pred_region
      // Predicated region
      $region33: #{up_block_forward.3} parent=31 // pred_check
        %p219 = pneg %p44
      $region34: #{up_block_forward.3} parent=31 // pred_check_branch
        %221 = sbr.rel (%p219) target = $region36
      $region35: #{up_block_forward.3} parent=31 // pred_region
        %p222 = scmp.lt.s32.totalorder %s19, 1
        %s223 = scalar_select %p222, %s19, 1
        %s224 = smul.addr %s223, 32
        %s225 = smul.addr %s224, 4
        %s226 = scalar_lea.vmem %s0, %s225
      $region36: #{up_block_forward.3} parent=31 // pred_fallthru
        _
      // Predicated region
      $region37: #{up_block_forward.3} parent=31 // pred_check
        %p227 = pneg %p70
      $region38: #{up_block_forward.3} parent=31 // pred_check_branch
        %229 = sbr.rel (%p227) target = $region40
      $region39: #{up_block_forward.3} parent=31 // pred_region
        %p230 = scmp.lt.s32.totalorder %s19, 1
        %s231 = scalar_select %p230, %s19, 1
        %s232 = smul.addr %s231, 8
        %s233 = smul.addr %s232, 8
        %s234 = scalar_lea.vmem %s1, %s233
      $region40: #{up_block_forward.3} parent=31 // pred_fallthru
        _
    $region32: #{up_block_forward.3} parent=5 // pred_fallthru
      _
    %p235 = scmp.le.s32.totalorder 1, %s12
    %p236 = scmp.lt.s32.totalorder %s12, 5
    %p237 = pnand %p235, %p236
    %p238 = pneg %p237
    // Predicated region
    $region41: #{up_block_forward.3} parent=5 // pred_check
      _
    $region42: #{up_block_forward.3} parent=5 // pred_check_branch
      %240 = sbr.rel (%p237) target = $region44
    $region43: #{up_block_forward.3} parent=5 // pred_region
      %s241 = ssub.s32 %s12, 1
      %p242 = scmp.lt.s32.totalorder %s21, 1
      %s243 = scalar_select %p242, %s21, 1
      %s244 = smul.addr %s243, 32
      %s245 = smul.addr %s244, 4
      %s246 = scalar_lea.vmem %s0, %s245
      %p247 = pneg %p50
      %p248 = pneg %p47
      %p249 = scmp.lt.s32.totalorder %s21, 1
      %s250 = scalar_select %p249, %s21, 1
      %s251 = smul.addr %s250, 8
      %s252 = smul.addr %s251, 8
      %s253 = scalar_lea.vmem %s1, %s252
      %p254 = pneg %p76
      %p255 = pneg %p73
      %p256 = pneg %p97
      %p257 = pneg %p94
      %p258 = pneg %p118
      %p259 = pneg %p115
      %p260 = pneg %p139
      %p261 = pneg %p136
      %p262 = pneg %p160
      %p263 = pneg %p157
      %p264 = pneg %p188
      %p265 = pneg %p185
      %s266 = smul.u32 8, %s22
      %p267 = scmp.lt.s32.totalorder %s21, 1
      %s268 = scalar_select %p267, %s21, 1
      %p269 = scmp.lt.s32.totalorder %s266, 15
      %s270 = scalar_select %p269, %s266, 15
      %s271 = smul.addr %s270, 2
      %s272 = smul.addr %s268, 32
      %s273 = sadd.s32 %s271, %s272
      %s274 = smul.addr %s273, 8
      %s275 = scalar_lea.vmem %s6, %s274
      %p276 = scmp.lt.s32.totalorder %s21, 1
      %s277 = scalar_select %p276, %s21, 1
      %s278 = smul.addr %s277, 32
      %s279 = smul.addr %s278, 4
      %s280 = scalar_lea.vmem %s0, %s279
      %p281 = scmp.lt.s32.totalorder %s21, 1
      %s282 = scalar_select %p281, %s21, 1
      %s283 = smul.addr %s282, 8
      %s284 = smul.addr %s283, 8
      %s285 = scalar_lea.vmem %s1, %s284
      %s286 = smul.u32 8, %s22
      %p287 = scmp.lt.s32.totalorder %s21, 1
      %s288 = scalar_select %p287, %s21, 1
      %p289 = scmp.lt.s32.totalorder %s286, 15
      %s290 = scalar_select %p289, %s286, 15
      %s291 = smul.addr %s290, 2
      %s292 = smul.addr %s288, 32
      %s293 = sadd.s32 %s291, %s292
      %s294 = smul.addr %s293, 8
      %s295 = scalar_lea.vmem %s6, %s294
      %s296 = smul.u32 8, %s22
      %s298 = smul.u32 %s22, 8
      %s299 = smul.u32 %s298, 2
      %s300 = smul.addr %s299, 4
      %s301 = scalar_lea.vmem %s280, %s300
      %v302 = vld [vmem:[%s301] sm:$0xf]
      %v303 = vld [vmem:[%s301 + $0x4] sm:$0xf]
      %v304 = vld [vmem:[%s301 + $0x8] sm:$0xf]
      %v305 = vld [vmem:[%s301 + $0xc] sm:$0xf]
      %v306 = vld [vmem:[%s301 + $0x10] sm:$0xf]
      %v307 = vld [vmem:[%s301 + $0x14] sm:$0xf]
      %v308 = vld [vmem:[%s301 + $0x18] sm:$0xf]
      %v309 = vld [vmem:[%s301 + $0x1c] sm:$0xf]
      %v310 = vld [vmem:[%s301 + $0x20] sm:$0xf]
      %v311 = vld [vmem:[%s301 + $0x24] sm:$0xf]
      %v312 = vld [vmem:[%s301 + $0x28] sm:$0xf]
      %v313 = vld [vmem:[%s301 + $0x2c] sm:$0xf]
      %v314 = vld [vmem:[%s301 + $0x30] sm:$0xf]
      %v315 = vld [vmem:[%s301 + $0x34] sm:$0xf]
      %v316 = vld [vmem:[%s301 + $0x38] sm:$0xf]
      %v317 = vld [vmem:[%s301 + $0x3c] sm:$0xf]
      %v318 = vunpack.c.l.bf16 %v302
      %v319 = vunpack.c.l.bf16 %v303
      %v320 = vunpack.c.l.bf16 %v304
      %v321 = vunpack.c.l.bf16 %v305
      %v322 = vunpack.c.l.bf16 %v306
      %v323 = vunpack.c.l.bf16 %v307
      %v324 = vunpack.c.l.bf16 %v308
      %v325 = vunpack.c.l.bf16 %v309
      %v326 = vunpack.c.l.bf16 %v310
      %v327 = vunpack.c.l.bf16 %v311
      %v328 = vunpack.c.l.bf16 %v312
      %v329 = vunpack.c.l.bf16 %v313
      %v330 = vunpack.c.l.bf16 %v314
      %v331 = vunpack.c.l.bf16 %v315
      %v332 = vunpack.c.l.bf16 %v316
      %v333 = vunpack.c.l.bf16 %v317
      %v334 = vld [vmem:[%s2] sm:$0x1]
      %v336 = vlaneseq
      %v337 = vshrl.u32 %v336, 7
      %v338 = vsub.s32 0, %v337
      %v339 = vrot.slane %v334, %v338
      %v341 = vmul.f32 %v318, %v339
      %v342 = vmul.f32 %v319, %v339
      %v343 = vmul.f32 %v320, %v339
      %v344 = vmul.f32 %v321, %v339
      %v345 = vmul.f32 %v322, %v339
      %v346 = vmul.f32 %v323, %v339
      %v347 = vmul.f32 %v324, %v339
      %v348 = vmul.f32 %v325, %v339
      %v349 = vmul.f32 %v326, %v339
      %v350 = vmul.f32 %v327, %v339
      %v351 = vmul.f32 %v328, %v339
      %v352 = vmul.f32 %v329, %v339
      %v353 = vmul.f32 %v330, %v339
      %v354 = vmul.f32 %v331, %v339
      %v355 = vmul.f32 %v332, %v339
      %v356 = vmul.f32 %v333, %v339
      %v357 = vld [vmem:[%s3] sm:$0x1]
      %v359 = vlaneseq
      %v360 = vshrl.u32 %v359, 7
      %v361 = vsub.s32 0, %v360
      %v362 = vrot.slane %v357, %v361
      %v364 = vadd.f32 %v341, %v362
      %v365 = vadd.f32 %v342, %v362
      %v366 = vadd.f32 %v343, %v362
      %v367 = vadd.f32 %v344, %v362
      %v368 = vadd.f32 %v345, %v362
      %v369 = vadd.f32 %v346, %v362
      %v370 = vadd.f32 %v347, %v362
      %v371 = vadd.f32 %v348, %v362
      %v372 = vadd.f32 %v349, %v362
      %v373 = vadd.f32 %v350, %v362
      %v374 = vadd.f32 %v351, %v362
      %v375 = vadd.f32 %v352, %v362
      %v376 = vadd.f32 %v353, %v362
      %v377 = vadd.f32 %v354, %v362
      %v378 = vadd.f32 %v355, %v362
      %v379 = vadd.f32 %v356, %v362
      %v380 = vmax.f32 %v364, 0.0
      %v381 = vmax.f32 %v365, 0.0
      %v382 = vmax.f32 %v366, 0.0
      %v383 = vmax.f32 %v367, 0.0
      %v384 = vmax.f32 %v368, 0.0
      %v385 = vmax.f32 %v369, 0.0
      %v386 = vmax.f32 %v370, 0.0
      %v387 = vmax.f32 %v371, 0.0
      %v388 = vmax.f32 %v372, 0.0
      %v389 = vmax.f32 %v373, 0.0
      %v390 = vmax.f32 %v374, 0.0
      %v391 = vmax.f32 %v375, 0.0
      %v392 = vmax.f32 %v376, 0.0
      %v393 = vmax.f32 %v377, 0.0
      %v394 = vmax.f32 %v378, 0.0
      %v395 = vmax.f32 %v379, 0.0
      %s396 = ssub.s32 %s298, 1
      %p397 = scmp.gt.s32.totalorder %s396, 0
      %s398 = scalar_select %p397, %s396, 0
      %s399 = smul.u32 %s398, 2
      %s400 = smul.addr %s399, 4
      %s401 = scalar_lea.vmem %s280, %s400
      %v402 = vld [vmem:[%s401] sm:$0xf]
      %v403 = vld [vmem:[%s401 + $0x4] sm:$0xf]
      %v404 = vunpack.c.l.bf16 %v402
      %v405 = vunpack.c.l.bf16 %v403
      %v406 = vmul.f32 %v404, %v339
      %v407 = vmul.f32 %v405, %v339
      %v408 = vadd.f32 %v406, %v362
      %v409 = vadd.f32 %v407, %v362
      %v410 = vmax.f32 %v408, 0.0
      %v411 = vmax.f32 %v409, 0.0
      %s412 = sadd.s32 %s298, 8
      %p413 = scmp.lt.s32.totalorder %s412, 15
      %s414 = scalar_select %p413, %s412, 15
      %s415 = smul.u32 %s414, 2
      %s416 = smul.addr %s415, 4
      %s417 = scalar_lea.vmem %s280, %s416
      %v418 = vld [vmem:[%s417] sm:$0xf]
      %v419 = vld [vmem:[%s417 + $0x4] sm:$0xf]
      %v420 = vunpack.c.l.bf16 %v418
      %v421 = vunpack.c.l.bf16 %v419
      %v422 = vmul.f32 %v420, %v339
      %v423 = vmul.f32 %v421, %v339
      %v424 = vadd.f32 %v422, %v362
      %v425 = vadd.f32 %v423, %v362
      %v426 = vmax.f32 %v424, 0.0
      %v427 = vmax.f32 %v425, 0.0
      %p428 = scmp.gt.s32.totalorder %s22, 0
      %s429 = scalar_select %p428, 1, 0
      %s430 = scvt.s32.f32 %s429
      %v431 = vstv %s430
      %v432 = vmul.f32 %v410, %v431
      %v433 = vmul.f32 %v411, %v431
      %p434 = scmp.lt.s32.totalorder %s22, 1
      %s435 = scalar_select %p434, 1, 0
      %s436 = scvt.s32.f32 %s435
      %v437 = vstv %s436
      %v438 = vmul.f32 %v426, %v437
      %v439 = vmul.f32 %v427, %v437
      %v440 = vpack.c.bf16 %v433, %v432
      %v441 = vpack.c.bf16 %v381, %v380
      %v442 = vpack.c.bf16 %v383, %v382
      %v443 = vpack.c.bf16 %v385, %v384
      %v444 = vpack.c.bf16 %v387, %v386
      %v445 = vpack.c.bf16 %v389, %v388
      %v446 = vpack.c.bf16 %v391, %v390
      %v447 = vpack.c.bf16 %v393, %v392
      %v448 = vpack.c.bf16 %v395, %v394
      %v449 = vpack.c.bf16 %v439, %v438
      %v451 = vshrl.u32 %v440, 16
      %v453 = vrot.slane %v451, 7
      %v454 = vshll.u32 %v440, 16
      %v456 = vor.u32 %v453, %v454
      %v458 = vshrl.u32 %v441, 16
      %v460 = vrot.slane %v458, 7
      %v461 = vshll.u32 %v441, 16
      %v463 = vor.u32 %v460, %v461
      %v465 = vshrl.u32 %v442, 16
      %v467 = vrot.slane %v465, 7
      %v468 = vshll.u32 %v442, 16
      %v470 = vor.u32 %v467, %v468
      %v472 = vshrl.u32 %v443, 16
      %v474 = vrot.slane %v472, 7
      %v475 = vshll.u32 %v443, 16
      %v477 = vor.u32 %v474, %v475
      %v479 = vshrl.u32 %v444, 16
      %v481 = vrot.slane %v479, 7
      %v482 = vshll.u32 %v444, 16
      %v484 = vor.u32 %v481, %v482
      %v486 = vshrl.u32 %v445, 16
      %v488 = vrot.slane %v486, 7
      %v489 = vshll.u32 %v445, 16
      %v491 = vor.u32 %v488, %v489
      %v493 = vshrl.u32 %v446, 16
      %v495 = vrot.slane %v493, 7
      %v496 = vshll.u32 %v446, 16
      %v498 = vor.u32 %v495, %v496
      %v500 = vshrl.u32 %v447, 16
      %v502 = vrot.slane %v500, 7
      %v503 = vshll.u32 %v447, 16
      %v505 = vor.u32 %v502, %v503
      %vm514 = vcmask 1047552
      %vm515 = vsmask.f32 7938
      %vm516 = vmand %vm514, %vm515
      %v517 = vld [vmem:[#allocation2] sm:$0xff]
      %v518 = vsel %vm516, %v456, %v517
      %519 = vst [vmem:[#allocation2] sm:$0xff] %v518
      %v520 = vld [vmem:[#allocation2 + $0x50] sm:$0xff]
      %v521 = vsel %vm516, %v463, %v520
      %522 = vst [vmem:[#allocation2 + $0x50] sm:$0xff] %v521
      %v523 = vld [vmem:[#allocation2 + $0xa0] sm:$0xff]
      %v524 = vsel %vm516, %v470, %v523
      %525 = vst [vmem:[#allocation2 + $0xa0] sm:$0xff] %v524
      %v526 = vld [vmem:[#allocation2 + $0xf0] sm:$0xff]
      %v527 = vsel %vm516, %v477, %v526
      %528 = vst [vmem:[#allocation2 + $0xf0] sm:$0xff] %v527
      %v529 = vld [vmem:[#allocation2 + $0x140] sm:$0xff]
      %v530 = vsel %vm516, %v484, %v529
      %531 = vst [vmem:[#allocation2 + $0x140] sm:$0xff] %v530
      %v532 = vld [vmem:[#allocation2 + $0x190] sm:$0xff]
      %v533 = vsel %vm516, %v491, %v532
      %534 = vst [vmem:[#allocation2 + $0x190] sm:$0xff] %v533
      %v535 = vld [vmem:[#allocation2 + $0x1e0] sm:$0xff]
      %v536 = vsel %vm516, %v498, %v535
      %537 = vst [vmem:[#allocation2 + $0x1e0] sm:$0xff] %v536
      %v538 = vld [vmem:[#allocation2 + $0x230] sm:$0xff]
      %v539 = vsel %vm516, %v505, %v538
      %540 = vst [vmem:[#allocation2 + $0x230] sm:$0xff] %v539
      %vm541 = vcmask 1040384
      %vm542 = vsmask.f32 256
      %vm543 = vmand %vm541, %vm542
      %v544 = vld [vmem:[#allocation2] sm:$0x1]
      %v545 = vsel %vm543, 0, %v544
      %546 = vst [vmem:[#allocation2] sm:$0x1] %v545
      %v547 = vld [vmem:[#allocation2 + $0x50] sm:$0x1]
      %v548 = vsel %vm543, 0, %v547
      %549 = vst [vmem:[#allocation2 + $0x50] sm:$0x1] %v548
      %v550 = vld [vmem:[#allocation2 + $0xa0] sm:$0x1]
      %v551 = vsel %vm543, 0, %v550
      %552 = vst [vmem:[#allocation2 + $0xa0] sm:$0x1] %v551
      %v553 = vld [vmem:[#allocation2 + $0xf0] sm:$0x1]
      %v554 = vsel %vm543, 0, %v553
      %555 = vst [vmem:[#allocation2 + $0xf0] sm:$0x1] %v554
      %v556 = vld [vmem:[#allocation2 + $0x140] sm:$0x1]
      %v557 = vsel %vm543, 0, %v556
      %558 = vst [vmem:[#allocation2 + $0x140] sm:$0x1] %v557
      %v559 = vld [vmem:[#allocation2 + $0x190] sm:$0x1]
      %v560 = vsel %vm543, 0, %v559
      %561 = vst [vmem:[#allocation2 + $0x190] sm:$0x1] %v560
      %v562 = vld [vmem:[#allocation2 + $0x1e0] sm:$0x1]
      %v563 = vsel %vm543, 0, %v562
      %564 = vst [vmem:[#allocation2 + $0x1e0] sm:$0x1] %v563
      %v565 = vld [vmem:[#allocation2 + $0x230] sm:$0x1]
      %v566 = vsel %vm543, 0, %v565
      %567 = vst [vmem:[#allocation2 + $0x230] sm:$0x1] %v566
      %568 = vst [vmem:[#allocation2 + $0x8] sm:$0xff] %v440
      %569 = vst [vmem:[#allocation2 + $0x58] sm:$0xff] %v441
      %570 = vst [vmem:[#allocation2 + $0xa8] sm:$0xff] %v442
      %571 = vst [vmem:[#allocation2 + $0xf8] sm:$0xff] %v443
      %572 = vst [vmem:[#allocation2 + $0x148] sm:$0xff] %v444
      %573 = vst [vmem:[#allocation2 + $0x198] sm:$0xff] %v445
      %574 = vst [vmem:[#allocation2 + $0x1e8] sm:$0xff] %v446
      %575 = vst [vmem:[#allocation2 + $0x238] sm:$0xff] %v447
      %v576 = vrot.slane %v454, 1
      %v577 = vor.u32 %v451, %v576
      %v578 = vrot.slane %v461, 1
      %v579 = vor.u32 %v458, %v578
      %v580 = vrot.slane %v468, 1
      %v581 = vor.u32 %v465, %v580
      %v582 = vrot.slane %v475, 1
      %v583 = vor.u32 %v472, %v582
      %v584 = vrot.slane %v482, 1
      %v585 = vor.u32 %v479, %v584
      %v586 = vrot.slane %v489, 1
      %v587 = vor.u32 %v486, %v586
      %v588 = vrot.slane %v496, 1
      %v589 = vor.u32 %v493, %v588
      %v590 = vrot.slane %v503, 1
      %v591 = vor.u32 %v500, %v590
      %vm600 = vsmask.f32 7424
      %vm601 = vmand %vm514, %vm600
      %v602 = vld [vmem:[#allocation2 + $0x10] sm:$0xff]
      %v603 = vsel %vm601, %v577, %v602
      %604 = vst [vmem:[#allocation2 + $0x10] sm:$0xff] %v603
      %v605 = vld [vmem:[#allocation2 + $0x60] sm:$0xff]
      %v606 = vsel %vm601, %v579, %v605
      %607 = vst [vmem:[#allocation2 + $0x60] sm:$0xff] %v606
      %v608 = vld [vmem:[#allocation2 + $0xb0] sm:$0xff]
      %v609 = vsel %vm601, %v581, %v608
      %610 = vst [vmem:[#allocation2 + $0xb0] sm:$0xff] %v609
      %v611 = vld [vmem:[#allocation2 + $0x100] sm:$0xff]
      %v612 = vsel %vm601, %v583, %v611
      %613 = vst [vmem:[#allocation2 + $0x100] sm:$0xff] %v612
      %v614 = vld [vmem:[#allocation2 + $0x150] sm:$0xff]
      %v615 = vsel %vm601, %v585, %v614
      %616 = vst [vmem:[#allocation2 + $0x150] sm:$0xff] %v615
      %v617 = vld [vmem:[#allocation2 + $0x1a0] sm:$0xff]
      %v618 = vsel %vm601, %v587, %v617
      %619 = vst [vmem:[#allocation2 + $0x1a0] sm:$0xff] %v618
      %v620 = vld [vmem:[#allocation2 + $0x1f0] sm:$0xff]
      %v621 = vsel %vm601, %v589, %v620
      %622 = vst [vmem:[#allocation2 + $0x1f0] sm:$0xff] %v621
      %v623 = vld [vmem:[#allocation2 + $0x240] sm:$0xff]
      %v624 = vsel %vm601, %v591, %v623
      %625 = vst [vmem:[#allocation2 + $0x240] sm:$0xff] %v624
      %vm626 = vcmask 1047559
      %vm627 = vsmask.f32 7966
      %vm628 = vmand %vm626, %vm627
      %v629 = vld [vmem:[#allocation2 + $0x10] sm:$0x80]
      %v630 = vsel %vm628, 0, %v629
      %631 = vst [vmem:[#allocation2 + $0x10] sm:$0x80] %v630
      %v632 = vld [vmem:[#allocation2 + $0x60] sm:$0x80]
      %v633 = vsel %vm628, 0, %v632
      %634 = vst [vmem:[#allocation2 + $0x60] sm:$0x80] %v633
      %v635 = vld [vmem:[#allocation2 + $0xb0] sm:$0x80]
      %v636 = vsel %vm628, 0, %v635
      %637 = vst [vmem:[#allocation2 + $0xb0] sm:$0x80] %v636
      %v638 = vld [vmem:[#allocation2 + $0x100] sm:$0x80]
      %v639 = vsel %vm628, 0, %v638
      %640 = vst [vmem:[#allocation2 + $0x100] sm:$0x80] %v639
      %v641 = vld [vmem:[#allocation2 + $0x150] sm:$0x80]
      %v642 = vsel %vm628, 0, %v641
      %643 = vst [vmem:[#allocation2 + $0x150] sm:$0x80] %v642
      %v644 = vld [vmem:[#allocation2 + $0x1a0] sm:$0x80]
      %v645 = vsel %vm628, 0, %v644
      %646 = vst [vmem:[#allocation2 + $0x1a0] sm:$0x80] %v645
      %v647 = vld [vmem:[#allocation2 + $0x1f0] sm:$0x80]
      %v648 = vsel %vm628, 0, %v647
      %649 = vst [vmem:[#allocation2 + $0x1f0] sm:$0x80] %v648
      %v650 = vld [vmem:[#allocation2 + $0x240] sm:$0x80]
      %v651 = vsel %vm628, 0, %v650
      %652 = vst [vmem:[#allocation2 + $0x240] sm:$0x80] %v651
      %v654 = vshrl.u32 %v448, 16
      %v656 = vrot.slane %v654, 7
      %v657 = vshll.u32 %v448, 16
      %v659 = vor.u32 %v656, %v657
      %v661 = vld [vmem:[#allocation2 + $0x18] sm:$0xff]
      %v662 = vsel %vm516, %v463, %v661
      %663 = vst [vmem:[#allocation2 + $0x18] sm:$0xff] %v662
      %v664 = vld [vmem:[#allocation2 + $0x68] sm:$0xff]
      %v665 = vsel %vm516, %v470, %v664
      %666 = vst [vmem:[#allocation2 + $0x68] sm:$0xff] %v665
      %v667 = vld [vmem:[#allocation2 + $0xb8] sm:$0xff]
      %v668 = vsel %vm516, %v477, %v667
      %669 = vst [vmem:[#allocation2 + $0xb8] sm:$0xff] %v668
      %v670 = vld [vmem:[#allocation2 + $0x108] sm:$0xff]
      %v671 = vsel %vm516, %v484, %v670
      %672 = vst [vmem:[#allocation2 + $0x108] sm:$0xff] %v671
      %v673 = vld [vmem:[#allocation2 + $0x158] sm:$0xff]
      %v674 = vsel %vm516, %v491, %v673
      %675 = vst [vmem:[#allocation2 + $0x158] sm:$0xff] %v674
      %v676 = vld [vmem:[#allocation2 + $0x1a8] sm:$0xff]
      %v677 = vsel %vm516, %v498, %v676
      %678 = vst [vmem:[#allocation2 + $0x1a8] sm:$0xff] %v677
      %v679 = vld [vmem:[#allocation2 + $0x1f8] sm:$0xff]
      %v680 = vsel %vm516, %v505, %v679
      %681 = vst [vmem:[#allocation2 + $0x1f8] sm:$0xff] %v680
      %v682 = vld [vmem:[#allocation2 + $0x248] sm:$0xff]
      %v683 = vsel %vm516, %v659, %v682
      %684 = vst [vmem:[#allocation2 + $0x248] sm:$0xff] %v683
      %v685 = vld [vmem:[#allocation2 + $0x18] sm:$0x1]
      %v686 = vsel %vm543, 0, %v685
      %687 = vst [vmem:[#allocation2 + $0x18] sm:$0x1] %v686
      %v688 = vld [vmem:[#allocation2 + $0x68] sm:$0x1]
      %v689 = vsel %vm543, 0, %v688
      %690 = vst [vmem:[#allocation2 + $0x68] sm:$0x1] %v689
      %v691 = vld [vmem:[#allocation2 + $0xb8] sm:$0x1]
      %v692 = vsel %vm543, 0, %v691
      %693 = vst [vmem:[#allocation2 + $0xb8] sm:$0x1] %v692
      %v694 = vld [vmem:[#allocation2 + $0x108] sm:$0x1]
      %v695 = vsel %vm543, 0, %v694
      %696 = vst [vmem:[#allocation2 + $0x108] sm:$0x1] %v695
      %v697 = vld [vmem:[#allocation2 + $0x158] sm:$0x1]
      %v698 = vsel %vm543, 0, %v697
      %699 = vst [vmem:[#allocation2 + $0x158] sm:$0x1] %v698
      %v700 = vld [vmem:[#allocation2 + $0x1a8] sm:$0x1]
      %v701 = vsel %vm543, 0, %v700
      %702 = vst [vmem:[#allocation2 + $0x1a8] sm:$0x1] %v701
      %v703 = vld [vmem:[#allocation2 + $0x1f8] sm:$0x1]
      %v704 = vsel %vm543, 0, %v703
      %705 = vst [vmem:[#allocation2 + $0x1f8] sm:$0x1] %v704
      %v706 = vld [vmem:[#allocation2 + $0x248] sm:$0x1]
      %v707 = vsel %vm543, 0, %v706
      %708 = vst [vmem:[#allocation2 + $0x248] sm:$0x1] %v707
      %709 = vst [vmem:[#allocation2 + $0x20] sm:$0xff] %v441
      %710 = vst [vmem:[#allocation2 + $0x70] sm:$0xff] %v442
      %711 = vst [vmem:[#allocation2 + $0xc0] sm:$0xff] %v443
      %712 = vst [vmem:[#allocation2 + $0x110] sm:$0xff] %v444
      %713 = vst [vmem:[#allocation2 + $0x160] sm:$0xff] %v445
      %714 = vst [vmem:[#allocation2 + $0x1b0] sm:$0xff] %v446
      %715 = vst [vmem:[#allocation2 + $0x200] sm:$0xff] %v447
      %716 = vst [vmem:[#allocation2 + $0x250] sm:$0xff] %v448
      %v717 = vrot.slane %v657, 1
      %v718 = vor.u32 %v654, %v717
      %v720 = vld [vmem:[#allocation2 + $0x28] sm:$0xff]
      %v721 = vsel %vm601, %v579, %v720
      %722 = vst [vmem:[#allocation2 + $0x28] sm:$0xff] %v721
      %v723 = vld [vmem:[#allocation2 + $0x78] sm:$0xff]
      %v724 = vsel %vm601, %v581, %v723
      %725 = vst [vmem:[#allocation2 + $0x78] sm:$0xff] %v724
      %v726 = vld [vmem:[#allocation2 + $0xc8] sm:$0xff]
      %v727 = vsel %vm601, %v583, %v726
      %728 = vst [vmem:[#allocation2 + $0xc8] sm:$0xff] %v727
      %v729 = vld [vmem:[#allocation2 + $0x118] sm:$0xff]
      %v730 = vsel %vm601, %v585, %v729
      %731 = vst [vmem:[#allocation2 + $0x118] sm:$0xff] %v730
      %v732 = vld [vmem:[#allocation2 + $0x168] sm:$0xff]
      %v733 = vsel %vm601, %v587, %v732
      %734 = vst [vmem:[#allocation2 + $0x168] sm:$0xff] %v733
      %v735 = vld [vmem:[#allocation2 + $0x1b8] sm:$0xff]
      %v736 = vsel %vm601, %v589, %v735
      %737 = vst [vmem:[#allocation2 + $0x1b8] sm:$0xff] %v736
      %v738 = vld [vmem:[#allocation2 + $0x208] sm:$0xff]
      %v739 = vsel %vm601, %v591, %v738
      %740 = vst [vmem:[#allocation2 + $0x208] sm:$0xff] %v739
      %v741 = vld [vmem:[#allocation2 + $0x258] sm:$0xff]
      %v742 = vsel %vm601, %v718, %v741
      %743 = vst [vmem:[#allocation2 + $0x258] sm:$0xff] %v742
      %v744 = vld [vmem:[#allocation2 + $0x28] sm:$0x80]
      %v745 = vsel %vm628, 0, %v744
      %746 = vst [vmem:[#allocation2 + $0x28] sm:$0x80] %v745
      %v747 = vld [vmem:[#allocation2 + $0x78] sm:$0x80]
      %v748 = vsel %vm628, 0, %v747
      %749 = vst [vmem:[#allocation2 + $0x78] sm:$0x80] %v748
      %v750 = vld [vmem:[#allocation2 + $0xc8] sm:$0x80]
      %v751 = vsel %vm628, 0, %v750
      %752 = vst [vmem:[#allocation2 + $0xc8] sm:$0x80] %v751
      %v753 = vld [vmem:[#allocation2 + $0x118] sm:$0x80]
      %v754 = vsel %vm628, 0, %v753
      %755 = vst [vmem:[#allocation2 + $0x118] sm:$0x80] %v754
      %v756 = vld [vmem:[#allocation2 + $0x168] sm:$0x80]
      %v757 = vsel %vm628, 0, %v756
      %758 = vst [vmem:[#allocation2 + $0x168] sm:$0x80] %v757
      %v759 = vld [vmem:[#allocation2 + $0x1b8] sm:$0x80]
      %v760 = vsel %vm628, 0, %v759
      %761 = vst [vmem:[#allocation2 + $0x1b8] sm:$0x80] %v760
      %v762 = vld [vmem:[#allocation2 + $0x208] sm:$0x80]
      %v763 = vsel %vm628, 0, %v762
      %764 = vst [vmem:[#allocation2 + $0x208] sm:$0x80] %v763
      %v765 = vld [vmem:[#allocation2 + $0x258] sm:$0x80]
      %v766 = vsel %vm628, 0, %v765
      %767 = vst [vmem:[#allocation2 + $0x258] sm:$0x80] %v766
      %v769 = vshrl.u32 %v449, 16
      %v771 = vrot.slane %v769, 7
      %v772 = vshll.u32 %v449, 16
      %v774 = vor.u32 %v771, %v772
      %v776 = vld [vmem:[#allocation2 + $0x30] sm:$0xff]
      %v777 = vsel %vm516, %v470, %v776
      %778 = vst [vmem:[#allocation2 + $0x30] sm:$0xff] %v777
      %v779 = vld [vmem:[#allocation2 + $0x80] sm:$0xff]
      %v780 = vsel %vm516, %v477, %v779
      %781 = vst [vmem:[#allocation2 + $0x80] sm:$0xff] %v780
      %v782 = vld [vmem:[#allocation2 + $0xd0] sm:$0xff]
      %v783 = vsel %vm516, %v484, %v782
      %784 = vst [vmem:[#allocation2 + $0xd0] sm:$0xff] %v783
      %v785 = vld [vmem:[#allocation2 + $0x120] sm:$0xff]
      %v786 = vsel %vm516, %v491, %v785
      %787 = vst [vmem:[#allocation2 + $0x120] sm:$0xff] %v786
      %v788 = vld [vmem:[#allocation2 + $0x170] sm:$0xff]
      %v789 = vsel %vm516, %v498, %v788
      %790 = vst [vmem:[#allocation2 + $0x170] sm:$0xff] %v789
      %v791 = vld [vmem:[#allocation2 + $0x1c0] sm:$0xff]
      %v792 = vsel %vm516, %v505, %v791
      %793 = vst [vmem:[#allocation2 + $0x1c0] sm:$0xff] %v792
      %v794 = vld [vmem:[#allocation2 + $0x210] sm:$0xff]
      %v795 = vsel %vm516, %v659, %v794
      %796 = vst [vmem:[#allocation2 + $0x210] sm:$0xff] %v795
      %v797 = vld [vmem:[#allocation2 + $0x260] sm:$0xff]
      %v798 = vsel %vm516, %v774, %v797
      %799 = vst [vmem:[#allocation2 + $0x260] sm:$0xff] %v798
      %v800 = vld [vmem:[#allocation2 + $0x30] sm:$0x1]
      %v801 = vsel %vm543, 0, %v800
      %802 = vst [vmem:[#allocation2 + $0x30] sm:$0x1] %v801
      %v803 = vld [vmem:[#allocation2 + $0x80] sm:$0x1]
      %v804 = vsel %vm543, 0, %v803
      %805 = vst [vmem:[#allocation2 + $0x80] sm:$0x1] %v804
      %v806 = vld [vmem:[#allocation2 + $0xd0] sm:$0x1]
      %v807 = vsel %vm543, 0, %v806
      %808 = vst [vmem:[#allocation2 + $0xd0] sm:$0x1] %v807
      %v809 = vld [vmem:[#allocation2 + $0x120] sm:$0x1]
      %v810 = vsel %vm543, 0, %v809
      %811 = vst [vmem:[#allocation2 + $0x120] sm:$0x1] %v810
      %v812 = vld [vmem:[#allocation2 + $0x170] sm:$0x1]
      %v813 = vsel %vm543, 0, %v812
      %814 = vst [vmem:[#allocation2 + $0x170] sm:$0x1] %v813
      %v815 = vld [vmem:[#allocation2 + $0x1c0] sm:$0x1]
      %v816 = vsel %vm543, 0, %v815
      %817 = vst [vmem:[#allocation2 + $0x1c0] sm:$0x1] %v816
      %v818 = vld [vmem:[#allocation2 + $0x210] sm:$0x1]
      %v819 = vsel %vm543, 0, %v818
      %820 = vst [vmem:[#allocation2 + $0x210] sm:$0x1] %v819
      %v821 = vld [vmem:[#allocation2 + $0x260] sm:$0x1]
      %v822 = vsel %vm543, 0, %v821
      %823 = vst [vmem:[#allocation2 + $0x260] sm:$0x1] %v822
      %824 = vst [vmem:[#allocation2 + $0x38] sm:$0xff] %v442
      %825 = vst [vmem:[#allocation2 + $0x88] sm:$0xff] %v443
      %826 = vst [vmem:[#allocation2 + $0xd8] sm:$0xff] %v444
      %827 = vst [vmem:[#allocation2 + $0x128] sm:$0xff] %v445
      %828 = vst [vmem:[#allocation2 + $0x178] sm:$0xff] %v446
      %829 = vst [vmem:[#allocation2 + $0x1c8] sm:$0xff] %v447
      %830 = vst [vmem:[#allocation2 + $0x218] sm:$0xff] %v448
      %831 = vst [vmem:[#allocation2 + $0x268] sm:$0xff] %v449
      %v832 = vrot.slane %v772, 1
      %v833 = vor.u32 %v769, %v832
      %v835 = vld [vmem:[#allocation2 + $0x40] sm:$0xff]
      %v836 = vsel %vm601, %v581, %v835
      %837 = vst [vmem:[#allocation2 + $0x40] sm:$0xff] %v836
      %v838 = vld [vmem:[#allocation2 + $0x90] sm:$0xff]
      %v839 = vsel %vm601, %v583, %v838
      %840 = vst [vmem:[#allocation2 + $0x90] sm:$0xff] %v839
      %v841 = vld [vmem:[#allocation2 + $0xe0] sm:$0xff]
      %v842 = vsel %vm601, %v585, %v841
      %843 = vst [vmem:[#allocation2 + $0xe0] sm:$0xff] %v842
      %v844 = vld [vmem:[#allocation2 + $0x130] sm:$0xff]
      %v845 = vsel %vm601, %v587, %v844
      %846 = vst [vmem:[#allocation2 + $0x130] sm:$0xff] %v845
      %v847 = vld [vmem:[#allocation2 + $0x180] sm:$0xff]
      %v848 = vsel %vm601, %v589, %v847
      %849 = vst [vmem:[#allocation2 + $0x180] sm:$0xff] %v848
      %v850 = vld [vmem:[#allocation2 + $0x1d0] sm:$0xff]
      %v851 = vsel %vm601, %v591, %v850
      %852 = vst [vmem:[#allocation2 + $0x1d0] sm:$0xff] %v851
      %v853 = vld [vmem:[#allocation2 + $0x220] sm:$0xff]
      %v854 = vsel %vm601, %v718, %v853
      %855 = vst [vmem:[#allocation2 + $0x220] sm:$0xff] %v854
      %v856 = vld [vmem:[#allocation2 + $0x270] sm:$0xff]
      %v857 = vsel %vm601, %v833, %v856
      %858 = vst [vmem:[#allocation2 + $0x270] sm:$0xff] %v857
      %v859 = vld [vmem:[#allocation2 + $0x40] sm:$0x80]
      %v860 = vsel %vm628, 0, %v859
      %861 = vst [vmem:[#allocation2 + $0x40] sm:$0x80] %v860
      %v862 = vld [vmem:[#allocation2 + $0x90] sm:$0x80]
      %v863 = vsel %vm628, 0, %v862
      %864 = vst [vmem:[#allocation2 + $0x90] sm:$0x80] %v863
      %v865 = vld [vmem:[#allocation2 + $0xe0] sm:$0x80]
      %v866 = vsel %vm628, 0, %v865
      %867 = vst [vmem:[#allocation2 + $0xe0] sm:$0x80] %v866
      %v868 = vld [vmem:[#allocation2 + $0x130] sm:$0x80]
      %v869 = vsel %vm628, 0, %v868
      %870 = vst [vmem:[#allocation2 + $0x130] sm:$0x80] %v869
      %v871 = vld [vmem:[#allocation2 + $0x180] sm:$0x80]
      %v872 = vsel %vm628, 0, %v871
      %873 = vst [vmem:[#allocation2 + $0x180] sm:$0x80] %v872
      %v874 = vld [vmem:[#allocation2 + $0x1d0] sm:$0x80]
      %v875 = vsel %vm628, 0, %v874
      %876 = vst [vmem:[#allocation2 + $0x1d0] sm:$0x80] %v875
      %v877 = vld [vmem:[#allocation2 + $0x220] sm:$0x80]
      %v878 = vsel %vm628, 0, %v877
      %879 = vst [vmem:[#allocation2 + $0x220] sm:$0x80] %v878
      %v880 = vld [vmem:[#allocation2 + $0x270] sm:$0x80]
      %v881 = vsel %vm628, 0, %v880
      %882 = vst [vmem:[#allocation2 + $0x270] sm:$0x80] %v881
      %s883 = smul.u32 %s22, 4
      %s884 = smul.u32 %s883, 8
      %s885 = scalar_lea.vmem %s285, %s884
      %v886 = vld [vmem:[%s885] sm:$0xff]
      %v887 = vld [vmem:[%s885 + $0x8] sm:$0xff]
      %v888 = vld [vmem:[%s885 + $0x10] sm:$0xff]
      %v889 = vld [vmem:[%s885 + $0x18] sm:$0xff]
      %v894 = vcombine.high %v886, %v886
      %v896 = vunpack.c.l.s4 1966171168
      %v897 = vunpack.c.0.s8 %v896
      %v898 = vlaneseq
      %v899 = vshrl.u32 %v898, 7
      %v900 = vsub.s32 %v897, %v899
      %v901 = vrot.slane %v886, %v900
      %v903 = vunpack.c.l.s4 1966171168
      %v904 = vunpack.c.0.s8 %v903
      %v905 = vlaneseq
      %v906 = vshrl.u32 %v905, 7
      %v907 = vsub.s32 %v904, %v906
      %v908 = vrot.slane %v894, %v907
      %v909 = vcombine.high %v901, %v901
      %v910 = vcombine.high %v908, %v908
      %v912 = vunpack.c.l.s4 1966171168
      %v913 = vunpack.c.0.s8 %v912
      %v914 = vlaneseq
      %v915 = vshrl.u32 %v914, 7
      %v916 = vsub.s32 %v913, %v915
      %v917 = vrot.slane %v901, %v916
      %v919 = vunpack.c.l.s4 1966171168
      %v920 = vunpack.c.0.s8 %v919
      %v921 = vlaneseq
      %v922 = vshrl.u32 %v921, 7
      %v923 = vsub.s32 %v920, %v922
      %v924 = vrot.slane %v908, %v923
      %v926 = vunpack.c.l.s4 1966171168
      %v927 = vunpack.c.0.s8 %v926
      %v928 = vlaneseq
      %v929 = vshrl.u32 %v928, 7
      %v930 = vsub.s32 %v927, %v929
      %v931 = vrot.slane %v909, %v930
      %v933 = vunpack.c.l.s4 1966171168
      %v934 = vunpack.c.0.s8 %v933
      %v935 = vlaneseq
      %v936 = vshrl.u32 %v935, 7
      %v937 = vsub.s32 %v934, %v936
      %v938 = vrot.slane %v910, %v937
      %v939 = vcombine.high %v917, %v917
      %v940 = vcombine.high %v924, %v924
      %v941 = vcombine.high %v931, %v931
      %v942 = vcombine.high %v938, %v938
      %v943 = vcombine.high %v887, %v887
      %v945 = vunpack.c.l.s4 1966171168
      %v946 = vunpack.c.0.s8 %v945
      %v947 = vlaneseq
      %v948 = vshrl.u32 %v947, 7
      %v949 = vsub.s32 %v946, %v948
      %v950 = vrot.slane %v887, %v949
      %v952 = vunpack.c.l.s4 1966171168
      %v953 = vunpack.c.0.s8 %v952
      %v954 = vlaneseq
      %v955 = vshrl.u32 %v954, 7
      %v956 = vsub.s32 %v953, %v955
      %v957 = vrot.slane %v943, %v956
      %v958 = vcombine.high %v950, %v950
      %v959 = vcombine.high %v957, %v957
      %v961 = vunpack.c.l.s4 1966171168
      %v962 = vunpack.c.0.s8 %v961
      %v963 = vlaneseq
      %v964 = vshrl.u32 %v963, 7
      %v965 = vsub.s32 %v962, %v964
      %v966 = vrot.slane %v950, %v965
      %v968 = vunpack.c.l.s4 1966171168
      %v969 = vunpack.c.0.s8 %v968
      %v970 = vlaneseq
      %v971 = vshrl.u32 %v970, 7
      %v972 = vsub.s32 %v969, %v971
      %v973 = vrot.slane %v957, %v972
      %v975 = vunpack.c.l.s4 1966171168
      %v976 = vunpack.c.0.s8 %v975
      %v977 = vlaneseq
      %v978 = vshrl.u32 %v977, 7
      %v979 = vsub.s32 %v976, %v978
      %v980 = vrot.slane %v958, %v979
      %v982 = vunpack.c.l.s4 1966171168
      %v983 = vunpack.c.0.s8 %v982
      %v984 = vlaneseq
      %v985 = vshrl.u32 %v984, 7
      %v986 = vsub.s32 %v983, %v985
      %v987 = vrot.slane %v959, %v986
      %v988 = vcombine.high %v966, %v966
      %v989 = vcombine.high %v973, %v973
      %v990 = vcombine.high %v980, %v980
      %v991 = vcombine.high %v987, %v987
      %v992 = vcombine.high %v888, %v888
      %v994 = vunpack.c.l.s4 1966171168
      %v995 = vunpack.c.0.s8 %v994
      %v996 = vlaneseq
      %v997 = vshrl.u32 %v996, 7
      %v998 = vsub.s32 %v995, %v997
      %v999 = vrot.slane %v888, %v998
      %v1001 = vunpack.c.l.s4 1966171168
      %v1002 = vunpack.c.0.s8 %v1001
      %v1003 = vlaneseq
      %v1004 = vshrl.u32 %v1003, 7
      %v1005 = vsub.s32 %v1002, %v1004
      %v1006 = vrot.slane %v992, %v1005
      %v1007 = vcombine.high %v999, %v999
      %v1008 = vcombine.high %v1006, %v1006
      %v1010 = vunpack.c.l.s4 1966171168
      %v1011 = vunpack.c.0.s8 %v1010
      %v1012 = vlaneseq
      %v1013 = vshrl.u32 %v1012, 7
      %v1014 = vsub.s32 %v1011, %v1013
      %v1015 = vrot.slane %v999, %v1014
      %v1017 = vunpack.c.l.s4 1966171168
      %v1018 = vunpack.c.0.s8 %v1017
      %v1019 = vlaneseq
      %v1020 = vshrl.u32 %v1019, 7
      %v1021 = vsub.s32 %v1018, %v1020
      %v1022 = vrot.slane %v1006, %v1021
      %v1024 = vunpack.c.l.s4 1966171168
      %v1025 = vunpack.c.0.s8 %v1024
      %v1026 = vlaneseq
      %v1027 = vshrl.u32 %v1026, 7
      %v1028 = vsub.s32 %v1025, %v1027
      %v1029 = vrot.slane %v1007, %v1028
      %v1031 = vunpack.c.l.s4 1966171168
      %v1032 = vunpack.c.0.s8 %v1031
      %v1033 = vlaneseq
      %v1034 = vshrl.u32 %v1033, 7
      %v1035 = vsub.s32 %v1032, %v1034
      %v1036 = vrot.slane %v1008, %v1035
      %v1037 = vcombine.high %v1015, %v1015
      %v1038 = vcombine.high %v1022, %v1022
      %v1039 = vcombine.high %v1029, %v1029
      %v1040 = vcombine.high %v1036, %v1036
      %v1041 = vcombine.high %v889, %v889
      %v1043 = vunpack.c.l.s4 1966171168
      %v1044 = vunpack.c.0.s8 %v1043
      %v1045 = vlaneseq
      %v1046 = vshrl.u32 %v1045, 7
      %v1047 = vsub.s32 %v1044, %v1046
      %v1048 = vrot.slane %v889, %v1047
      %v1050 = vunpack.c.l.s4 1966171168
      %v1051 = vunpack.c.0.s8 %v1050
      %v1052 = vlaneseq
      %v1053 = vshrl.u32 %v1052, 7
      %v1054 = vsub.s32 %v1051, %v1053
      %v1055 = vrot.slane %v1041, %v1054
      %v1056 = vcombine.high %v1048, %v1048
      %v1057 = vcombine.high %v1055, %v1055
      %v1059 = vunpack.c.l.s4 1966171168
      %v1060 = vunpack.c.0.s8 %v1059
      %v1061 = vlaneseq
      %v1062 = vshrl.u32 %v1061, 7
      %v1063 = vsub.s32 %v1060, %v1062
      %v1064 = vrot.slane %v1048, %v1063
      %v1066 = vunpack.c.l.s4 1966171168
      %v1067 = vunpack.c.0.s8 %v1066
      %v1068 = vlaneseq
      %v1069 = vshrl.u32 %v1068, 7
      %v1070 = vsub.s32 %v1067, %v1069
      %v1071 = vrot.slane %v1055, %v1070
      %v1073 = vunpack.c.l.s4 1966171168
      %v1074 = vunpack.c.0.s8 %v1073
      %v1075 = vlaneseq
      %v1076 = vshrl.u32 %v1075, 7
      %v1077 = vsub.s32 %v1074, %v1076
      %v1078 = vrot.slane %v1056, %v1077
      %v1080 = vunpack.c.l.s4 1966171168
      %v1081 = vunpack.c.0.s8 %v1080
      %v1082 = vlaneseq
      %v1083 = vshrl.u32 %v1082, 7
      %v1084 = vsub.s32 %v1081, %v1083
      %v1085 = vrot.slane %v1057, %v1084
      %v1086 = vcombine.high %v1064, %v1064
      %v1087 = vcombine.high %v1071, %v1071
      %v1088 = vcombine.high %v1078, %v1078
      %v1089 = vcombine.high %v1085, %v1085
      %v1090 = vlaneseq
      %v1091 = vshrl.u32 %v1090, 7
      %v1092 = vsub.s32 0, %v1091
      %v1093 = vrot.slane %v917, %v1092
      %v1094 = vlaneseq
      %v1095 = vshrl.u32 %v1094, 7
      %v1096 = vsub.s32 0, %v1095
      %v1097 = vrot.slane %v931, %v1096
      %v1098 = vlaneseq
      %v1099 = vshrl.u32 %v1098, 7
      %v1100 = vsub.s32 0, %v1099
      %v1101 = vrot.slane %v939, %v1100
      %v1102 = vlaneseq
      %v1103 = vshrl.u32 %v1102, 7
      %v1104 = vsub.s32 0, %v1103
      %v1105 = vrot.slane %v941, %v1104
      %v1106 = vlaneseq
      %v1107 = vshrl.u32 %v1106, 7
      %v1108 = vsub.s32 0, %v1107
      %v1109 = vrot.slane %v924, %v1108
      %v1110 = vlaneseq
      %v1111 = vshrl.u32 %v1110, 7
      %v1112 = vsub.s32 0, %v1111
      %v1113 = vrot.slane %v938, %v1112
      %v1114 = vlaneseq
      %v1115 = vshrl.u32 %v1114, 7
      %v1116 = vsub.s32 0, %v1115
      %v1117 = vrot.slane %v940, %v1116
      %v1118 = vlaneseq
      %v1119 = vshrl.u32 %v1118, 7
      %v1120 = vsub.s32 0, %v1119
      %v1121 = vrot.slane %v942, %v1120
      %v1122 = vlaneseq
      %v1123 = vshrl.u32 %v1122, 7
      %v1124 = vsub.s32 0, %v1123
      %v1125 = vrot.slane %v966, %v1124
      %v1126 = vlaneseq
      %v1127 = vshrl.u32 %v1126, 7
      %v1128 = vsub.s32 0, %v1127
      %v1129 = vrot.slane %v980, %v1128
      %v1130 = vlaneseq
      %v1131 = vshrl.u32 %v1130, 7
      %v1132 = vsub.s32 0, %v1131
      %v1133 = vrot.slane %v988, %v1132
      %v1134 = vlaneseq
      %v1135 = vshrl.u32 %v1134, 7
      %v1136 = vsub.s32 0, %v1135
      %v1137 = vrot.slane %v990, %v1136
      %v1138 = vlaneseq
      %v1139 = vshrl.u32 %v1138, 7
      %v1140 = vsub.s32 0, %v1139
      %v1141 = vrot.slane %v973, %v1140
      %v1142 = vlaneseq
      %v1143 = vshrl.u32 %v1142, 7
      %v1144 = vsub.s32 0, %v1143
      %v1145 = vrot.slane %v987, %v1144
      %v1146 = vlaneseq
      %v1147 = vshrl.u32 %v1146, 7
      %v1148 = vsub.s32 0, %v1147
      %v1149 = vrot.slane %v989, %v1148
      %v1150 = vlaneseq
      %v1151 = vshrl.u32 %v1150, 7
      %v1152 = vsub.s32 0, %v1151
      %v1153 = vrot.slane %v991, %v1152
      %v1154 = vlaneseq
      %v1155 = vshrl.u32 %v1154, 7
      %v1156 = vsub.s32 0, %v1155
      %v1157 = vrot.slane %v1015, %v1156
      %v1158 = vlaneseq
      %v1159 = vshrl.u32 %v1158, 7
      %v1160 = vsub.s32 0, %v1159
      %v1161 = vrot.slane %v1029, %v1160
      %v1162 = vlaneseq
      %v1163 = vshrl.u32 %v1162, 7
      %v1164 = vsub.s32 0, %v1163
      %v1165 = vrot.slane %v1037, %v1164
      %v1166 = vlaneseq
      %v1167 = vshrl.u32 %v1166, 7
      %v1168 = vsub.s32 0, %v1167
      %v1169 = vrot.slane %v1039, %v1168
      %v1170 = vlaneseq
      %v1171 = vshrl.u32 %v1170, 7
      %v1172 = vsub.s32 0, %v1171
      %v1173 = vrot.slane %v1022, %v1172
      %v1174 = vlaneseq
      %v1175 = vshrl.u32 %v1174, 7
      %v1176 = vsub.s32 0, %v1175
      %v1177 = vrot.slane %v1036, %v1176
      %v1178 = vlaneseq
      %v1179 = vshrl.u32 %v1178, 7
      %v1180 = vsub.s32 0, %v1179
      %v1181 = vrot.slane %v1038, %v1180
      %v1182 = vlaneseq
      %v1183 = vshrl.u32 %v1182, 7
      %v1184 = vsub.s32 0, %v1183
      %v1185 = vrot.slane %v1040, %v1184
      %v1186 = vlaneseq
      %v1187 = vshrl.u32 %v1186, 7
      %v1188 = vsub.s32 0, %v1187
      %v1189 = vrot.slane %v1064, %v1188
      %v1190 = vlaneseq
      %v1191 = vshrl.u32 %v1190, 7
      %v1192 = vsub.s32 0, %v1191
      %v1193 = vrot.slane %v1078, %v1192
      %v1194 = vlaneseq
      %v1195 = vshrl.u32 %v1194, 7
      %v1196 = vsub.s32 0, %v1195
      %v1197 = vrot.slane %v1086, %v1196
      %v1198 = vlaneseq
      %v1199 = vshrl.u32 %v1198, 7
      %v1200 = vsub.s32 0, %v1199
      %v1201 = vrot.slane %v1088, %v1200
      %v1202 = vlaneseq
      %v1203 = vshrl.u32 %v1202, 7
      %v1204 = vsub.s32 0, %v1203
      %v1205 = vrot.slane %v1071, %v1204
      %v1206 = vlaneseq
      %v1207 = vshrl.u32 %v1206, 7
      %v1208 = vsub.s32 0, %v1207
      %v1209 = vrot.slane %v1085, %v1208
      %v1210 = vlaneseq
      %v1211 = vshrl.u32 %v1210, 7
      %v1212 = vsub.s32 0, %v1211
      %v1213 = vrot.slane %v1087, %v1212
      %v1214 = vlaneseq
      %v1215 = vshrl.u32 %v1214, 7
      %v1216 = vsub.s32 0, %v1215
      %v1217 = vrot.slane %v1089, %v1216
      %v1218 = vcombine.low %v1093, %v1097
      %v1219 = vcombine.low %v1101, %v1105
      %v1221 = vunpack.c.l.s4 1983009808
      %v1222 = vunpack.c.0.s8 %v1221
      %v1223 = vlaneseq
      %v1224 = vshrl.u32 %v1223, 7
      %v1225 = vsub.s32 %v1222, %v1224
      %v1226 = vrot.slane %v1218, %v1225
      %v1228 = vunpack.c.l.s4 1983009808
      %v1229 = vunpack.c.0.s8 %v1228
      %v1230 = vlaneseq
      %v1231 = vshrl.u32 %v1230, 7
      %v1232 = vsub.s32 %v1229, %v1231
      %v1233 = vrot.slane %v1219, %v1232
      %v1234 = vcombine.low %v1226, %v1233
      %v1235 = vcombine.low %v1109, %v1113
      %v1236 = vcombine.low %v1117, %v1121
      %v1238 = vunpack.c.l.s4 1983009808
      %v1239 = vunpack.c.0.s8 %v1238
      %v1240 = vlaneseq
      %v1241 = vshrl.u32 %v1240, 7
      %v1242 = vsub.s32 %v1239, %v1241
      %v1243 = vrot.slane %v1235, %v1242
      %v1245 = vunpack.c.l.s4 1983009808
      %v1246 = vunpack.c.0.s8 %v1245
      %v1247 = vlaneseq
      %v1248 = vshrl.u32 %v1247, 7
      %v1249 = vsub.s32 %v1246, %v1248
      %v1250 = vrot.slane %v1236, %v1249
      %v1251 = vcombine.low %v1243, %v1250
      %v1252 = vcombine.low %v1125, %v1129
      %v1253 = vcombine.low %v1133, %v1137
      %v1255 = vunpack.c.l.s4 1983009808
      %v1256 = vunpack.c.0.s8 %v1255
      %v1257 = vlaneseq
      %v1258 = vshrl.u32 %v1257, 7
      %v1259 = vsub.s32 %v1256, %v1258
      %v1260 = vrot.slane %v1252, %v1259
      %v1262 = vunpack.c.l.s4 1983009808
      %v1263 = vunpack.c.0.s8 %v1262
      %v1264 = vlaneseq
      %v1265 = vshrl.u32 %v1264, 7
      %v1266 = vsub.s32 %v1263, %v1265
      %v1267 = vrot.slane %v1253, %v1266
      %v1268 = vcombine.low %v1260, %v1267
      %v1269 = vcombine.low %v1141, %v1145
      %v1270 = vcombine.low %v1149, %v1153
      %v1272 = vunpack.c.l.s4 1983009808
      %v1273 = vunpack.c.0.s8 %v1272
      %v1274 = vlaneseq
      %v1275 = vshrl.u32 %v1274, 7
      %v1276 = vsub.s32 %v1273, %v1275
      %v1277 = vrot.slane %v1269, %v1276
      %v1279 = vunpack.c.l.s4 1983009808
      %v1280 = vunpack.c.0.s8 %v1279
      %v1281 = vlaneseq
      %v1282 = vshrl.u32 %v1281, 7
      %v1283 = vsub.s32 %v1280, %v1282
      %v1284 = vrot.slane %v1270, %v1283
      %v1285 = vcombine.low %v1277, %v1284
      %v1286 = vcombine.low %v1157, %v1161
      %v1287 = vcombine.low %v1165, %v1169
      %v1289 = vunpack.c.l.s4 1983009808
      %v1290 = vunpack.c.0.s8 %v1289
      %v1291 = vlaneseq
      %v1292 = vshrl.u32 %v1291, 7
      %v1293 = vsub.s32 %v1290, %v1292
      %v1294 = vrot.slane %v1286, %v1293
      %v1296 = vunpack.c.l.s4 1983009808
      %v1297 = vunpack.c.0.s8 %v1296
      %v1298 = vlaneseq
      %v1299 = vshrl.u32 %v1298, 7
      %v1300 = vsub.s32 %v1297, %v1299
      %v1301 = vrot.slane %v1287, %v1300
      %v1302 = vcombine.low %v1294, %v1301
      %v1303 = vcombine.low %v1173, %v1177
      %v1304 = vcombine.low %v1181, %v1185
      %v1306 = vunpack.c.l.s4 1983009808
      %v1307 = vunpack.c.0.s8 %v1306
      %v1308 = vlaneseq
      %v1309 = vshrl.u32 %v1308, 7
      %v1310 = vsub.s32 %v1307, %v1309
      %v1311 = vrot.slane %v1303, %v1310
      %v1313 = vunpack.c.l.s4 1983009808
      %v1314 = vunpack.c.0.s8 %v1313
      %v1315 = vlaneseq
      %v1316 = vshrl.u32 %v1315, 7
      %v1317 = vsub.s32 %v1314, %v1316
      %v1318 = vrot.slane %v1304, %v1317
      %v1319 = vcombine.low %v1311, %v1318
      %v1320 = vcombine.low %v1189, %v1193
      %v1321 = vcombine.low %v1197, %v1201
      %v1323 = vunpack.c.l.s4 1983009808
      %v1324 = vunpack.c.0.s8 %v1323
      %v1325 = vlaneseq
      %v1326 = vshrl.u32 %v1325, 7
      %v1327 = vsub.s32 %v1324, %v1326
      %v1328 = vrot.slane %v1320, %v1327
      %v1330 = vunpack.c.l.s4 1983009808
      %v1331 = vunpack.c.0.s8 %v1330
      %v1332 = vlaneseq
      %v1333 = vshrl.u32 %v1332, 7
      %v1334 = vsub.s32 %v1331, %v1333
      %v1335 = vrot.slane %v1321, %v1334
      %v1336 = vcombine.low %v1328, %v1335
      %v1337 = vcombine.low %v1205, %v1209
      %v1338 = vcombine.low %v1213, %v1217
      %v1340 = vunpack.c.l.s4 1983009808
      %v1341 = vunpack.c.0.s8 %v1340
      %v1342 = vlaneseq
      %v1343 = vshrl.u32 %v1342, 7
      %v1344 = vsub.s32 %v1341, %v1343
      %v1345 = vrot.slane %v1337, %v1344
      %v1347 = vunpack.c.l.s4 1983009808
      %v1348 = vunpack.c.0.s8 %v1347
      %v1349 = vlaneseq
      %v1350 = vshrl.u32 %v1349, 7
      %v1351 = vsub.s32 %v1348, %v1350
      %v1352 = vrot.slane %v1338, %v1351
      %v1353 = vcombine.low %v1345, %v1352
      %v1362 = vpack.c.bf16 %v1251, %v1234
      %v1363 = vpack.c.bf16 %v1285, %v1268
      %v1364 = vpack.c.bf16 %v1319, %v1302
      %v1365 = vpack.c.bf16 %v1353, %v1336
      %1366 = vst [vmem:[#allocation2 + $0x48] sm:$0xff] %v1362
      %1367 = vst [vmem:[#allocation2 + $0x98] sm:$0xff] %v1362
      %1368 = vst [vmem:[#allocation2 + $0xe8] sm:$0xff] %v1363
      %1369 = vst [vmem:[#allocation2 + $0x138] sm:$0xff] %v1363
      %1370 = vst [vmem:[#allocation2 + $0x188] sm:$0xff] %v1364
      %1371 = vst [vmem:[#allocation2 + $0x1d8] sm:$0xff] %v1364
      %1372 = vst [vmem:[#allocation2 + $0x228] sm:$0xff] %v1365
      %1373 = vst [vmem:[#allocation2 + $0x278] sm:$0xff] %v1365
      %v1374 = vld [vmem:[#allocation2] sm:$0xff]
      %v1375 = vld [vmem:[#allocation2 + $0x8] sm:$0xff]
      %v1376 = vld [vmem:[#allocation2 + $0x10] sm:$0xff]
      %v1377 = vld [vmem:[#allocation2 + $0x18] sm:$0xff]
      %v1378 = vld [vmem:[#allocation2 + $0x20] sm:$0xff]
      %v1379 = vld [vmem:[#allocation2 + $0x28] sm:$0xff]
      %v1380 = vld [vmem:[#allocation2 + $0x30] sm:$0xff]
      %v1381 = vld [vmem:[#allocation2 + $0x38] sm:$0xff]
      %v1382 = vld [vmem:[#allocation2 + $0x40] sm:$0xff]
      %v1383 = vld [vmem:[#allocation2 + $0x48] sm:$0xff]
      %v1384 = vld [vmem:[#allocation2 + $0x50] sm:$0xff]
      %v1385 = vld [vmem:[#allocation2 + $0x58] sm:$0xff]
      %v1386 = vld [vmem:[#allocation2 + $0x60] sm:$0xff]
      %v1387 = vld [vmem:[#allocation2 + $0x68] sm:$0xff]
      %v1388 = vld [vmem:[#allocation2 + $0x70] sm:$0xff]
      %v1389 = vld [vmem:[#allocation2 + $0x78] sm:$0xff]
      %v1390 = vld [vmem:[#allocation2 + $0x80] sm:$0xff]
      %v1391 = vld [vmem:[#allocation2 + $0x88] sm:$0xff]
      %v1392 = vld [vmem:[#allocation2 + $0x90] sm:$0xff]
      %v1393 = vld [vmem:[#allocation2 + $0x98] sm:$0xff]
      %v1394 = vld [vmem:[#allocation2 + $0xa0] sm:$0xff]
      %v1395 = vld [vmem:[#allocation2 + $0xa8] sm:$0xff]
      %v1396 = vld [vmem:[#allocation2 + $0xb0] sm:$0xff]
      %v1397 = vld [vmem:[#allocation2 + $0xb8] sm:$0xff]
      %v1398 = vld [vmem:[#allocation2 + $0xc0] sm:$0xff]
      %v1399 = vld [vmem:[#allocation2 + $0xc8] sm:$0xff]
      %v1400 = vld [vmem:[#allocation2 + $0xd0] sm:$0xff]
      %v1401 = vld [vmem:[#allocation2 + $0xd8] sm:$0xff]
      %v1402 = vld [vmem:[#allocation2 + $0xe0] sm:$0xff]
      %v1403 = vld [vmem:[#allocation2 + $0xe8] sm:$0xff]
      %v1404 = vld [vmem:[#allocation2 + $0xf0] sm:$0xff]
      %v1405 = vld [vmem:[#allocation2 + $0xf8] sm:$0xff]
      %v1406 = vld [vmem:[#allocation2 + $0x100] sm:$0xff]
      %v1407 = vld [vmem:[#allocation2 + $0x108] sm:$0xff]
      %v1408 = vld [vmem:[#allocation2 + $0x110] sm:$0xff]
      %v1409 = vld [vmem:[#allocation2 + $0x118] sm:$0xff]
      %v1410 = vld [vmem:[#allocation2 + $0x120] sm:$0xff]
      %v1411 = vld [vmem:[#allocation2 + $0x128] sm:$0xff]
      %v1412 = vld [vmem:[#allocation2 + $0x130] sm:$0xff]
      %v1413 = vld [vmem:[#allocation2 + $0x138] sm:$0xff]
      %v1414 = vld [vmem:[#allocation2 + $0x140] sm:$0xff]
      %v1415 = vld [vmem:[#allocation2 + $0x148] sm:$0xff]
      %v1416 = vld [vmem:[#allocation2 + $0x150] sm:$0xff]
      %v1417 = vld [vmem:[#allocation2 + $0x158] sm:$0xff]
      %v1418 = vld [vmem:[#allocation2 + $0x160] sm:$0xff]
      %v1419 = vld [vmem:[#allocation2 + $0x168] sm:$0xff]
      %v1420 = vld [vmem:[#allocation2 + $0x170] sm:$0xff]
      %v1421 = vld [vmem:[#allocation2 + $0x178] sm:$0xff]
      %v1422 = vld [vmem:[#allocation2 + $0x180] sm:$0xff]
      %v1423 = vld [vmem:[#allocation2 + $0x188] sm:$0xff]
      %v1424 = vld [vmem:[#allocation2 + $0x190] sm:$0xff]
      %v1425 = vld [vmem:[#allocation2 + $0x198] sm:$0xff]
      %v1426 = vld [vmem:[#allocation2 + $0x1a0] sm:$0xff]
      %v1427 = vld [vmem:[#allocation2 + $0x1a8] sm:$0xff]
      %v1428 = vld [vmem:[#allocation2 + $0x1b0] sm:$0xff]
      %v1429 = vld [vmem:[#allocation2 + $0x1b8] sm:$0xff]
      %v1430 = vld [vmem:[#allocation2 + $0x1c0] sm:$0xff]
      %v1431 = vld [vmem:[#allocation2 + $0x1c8] sm:$0xff]
      %v1432 = vld [vmem:[#allocation2 + $0x1d0] sm:$0xff]
      %v1433 = vld [vmem:[#allocation2 + $0x1d8] sm:$0xff]
      %v1434 = vld [vmem:[#allocation2 + $0x1e0] sm:$0xff]
      %v1435 = vld [vmem:[#allocation2 + $0x1e8] sm:$0xff]
      %v1436 = vld [vmem:[#allocation2 + $0x1f0] sm:$0xff]
      %v1437 = vld [vmem:[#allocation2 + $0x1f8] sm:$0xff]
      %v1438 = vld [vmem:[#allocation2 + $0x200] sm:$0xff]
      %v1439 = vld [vmem:[#allocation2 + $0x208] sm:$0xff]
      %v1440 = vld [vmem:[#allocation2 + $0x210] sm:$0xff]
      %v1441 = vld [vmem:[#allocation2 + $0x218] sm:$0xff]
      %v1442 = vld [vmem:[#allocation2 + $0x220] sm:$0xff]
      %v1443 = vld [vmem:[#allocation2 + $0x228] sm:$0xff]
      %v1444 = vld [vmem:[#allocation2 + $0x230] sm:$0xff]
      %v1445 = vld [vmem:[#allocation2 + $0x238] sm:$0xff]
      %v1446 = vld [vmem:[#allocation2 + $0x240] sm:$0xff]
      %v1447 = vld [vmem:[#allocation2 + $0x248] sm:$0xff]
      %v1448 = vld [vmem:[#allocation2 + $0x250] sm:$0xff]
      %v1449 = vld [vmem:[#allocation2 + $0x258] sm:$0xff]
      %v1450 = vld [vmem:[#allocation2 + $0x260] sm:$0xff]
      %v1451 = vld [vmem:[#allocation2 + $0x268] sm:$0xff]
      %v1452 = vld [vmem:[#allocation2 + $0x270] sm:$0xff]
      %v1453 = vld [vmem:[#allocation2 + $0x278] sm:$0xff]
      %v1454 = vld [vmem:[%s4] sm:$0xf]
      %v1455 = vld [vmem:[%s4 + $0x4] sm:$0xf]
      %v1456 = vld [vmem:[%s4 + $0x8] sm:$0xf]
      %v1457 = vld [vmem:[%s4 + $0xc] sm:$0xf]
      %v1458 = vld [vmem:[%s4 + $0x10] sm:$0xf]
      %v1459 = vld [vmem:[%s4 + $0x14] sm:$0xf]
      %v1460 = vld [vmem:[%s4 + $0x18] sm:$0xf]
      %v1461 = vld [vmem:[%s4 + $0x1c] sm:$0xf]
      %v1462 = vld [vmem:[%s4 + $0x20] sm:$0xf]
      %v1463 = vld [vmem:[%s4 + $0x24] sm:$0xf]
      %v1464 = vld [vmem:[%s4 + $0x28] sm:$0xf]
      %v1465 = vld [vmem:[%s4 + $0x2c] sm:$0xf]
      %v1466 = vld [vmem:[%s4 + $0x30] sm:$0xf]
      %v1467 = vld [vmem:[%s4 + $0x34] sm:$0xf]
      %v1468 = vld [vmem:[%s4 + $0x38] sm:$0xf]
      %v1469 = vld [vmem:[%s4 + $0x3c] sm:$0xf]
      %v1470 = vld [vmem:[%s4 + $0x40] sm:$0xf]
      %v1471 = vld [vmem:[%s4 + $0x44] sm:$0xf]
      %v1472 = vld [vmem:[%s4 + $0x48] sm:$0xf]
      %v1473 = vld [vmem:[%s4 + $0x4c] sm:$0xf]
      %v1474 = vld [vmem:[%s4 + $0x50] sm:$0xf]
      %v1475 = vld [vmem:[%s4 + $0x54] sm:$0xf]
      %v1476 = vld [vmem:[%s4 + $0x58] sm:$0xf]
      %v1477 = vld [vmem:[%s4 + $0x5c] sm:$0xf]
      %v1478 = vld [vmem:[%s4 + $0x60] sm:$0xf]
      %v1479 = vld [vmem:[%s4 + $0x64] sm:$0xf]
      %v1480 = vld [vmem:[%s4 + $0x68] sm:$0xf]
      %v1481 = vld [vmem:[%s4 + $0x6c] sm:$0xf]
      %v1482 = vld [vmem:[%s4 + $0x70] sm:$0xf]
      %v1483 = vld [vmem:[%s4 + $0x74] sm:$0xf]
      %v1484 = vld [vmem:[%s4 + $0x78] sm:$0xf]
      %v1485 = vld [vmem:[%s4 + $0x7c] sm:$0xf]
      %v1486 = vld [vmem:[%s4 + $0x80] sm:$0xf]
      %v1487 = vld [vmem:[%s4 + $0x84] sm:$0xf]
      %v1488 = vld [vmem:[%s4 + $0x88] sm:$0xf]
      %v1489 = vld [vmem:[%s4 + $0x8c] sm:$0xf]
      %v1490 = vld [vmem:[%s4 + $0x90] sm:$0xf]
      %v1491 = vld [vmem:[%s4 + $0x94] sm:$0xf]
      %v1492 = vld [vmem:[%s4 + $0x98] sm:$0xf]
      %v1493 = vld [vmem:[%s4 + $0x9c] sm:$0xf]
      %v1494 = vld [vmem:[%s4 + $0xa0] sm:$0xf]
      %v1495 = vld [vmem:[%s4 + $0xa4] sm:$0xf]
      %v1496 = vld [vmem:[%s4 + $0xa8] sm:$0xf]
      %v1497 = vld [vmem:[%s4 + $0xac] sm:$0xf]
      %v1498 = vld [vmem:[%s4 + $0xb0] sm:$0xf]
      %v1499 = vld [vmem:[%s4 + $0xb4] sm:$0xf]
      %v1500 = vld [vmem:[%s4 + $0xb8] sm:$0xf]
      %v1501 = vld [vmem:[%s4 + $0xbc] sm:$0xf]
      %v1502 = vld [vmem:[%s4 + $0xc0] sm:$0xf]
      %v1503 = vld [vmem:[%s4 + $0xc4] sm:$0xf]
      %v1504 = vld [vmem:[%s4 + $0xc8] sm:$0xf]
      %v1505 = vld [vmem:[%s4 + $0xcc] sm:$0xf]
      %v1506 = vld [vmem:[%s4 + $0xd0] sm:$0xf]
      %v1507 = vld [vmem:[%s4 + $0xd4] sm:$0xf]
      %v1508 = vld [vmem:[%s4 + $0xd8] sm:$0xf]
      %v1509 = vld [vmem:[%s4 + $0xdc] sm:$0xf]
      %v1510 = vld [vmem:[%s4 + $0xe0] sm:$0xf]
      %v1511 = vld [vmem:[%s4 + $0xe4] sm:$0xf]
      %v1512 = vld [vmem:[%s4 + $0xe8] sm:$0xf]
      %v1513 = vld [vmem:[%s4 + $0xec] sm:$0xf]
      %v1514 = vld [vmem:[%s4 + $0xf0] sm:$0xf]
      %v1515 = vld [vmem:[%s4 + $0xf4] sm:$0xf]
      %v1516 = vld [vmem:[%s4 + $0xf8] sm:$0xf]
      %v1517 = vld [vmem:[%s4 + $0xfc] sm:$0xf]
      %v1518 = vld [vmem:[%s4 + $0x100] sm:$0xf]
      %v1519 = vld [vmem:[%s4 + $0x104] sm:$0xf]
      %v1520 = vld [vmem:[%s4 + $0x108] sm:$0xf]
      %v1521 = vld [vmem:[%s4 + $0x10c] sm:$0xf]
      %v1522 = vld [vmem:[%s4 + $0x110] sm:$0xf]
      %v1523 = vld [vmem:[%s4 + $0x114] sm:$0xf]
      %v1524 = vld [vmem:[%s4 + $0x118] sm:$0xf]
      %v1525 = vld [vmem:[%s4 + $0x11c] sm:$0xf]
      %v1526 = vld [vmem:[%s4 + $0x120] sm:$0xf]
      %v1527 = vld [vmem:[%s4 + $0x124] sm:$0xf]
      %v1528 = vld [vmem:[%s4 + $0x128] sm:$0xf]
      %v1529 = vld [vmem:[%s4 + $0x12c] sm:$0xf]
      %v1530 = vld [vmem:[%s4 + $0x130] sm:$0xf]
      %v1531 = vld [vmem:[%s4 + $0x134] sm:$0xf]
      %v1532 = vld [vmem:[%s4 + $0x138] sm:$0xf]
      %v1533 = vld [vmem:[%s4 + $0x13c] sm:$0xf]
      %v1534 = vld [vmem:[%s4 + $0x140] sm:$0xf]
      %v1535 = vld [vmem:[%s4 + $0x144] sm:$0xf]
      %v1536 = vld [vmem:[%s4 + $0x148] sm:$0xf]
      %v1537 = vld [vmem:[%s4 + $0x14c] sm:$0xf]
      %v1538 = vld [vmem:[%s4 + $0x150] sm:$0xf]
      %v1539 = vld [vmem:[%s4 + $0x154] sm:$0xf]
      %v1540 = vld [vmem:[%s4 + $0x158] sm:$0xf]
      %v1541 = vld [vmem:[%s4 + $0x15c] sm:$0xf]
      %v1542 = vld [vmem:[%s4 + $0x160] sm:$0xf]
      %v1543 = vld [vmem:[%s4 + $0x164] sm:$0xf]
      %v1544 = vld [vmem:[%s4 + $0x168] sm:$0xf]
      %v1545 = vld [vmem:[%s4 + $0x16c] sm:$0xf]
      %v1546 = vld [vmem:[%s4 + $0x170] sm:$0xf]
      %v1547 = vld [vmem:[%s4 + $0x174] sm:$0xf]
      %v1548 = vld [vmem:[%s4 + $0x178] sm:$0xf]
      %v1549 = vld [vmem:[%s4 + $0x17c] sm:$0xf]
      %v1550 = vld [vmem:[%s4 + $0x180] sm:$0xf]
      %v1551 = vld [vmem:[%s4 + $0x184] sm:$0xf]
      %v1552 = vld [vmem:[%s4 + $0x188] sm:$0xf]
      %v1553 = vld [vmem:[%s4 + $0x18c] sm:$0xf]
      %v1554 = vld [vmem:[%s4 + $0x190] sm:$0xf]
      %v1555 = vld [vmem:[%s4 + $0x194] sm:$0xf]
      %v1556 = vld [vmem:[%s4 + $0x198] sm:$0xf]
      %v1557 = vld [vmem:[%s4 + $0x19c] sm:$0xf]
      %v1558 = vld [vmem:[%s4 + $0x1a0] sm:$0xf]
      %v1559 = vld [vmem:[%s4 + $0x1a4] sm:$0xf]
      %v1560 = vld [vmem:[%s4 + $0x1a8] sm:$0xf]
      %v1561 = vld [vmem:[%s4 + $0x1ac] sm:$0xf]
      %v1562 = vld [vmem:[%s4 + $0x1b0] sm:$0xf]
      %v1563 = vld [vmem:[%s4 + $0x1b4] sm:$0xf]
      %v1564 = vld [vmem:[%s4 + $0x1b8] sm:$0xf]
      %v1565 = vld [vmem:[%s4 + $0x1bc] sm:$0xf]
      %v1566 = vld [vmem:[%s4 + $0x1c0] sm:$0xf]
      %v1567 = vld [vmem:[%s4 + $0x1c4] sm:$0xf]
      %v1568 = vld [vmem:[%s4 + $0x1c8] sm:$0xf]
      %v1569 = vld [vmem:[%s4 + $0x1cc] sm:$0xf]
      %v1570 = vld [vmem:[%s4 + $0x1d0] sm:$0xf]
      %v1571 = vld [vmem:[%s4 + $0x1d4] sm:$0xf]
      %v1572 = vld [vmem:[%s4 + $0x1d8] sm:$0xf]
      %v1573 = vld [vmem:[%s4 + $0x1dc] sm:$0xf]
      %v1574 = vld [vmem:[%s4 + $0x1e0] sm:$0xf]
      %v1575 = vld [vmem:[%s4 + $0x1e4] sm:$0xf]
      %v1576 = vld [vmem:[%s4 + $0x1e8] sm:$0xf]
      %v1577 = vld [vmem:[%s4 + $0x1ec] sm:$0xf]
      %v1578 = vld [vmem:[%s4 + $0x1f0] sm:$0xf]
      %v1579 = vld [vmem:[%s4 + $0x1f4] sm:$0xf]
      %v1580 = vld [vmem:[%s4 + $0x1f8] sm:$0xf]
      %v1581 = vld [vmem:[%s4 + $0x1fc] sm:$0xf]
      %v1582 = vld [vmem:[%s4 + $0x200] sm:$0xf]
      %v1583 = vld [vmem:[%s4 + $0x204] sm:$0xf]
      %v1584 = vld [vmem:[%s4 + $0x208] sm:$0xf]
      %v1585 = vld [vmem:[%s4 + $0x20c] sm:$0xf]
      %v1586 = vld [vmem:[%s4 + $0x210] sm:$0xf]
      %v1587 = vld [vmem:[%s4 + $0x214] sm:$0xf]
      %v1588 = vld [vmem:[%s4 + $0x218] sm:$0xf]
      %v1589 = vld [vmem:[%s4 + $0x21c] sm:$0xf]
      %v1590 = vld [vmem:[%s4 + $0x220] sm:$0xf]
      %v1591 = vld [vmem:[%s4 + $0x224] sm:$0xf]
      %v1592 = vld [vmem:[%s4 + $0x228] sm:$0xf]
      %v1593 = vld [vmem:[%s4 + $0x22c] sm:$0xf]
      %v1594 = vld [vmem:[%s4 + $0x230] sm:$0xf]
      %v1595 = vld [vmem:[%s4 + $0x234] sm:$0xf]
      %v1596 = vld [vmem:[%s4 + $0x238] sm:$0xf]
      %v1597 = vld [vmem:[%s4 + $0x23c] sm:$0xf]
      %v1598 = vld [vmem:[%s4 + $0x240] sm:$0xf]
      %v1599 = vld [vmem:[%s4 + $0x244] sm:$0xf]
      %v1600 = vld [vmem:[%s4 + $0x248] sm:$0xf]
      %v1601 = vld [vmem:[%s4 + $0x24c] sm:$0xf]
      %v1602 = vld [vmem:[%s4 + $0x250] sm:$0xf]
      %v1603 = vld [vmem:[%s4 + $0x254] sm:$0xf]
      %v1604 = vld [vmem:[%s4 + $0x258] sm:$0xf]
      %v1605 = vld [vmem:[%s4 + $0x25c] sm:$0xf]
      %v1606 = vld [vmem:[%s4 + $0x260] sm:$0xf]
      %v1607 = vld [vmem:[%s4 + $0x264] sm:$0xf]
      %v1608 = vld [vmem:[%s4 + $0x268] sm:$0xf]
      %v1609 = vld [vmem:[%s4 + $0x26c] sm:$0xf]
      %v1610 = vld [vmem:[%s4 + $0x270] sm:$0xf]
      %v1611 = vld [vmem:[%s4 + $0x274] sm:$0xf]
      %v1612 = vld [vmem:[%s4 + $0x278] sm:$0xf]
      %v1613 = vld [vmem:[%s4 + $0x27c] sm:$0xf]
      %v1614 = vld [vmem:[%s5] sm:$0x1]
      %v1616 = vlaneseq
      %v1617 = vshrl.u32 %v1616, 7
      %v1618 = vsub.s32 0, %v1617
      %v1619 = vrot.slane %v1614, %v1618
      %v1781 = vunpack.c.l.b16 %v1454
      %v1782 = vunpack.c.l.b16 %v1455
      %v1783 = vunpack.c.l.b16 %v1456
      %v1784 = vunpack.c.l.b16 %v1457
      %v1785 = vunpack.c.l.b16 %v1458
      %v1786 = vunpack.c.l.b16 %v1459
      %v1787 = vunpack.c.l.b16 %v1460
      %v1788 = vunpack.c.l.b16 %v1461
      %v1789 = vunpack.c.l.b16 %v1462
      %v1790 = vunpack.c.l.b16 %v1463
      %v1791 = vunpack.c.l.b16 %v1464
      %v1792 = vunpack.c.l.b16 %v1465
      %v1793 = vunpack.c.l.b16 %v1466
      %v1794 = vunpack.c.l.b16 %v1467
      %v1795 = vunpack.c.l.b16 %v1468
      %v1796 = vunpack.c.l.b16 %v1469
      %v1797 = vunpack.c.l.b16 %v1470
      %v1798 = vunpack.c.l.b16 %v1471
      %v1799 = vunpack.c.l.b16 %v1472
      %v1800 = vunpack.c.l.b16 %v1473
      %v1801 = vunpack.c.l.b16 %v1474
      %v1802 = vunpack.c.l.b16 %v1475
      %v1803 = vunpack.c.l.b16 %v1476
      %v1804 = vunpack.c.l.b16 %v1477
      %v1805 = vunpack.c.l.b16 %v1478
      %v1806 = vunpack.c.l.b16 %v1479
      %v1807 = vunpack.c.l.b16 %v1480
      %v1808 = vunpack.c.l.b16 %v1481
      %v1809 = vunpack.c.l.b16 %v1482
      %v1810 = vunpack.c.l.b16 %v1483
      %v1811 = vunpack.c.l.b16 %v1484
      %v1812 = vunpack.c.l.b16 %v1485
      %v1813 = vunpack.c.l.b16 %v1486
      %v1814 = vunpack.c.l.b16 %v1487
      %v1815 = vunpack.c.l.b16 %v1488
      %v1816 = vunpack.c.l.b16 %v1489
      %v1817 = vunpack.c.l.b16 %v1490
      %v1818 = vunpack.c.l.b16 %v1491
      %v1819 = vunpack.c.l.b16 %v1492
      %v1820 = vunpack.c.l.b16 %v1493
      %v1821 = vunpack.c.l.b16 %v1494
      %v1822 = vunpack.c.l.b16 %v1495
      %v1823 = vunpack.c.l.b16 %v1496
      %v1824 = vunpack.c.l.b16 %v1497
      %v1825 = vunpack.c.l.b16 %v1498
      %v1826 = vunpack.c.l.b16 %v1499
      %v1827 = vunpack.c.l.b16 %v1500
      %v1828 = vunpack.c.l.b16 %v1501
      %v1829 = vunpack.c.l.b16 %v1502
      %v1830 = vunpack.c.l.b16 %v1503
      %v1831 = vunpack.c.l.b16 %v1504
      %v1832 = vunpack.c.l.b16 %v1505
      %v1833 = vunpack.c.l.b16 %v1506
      %v1834 = vunpack.c.l.b16 %v1507
      %v1835 = vunpack.c.l.b16 %v1508
      %v1836 = vunpack.c.l.b16 %v1509
      %v1837 = vunpack.c.l.b16 %v1510
      %v1838 = vunpack.c.l.b16 %v1511
      %v1839 = vunpack.c.l.b16 %v1512
      %v1840 = vunpack.c.l.b16 %v1513
      %v1841 = vunpack.c.l.b16 %v1514
      %v1842 = vunpack.c.l.b16 %v1515
      %v1843 = vunpack.c.l.b16 %v1516
      %v1844 = vunpack.c.l.b16 %v1517
      %v1845 = vunpack.c.l.b16 %v1518
      %v1846 = vunpack.c.l.b16 %v1519
      %v1847 = vunpack.c.l.b16 %v1520
      %v1848 = vunpack.c.l.b16 %v1521
      %v1849 = vunpack.c.l.b16 %v1522
      %v1850 = vunpack.c.l.b16 %v1523
      %v1851 = vunpack.c.l.b16 %v1524
      %v1852 = vunpack.c.l.b16 %v1525
      %v1853 = vunpack.c.l.b16 %v1526
      %v1854 = vunpack.c.l.b16 %v1527
      %v1855 = vunpack.c.l.b16 %v1528
      %v1856 = vunpack.c.l.b16 %v1529
      %v1857 = vunpack.c.l.b16 %v1530
      %v1858 = vunpack.c.l.b16 %v1531
      %v1859 = vunpack.c.l.b16 %v1532
      %v1860 = vunpack.c.l.b16 %v1533
      %v1861 = vunpack.c.l.b16 %v1534
      %v1862 = vunpack.c.l.b16 %v1535
      %v1863 = vunpack.c.l.b16 %v1536
      %v1864 = vunpack.c.l.b16 %v1537
      %v1865 = vunpack.c.l.b16 %v1538
      %v1866 = vunpack.c.l.b16 %v1539
      %v1867 = vunpack.c.l.b16 %v1540
      %v1868 = vunpack.c.l.b16 %v1541
      %v1869 = vunpack.c.l.b16 %v1542
      %v1870 = vunpack.c.l.b16 %v1543
      %v1871 = vunpack.c.l.b16 %v1544
      %v1872 = vunpack.c.l.b16 %v1545
      %v1873 = vunpack.c.l.b16 %v1546
      %v1874 = vunpack.c.l.b16 %v1547
      %v1875 = vunpack.c.l.b16 %v1548
      %v1876 = vunpack.c.l.b16 %v1549
      %v1877 = vunpack.c.l.b16 %v1550
      %v1878 = vunpack.c.l.b16 %v1551
      %v1879 = vunpack.c.l.b16 %v1552
      %v1880 = vunpack.c.l.b16 %v1553
      %v1881 = vunpack.c.l.b16 %v1554
      %v1882 = vunpack.c.l.b16 %v1555
      %v1883 = vunpack.c.l.b16 %v1556
      %v1884 = vunpack.c.l.b16 %v1557
      %v1885 = vunpack.c.l.b16 %v1558
      %v1886 = vunpack.c.l.b16 %v1559
      %v1887 = vunpack.c.l.b16 %v1560
      %v1888 = vunpack.c.l.b16 %v1561
      %v1889 = vunpack.c.l.b16 %v1562
      %v1890 = vunpack.c.l.b16 %v1563
      %v1891 = vunpack.c.l.b16 %v1564
      %v1892 = vunpack.c.l.b16 %v1565
      %v1893 = vunpack.c.l.b16 %v1566
      %v1894 = vunpack.c.l.b16 %v1567
      %v1895 = vunpack.c.l.b16 %v1568
      %v1896 = vunpack.c.l.b16 %v1569
      %v1897 = vunpack.c.l.b16 %v1570
      %v1898 = vunpack.c.l.b16 %v1571
      %v1899 = vunpack.c.l.b16 %v1572
      %v1900 = vunpack.c.l.b16 %v1573
      %v1901 = vunpack.c.l.b16 %v1574
      %v1902 = vunpack.c.l.b16 %v1575
      %v1903 = vunpack.c.l.b16 %v1576
      %v1904 = vunpack.c.l.b16 %v1577
      %v1905 = vunpack.c.l.b16 %v1578
      %v1906 = vunpack.c.l.b16 %v1579
      %v1907 = vunpack.c.l.b16 %v1580
      %v1908 = vunpack.c.l.b16 %v1581
      %v1909 = vunpack.c.l.b16 %v1582
      %v1910 = vunpack.c.l.b16 %v1583
      %v1911 = vunpack.c.l.b16 %v1584
      %v1912 = vunpack.c.l.b16 %v1585
      %v1913 = vunpack.c.l.b16 %v1586
      %v1914 = vunpack.c.l.b16 %v1587
      %v1915 = vunpack.c.l.b16 %v1588
      %v1916 = vunpack.c.l.b16 %v1589
      %v1917 = vunpack.c.l.b16 %v1590
      %v1918 = vunpack.c.l.b16 %v1591
      %v1919 = vunpack.c.l.b16 %v1592
      %v1920 = vunpack.c.l.b16 %v1593
      %v1921 = vunpack.c.l.b16 %v1594
      %v1922 = vunpack.c.l.b16 %v1595
      %v1923 = vunpack.c.l.b16 %v1596
      %v1924 = vunpack.c.l.b16 %v1597
      %v1925 = vunpack.c.l.b16 %v1598
      %v1926 = vunpack.c.l.b16 %v1599
      %v1927 = vunpack.c.l.b16 %v1600
      %v1928 = vunpack.c.l.b16 %v1601
      %v1929 = vunpack.c.l.b16 %v1602
      %v1930 = vunpack.c.l.b16 %v1603
      %v1931 = vunpack.c.l.b16 %v1604
      %v1932 = vunpack.c.l.b16 %v1605
      %v1933 = vunpack.c.l.b16 %v1606
      %v1934 = vunpack.c.l.b16 %v1607
      %v1935 = vunpack.c.l.b16 %v1608
      %v1936 = vunpack.c.l.b16 %v1609
      %v1937 = vunpack.c.l.b16 %v1610
      %v1938 = vunpack.c.l.b16 %v1611
      %v1939 = vunpack.c.l.b16 %v1612
      %v1940 = vunpack.c.l.b16 %v1613
      %v1941 = vpack.c.b16 %v1782, %v1781
      %v1942 = vpack.c.b16 %v1784, %v1783
      %v1943 = vpack.c.b16 %v1786, %v1785
      %v1944 = vpack.c.b16 %v1788, %v1787
      %v1945 = vpack.c.b16 %v1790, %v1789
      %v1946 = vpack.c.b16 %v1792, %v1791
      %v1947 = vpack.c.b16 %v1794, %v1793
      %v1948 = vpack.c.b16 %v1796, %v1795
      %v1949 = vpack.c.b16 %v1798, %v1797
      %v1950 = vpack.c.b16 %v1800, %v1799
      %v1951 = vpack.c.b16 %v1802, %v1801
      %v1952 = vpack.c.b16 %v1804, %v1803
      %v1953 = vpack.c.b16 %v1806, %v1805
      %v1954 = vpack.c.b16 %v1808, %v1807
      %v1955 = vpack.c.b16 %v1810, %v1809
      %v1956 = vpack.c.b16 %v1812, %v1811
      %v1957 = vpack.c.b16 %v1814, %v1813
      %v1958 = vpack.c.b16 %v1816, %v1815
      %v1959 = vpack.c.b16 %v1818, %v1817
      %v1960 = vpack.c.b16 %v1820, %v1819
      %v1961 = vpack.c.b16 %v1822, %v1821
      %v1962 = vpack.c.b16 %v1824, %v1823
      %v1963 = vpack.c.b16 %v1826, %v1825
      %v1964 = vpack.c.b16 %v1828, %v1827
      %v1965 = vpack.c.b16 %v1830, %v1829
      %v1966 = vpack.c.b16 %v1832, %v1831
      %v1967 = vpack.c.b16 %v1834, %v1833
      %v1968 = vpack.c.b16 %v1836, %v1835
      %v1969 = vpack.c.b16 %v1838, %v1837
      %v1970 = vpack.c.b16 %v1840, %v1839
      %v1971 = vpack.c.b16 %v1842, %v1841
      %v1972 = vpack.c.b16 %v1844, %v1843
      %v1973 = vpack.c.b16 %v1846, %v1845
      %v1974 = vpack.c.b16 %v1848, %v1847
      %v1975 = vpack.c.b16 %v1850, %v1849
      %v1976 = vpack.c.b16 %v1852, %v1851
      %v1977 = vpack.c.b16 %v1854, %v1853
      %v1978 = vpack.c.b16 %v1856, %v1855
      %v1979 = vpack.c.b16 %v1858, %v1857
      %v1980 = vpack.c.b16 %v1860, %v1859
      %v1981 = vpack.c.b16 %v1862, %v1861
      %v1982 = vpack.c.b16 %v1864, %v1863
      %v1983 = vpack.c.b16 %v1866, %v1865
      %v1984 = vpack.c.b16 %v1868, %v1867
      %v1985 = vpack.c.b16 %v1870, %v1869
      %v1986 = vpack.c.b16 %v1872, %v1871
      %v1987 = vpack.c.b16 %v1874, %v1873
      %v1988 = vpack.c.b16 %v1876, %v1875
      %v1989 = vpack.c.b16 %v1878, %v1877
      %v1990 = vpack.c.b16 %v1880, %v1879
      %v1991 = vpack.c.b16 %v1882, %v1881
      %v1992 = vpack.c.b16 %v1884, %v1883
      %v1993 = vpack.c.b16 %v1886, %v1885
      %v1994 = vpack.c.b16 %v1888, %v1887
      %v1995 = vpack.c.b16 %v1890, %v1889
      %v1996 = vpack.c.b16 %v1892, %v1891
      %v1997 = vpack.c.b16 %v1894, %v1893
      %v1998 = vpack.c.b16 %v1896, %v1895
      %v1999 = vpack.c.b16 %v1898, %v1897
      %v2000 = vpack.c.b16 %v1900, %v1899
      %v2001 = vpack.c.b16 %v1902, %v1901
      %v2002 = vpack.c.b16 %v1904, %v1903
      %v2003 = vpack.c.b16 %v1906, %v1905
      %v2004 = vpack.c.b16 %v1908, %v1907
      %v2005 = vpack.c.b16 %v1910, %v1909
      %v2006 = vpack.c.b16 %v1912, %v1911
      %v2007 = vpack.c.b16 %v1914, %v1913
      %v2008 = vpack.c.b16 %v1916, %v1915
      %v2009 = vpack.c.b16 %v1918, %v1917
      %v2010 = vpack.c.b16 %v1920, %v1919
      %v2011 = vpack.c.b16 %v1922, %v1921
      %v2012 = vpack.c.b16 %v1924, %v1923
      %v2013 = vpack.c.b16 %v1926, %v1925
      %v2014 = vpack.c.b16 %v1928, %v1927
      %v2015 = vpack.c.b16 %v1930, %v1929
      %v2016 = vpack.c.b16 %v1932, %v1931
      %v2017 = vpack.c.b16 %v1934, %v1933
      %v2018 = vpack.c.b16 %v1936, %v1935
      %v2019 = vpack.c.b16 %v1938, %v1937
      %v2020 = vpack.c.b16 %v1940, %v1939
      %2101 = vmatprep.subr.bf16.mxu0 0
      %2102 = vmatpush1.bf16.msra.mxu0 %v1941
      %2103 = vmatprep.subr.bf16.mxu0 0
      %2104 = vmatpush1.bf16.msra.mxu0 %v1942
      %2105 = vmatprep.subr.bf16.mxu0 0
      %2106 = vmatpush1.bf16.msra.mxu0 %v1943
      %2107 = vmatprep.subr.bf16.mxu0 0
      %2108 = vmatpush1.bf16.msra.mxu0 %v1944
      %2109 = vmatprep.subr.bf16.mxu0 0
      %2110 = vmatpush1.bf16.msra.mxu0 %v1945
      %2111 = vmatprep.subr.bf16.mxu0 0
      %2112 = vmatpush1.bf16.msra.mxu0 %v1946
      %2113 = vmatprep.subr.bf16.mxu0 0
      %2114 = vmatpush1.bf16.msra.mxu0 %v1947
      %2115 = vmatprep.subr.bf16.mxu0 0
      %2116 = vmatpush1.bf16.msra.mxu0 %v1948
      %2117 = vmatprep.subr.bf16.mxu0 0
      %2118 = vmatpush1.bf16.msra.mxu0 %v1949
      %2119 = vmatprep.subr.bf16.mxu0 0
      %2120 = vmatpush1.bf16.msra.mxu0 %v1950
      %2121 = vmatprep.subr.bf16.mxu0 0
      %2122 = vmatpush1.bf16.msra.mxu0 %v1951
      %2123 = vmatprep.subr.bf16.mxu0 0
      %2124 = vmatpush1.bf16.msra.mxu0 %v1952
      %2125 = vmatprep.subr.bf16.mxu0 0
      %2126 = vmatpush1.bf16.msra.mxu0 %v1953
      %2127 = vmatprep.subr.bf16.mxu0 0
      %2128 = vmatpush1.bf16.msra.mxu0 %v1954
      %2129 = vmatprep.subr.bf16.mxu0 0
      %2130 = vmatpush1.bf16.msra.mxu0 %v1955
      %2131 = vmatprep.subr.bf16.mxu0 0
      %2132 = vmatpush1.bf16.msra.mxu0 %v1956
      %2133 = vmatprep.mubr.bf16.mxu0 %v1375
      %2134 = vmatmul.mubr.bf16.gmra.mrb[0].mxu0 %v1374
      %v2135 = vpop.f32.mrb[0].mxu0
      %v2136 = vadd.f32 %v1619, %v2135
      %v2137 = vpop.f32.mrb[0].mxu0
      %v2138 = vpop.f32.mrb[0].mxu0
      %v2139 = vadd.f32 %v1619, %v2138
      %v2140 = vpop.f32.mrb[0].mxu0
      %2141 = vmatprep.mubr.bf16.mxu0 %v1385
      %2142 = vmatmul.mubr.bf16.gmra.mrb[0].mxu0 %v1384
      %v2143 = vpop.f32.mrb[0].mxu0
      %v2144 = vadd.f32 %v1619, %v2143
      %v2145 = vpop.f32.mrb[0].mxu0
      %v2146 = vpop.f32.mrb[0].mxu0
      %v2147 = vadd.f32 %v1619, %v2146
      %v2148 = vpop.f32.mrb[0].mxu0
      %2149 = vmatprep.mubr.bf16.mxu0 %v1395
      %2150 = vmatmul.mubr.bf16.gmra.mrb[0].mxu0 %v1394
      %v2151 = vpop.f32.mrb[0].mxu0
      %v2152 = vadd.f32 %v1619, %v2151
      %v2153 = vpop.f32.mrb[0].mxu0
      %v2154 = vpop.f32.mrb[0].mxu0
      %v2155 = vadd.f32 %v1619, %v2154
      %v2156 = vpop.f32.mrb[0].mxu0
      %2157 = vmatprep.mubr.bf16.mxu0 %v1405
      %2158 = vmatmul.mubr.bf16.gmra.mrb[0].mxu0 %v1404
      %v2159 = vpop.f32.mrb[0].mxu0
      %v2160 = vadd.f32 %v1619, %v2159
      %v2161 = vpop.f32.mrb[0].mxu0
      %v2162 = vpop.f32.mrb[0].mxu0
      %v2163 = vadd.f32 %v1619, %v2162
      %v2164 = vpop.f32.mrb[0].mxu0
      %2165 = vmatprep.mubr.bf16.mxu0 %v1415
      %2166 = vmatmul.mubr.bf16.gmra.mrb[0].mxu0 %v1414
      %v2167 = vpop.f32.mrb[0].mxu0
      %v2168 = vadd.f32 %v1619, %v2167
      %v2169 = vpop.f32.mrb[0].mxu0
      %v2170 = vpop.f32.mrb[0].mxu0
      %v2171 = vadd.f32 %v1619, %v2170
      %v2172 = vpop.f32.mrb[0].mxu0
      %2173 = vmatprep.mubr.bf16.mxu0 %v1425
      %2174 = vmatmul.mubr.bf16.gmra.mrb[0].mxu0 %v1424
      %v2175 = vpop.f32.mrb[0].mxu0
      %v2176 = vadd.f32 %v1619, %v2175
      %v2177 = vpop.f32.mrb[0].mxu0
      %v2178 = vpop.f32.mrb[0].mxu0
      %v2179 = vadd.f32 %v1619, %v2178
      %v2180 = vpop.f32.mrb[0].mxu0
      %2181 = vmatprep.mubr.bf16.mxu0 %v1435
      %2182 = vmatmul.mubr.bf16.gmra.mrb[0].mxu0 %v1434
      %v2183 = vpop.f32.mrb[0].mxu0
      %v2184 = vadd.f32 %v1619, %v2183
      %v2185 = vpop.f32.mrb[0].mxu0
      %v2186 = vpop.f32.mrb[0].mxu0
      %v2187 = vadd.f32 %v1619, %v2186
      %v2188 = vpop.f32.mrb[0].mxu0
      %2189 = vmatprep.mubr.bf16.mxu0 %v1445
      %2190 = vmatmul.mubr.bf16.gmra.mrb[0].mxu0 %v1444
      %v2191 = vpop.f32.mrb[0].mxu0
      %v2192 = vadd.f32 %v1619, %v2191
      %v2193 = vpop.f32.mrb[0].mxu0
      %v2194 = vpop.f32.mrb[0].mxu0
      %v2195 = vadd.f32 %v1619, %v2194
      %v2196 = vpop.f32.mrb[0].mxu0
      %2197 = vdwg.mxu0
      %2198 = vmatprep.subr.bf16.mxu0 0
      %2199 = vmatpush1.bf16.msra.mxu0 %v1957
      %2200 = vmatprep.subr.bf16.mxu0 0
      %2201 = vmatpush1.bf16.msra.mxu0 %v1958
      %2202 = vmatprep.subr.bf16.mxu0 0
      %2203 = vmatpush1.bf16.msra.mxu0 %v1959
      %2204 = vmatprep.subr.bf16.mxu0 0
      %2205 = vmatpush1.bf16.msra.mxu0 %v1960
      %2206 = vmatprep.subr.bf16.mxu0 0
      %2207 = vmatpush1.bf16.msra.mxu0 %v1961
      %2208 = vmatprep.subr.bf16.mxu0 0
      %2209 = vmatpush1.bf16.msra.mxu0 %v1962
      %2210 = vmatprep.subr.bf16.mxu0 0
      %2211 = vmatpush1.bf16.msra.mxu0 %v1963
      %2212 = vmatprep.subr.bf16.mxu0 0
      %2213 = vmatpush1.bf16.msra.mxu0 %v1964
      %2214 = vmatprep.subr.bf16.mxu0 0
      %2215 = vmatpush1.bf16.msra.mxu0 %v1965
      %2216 = vmatprep.subr.bf16.mxu0 0
      %2217 = vmatpush1.bf16.msra.mxu0 %v1966
      %2218 = vmatprep.subr.bf16.mxu0 0
      %2219 = vmatpush1.bf16.msra.mxu0 %v1967
      %2220 = vmatprep.subr.bf16.mxu0 0
      %2221 = vmatpush1.bf16.msra.mxu0 %v1968
      %2222 = vmatprep.subr.bf16.mxu0 0
      %2223 = vmatpush1.bf16.msra.mxu0 %v1969
      %2224 = vmatprep.subr.bf16.mxu0 0
      %2225 = vmatpush1.bf16.msra.mxu0 %v1970
      %2226 = vmatprep.subr.bf16.mxu0 0
      %2227 = vmatpush1.bf16.msra.mxu0 %v1971
      %2228 = vmatprep.subr.bf16.mxu0 0
      %2229 = vmatpush1.bf16.msra.mxu0 %v1972
      %2230 = vmatprep.mubr.bf16.mxu0 %v1377
      %2231 = vmatmul.mubr.bf16.gmra.mrb[0].mxu0 %v1376
      %v2232 = vpop.f32.mrb[0].mxu0
      %v2233 = vadd.f32 %v2136, %v2232
      %v2234 = vpop.f32.mrb[0].mxu0
      %v2235 = vpop.f32.mrb[0].mxu0
      %v2236 = vadd.f32 %v2139, %v2235
      %v2237 = vpop.f32.mrb[0].mxu0
      %2238 = vmatprep.mubr.bf16.mxu0 %v1387
      %2239 = vmatmul.mubr.bf16.gmra.mrb[0].mxu0 %v1386
      %v2240 = vpop.f32.mrb[0].mxu0
      %v2241 = vadd.f32 %v2144, %v2240
      %v2242 = vpop.f32.mrb[0].mxu0
      %v2243 = vpop.f32.mrb[0].mxu0
      %v2244 = vadd.f32 %v2147, %v2243
      %v2245 = vpop.f32.mrb[0].mxu0
      %2246 = vmatprep.mubr.bf16.mxu0 %v1397
      %2247 = vmatmul.mubr.bf16.gmra.mrb[0].mxu0 %v1396
      %v2248 = vpop.f32.mrb[0].mxu0
      %v2249 = vadd.f32 %v2152, %v2248
      %v2250 = vpop.f32.mrb[0].mxu0
      %v2251 = vpop.f32.mrb[0].mxu0
      %v2252 = vadd.f32 %v2155, %v2251
      %v2253 = vpop.f32.mrb[0].mxu0
      %2254 = vmatprep.mubr.bf16.mxu0 %v1407
      %2255 = vmatmul.mubr.bf16.gmra.mrb[0].mxu0 %v1406
      %v2256 = vpop.f32.mrb[0].mxu0
      %v2257 = vadd.f32 %v2160, %v2256
      %v2258 = vpop.f32.mrb[0].mxu0
      %v2259 = vpop.f32.mrb[0].mxu0
      %v2260 = vadd.f32 %v2163, %v2259
      %v2261 = vpop.f32.mrb[0].mxu0
      %2262 = vmatprep.mubr.bf16.mxu0 %v1417
      %2263 = vmatmul.mubr.bf16.gmra.mrb[0].mxu0 %v1416
      %v2264 = vpop.f32.mrb[0].mxu0
      %v2265 = vadd.f32 %v2168, %v2264
      %v2266 = vpop.f32.mrb[0].mxu0
      %v2267 = vpop.f32.mrb[0].mxu0
      %v2268 = vadd.f32 %v2171, %v2267
      %v2269 = vpop.f32.mrb[0].mxu0
      %2270 = vmatprep.mubr.bf16.mxu0 %v1427
      %2271 = vmatmul.mubr.bf16.gmra.mrb[0].mxu0 %v1426
      %v2272 = vpop.f32.mrb[0].mxu0
      %v2273 = vadd.f32 %v2176, %v2272
      %v2274 = vpop.f32.mrb[0].mxu0
      %v2275 = vpop.f32.mrb[0].mxu0
      %v2276 = vadd.f32 %v2179, %v2275
      %v2277 = vpop.f32.mrb[0].mxu0
      %2278 = vmatprep.mubr.bf16.mxu0 %v1437
      %2279 = vmatmul.mubr.bf16.gmra.mrb[0].mxu0 %v1436
      %v2280 = vpop.f32.mrb[0].mxu0
      %v2281 = vadd.f32 %v2184, %v2280
      %v2282 = vpop.f32.mrb[0].mxu0
      %v2283 = vpop.f32.mrb[0].mxu0
      %v2284 = vadd.f32 %v2187, %v2283
      %v2285 = vpop.f32.mrb[0].mxu0
      %2286 = vmatprep.mubr.bf16.mxu0 %v1447
      %2287 = vmatmul.mubr.bf16.gmra.mrb[0].mxu0 %v1446
      %v2288 = vpop.f32.mrb[0].mxu0
      %v2289 = vadd.f32 %v2192, %v2288
      %v2290 = vpop.f32.mrb[0].mxu0
      %v2291 = vpop.f32.mrb[0].mxu0
      %v2292 = vadd.f32 %v2195, %v2291
      %v2293 = vpop.f32.mrb[0].mxu0
      %2294 = vdwg.mxu0
      %2295 = vmatprep.subr.bf16.mxu0 0
      %2296 = vmatpush1.bf16.msra.mxu0 %v1973
      %2297 = vmatprep.subr.bf16.mxu0 0
      %2298 = vmatpush1.bf16.msra.mxu0 %v1974
      %2299 = vmatprep.subr.bf16.mxu0 0
      %2300 = vmatpush1.bf16.msra.mxu0 %v1975
      %2301 = vmatprep.subr.bf16.mxu0 0
      %2302 = vmatpush1.bf16.msra.mxu0 %v1976
      %2303 = vmatprep.subr.bf16.mxu0 0
      %2304 = vmatpush1.bf16.msra.mxu0 %v1977
      %2305 = vmatprep.subr.bf16.mxu0 0
      %2306 = vmatpush1.bf16.msra.mxu0 %v1978
      %2307 = vmatprep.subr.bf16.mxu0 0
      %2308 = vmatpush1.bf16.msra.mxu0 %v1979
      %2309 = vmatprep.subr.bf16.mxu0 0
      %2310 = vmatpush1.bf16.msra.mxu0 %v1980
      %2311 = vmatprep.subr.bf16.mxu0 0
      %2312 = vmatpush1.bf16.msra.mxu0 %v1981
      %2313 = vmatprep.subr.bf16.mxu0 0
      %2314 = vmatpush1.bf16.msra.mxu0 %v1982
      %2315 = vmatprep.subr.bf16.mxu0 0
      %2316 = vmatpush1.bf16.msra.mxu0 %v1983
      %2317 = vmatprep.subr.bf16.mxu0 0
      %2318 = vmatpush1.bf16.msra.mxu0 %v1984
      %2319 = vmatprep.subr.bf16.mxu0 0
      %2320 = vmatpush1.bf16.msra.mxu0 %v1985
      %2321 = vmatprep.subr.bf16.mxu0 0
      %2322 = vmatpush1.bf16.msra.mxu0 %v1986
      %2323 = vmatprep.subr.bf16.mxu0 0
      %2324 = vmatpush1.bf16.msra.mxu0 %v1987
      %2325 = vmatprep.subr.bf16.mxu0 0
      %2326 = vmatpush1.bf16.msra.mxu0 %v1988
      %2327 = vmatprep.mubr.bf16.mxu0 %v1379
      %2328 = vmatmul.mubr.bf16.gmra.mrb[0].mxu0 %v1378
      %v2329 = vpop.f32.mrb[0].mxu0
      %v2330 = vadd.f32 %v2233, %v2329
      %v2331 = vpop.f32.mrb[0].mxu0
      %v2332 = vpop.f32.mrb[0].mxu0
      %v2333 = vadd.f32 %v2236, %v2332
      %v2334 = vpop.f32.mrb[0].mxu0
      %2335 = vmatprep.mubr.bf16.mxu0 %v1389
      %2336 = vmatmul.mubr.bf16.gmra.mrb[0].mxu0 %v1388
      %v2337 = vpop.f32.mrb[0].mxu0
      %v2338 = vadd.f32 %v2241, %v2337
      %v2339 = vpop.f32.mrb[0].mxu0
      %v2340 = vpop.f32.mrb[0].mxu0
      %v2341 = vadd.f32 %v2244, %v2340
      %v2342 = vpop.f32.mrb[0].mxu0
      %2343 = vmatprep.mubr.bf16.mxu0 %v1399
      %2344 = vmatmul.mubr.bf16.gmra.mrb[0].mxu0 %v1398
      %v2345 = vpop.f32.mrb[0].mxu0
      %v2346 = vadd.f32 %v2249, %v2345
      %v2347 = vpop.f32.mrb[0].mxu0
      %v2348 = vpop.f32.mrb[0].mxu0
      %v2349 = vadd.f32 %v2252, %v2348
      %v2350 = vpop.f32.mrb[0].mxu0
      %2351 = vmatprep.mubr.bf16.mxu0 %v1409
      %2352 = vmatmul.mubr.bf16.gmra.mrb[0].mxu0 %v1408
      %v2353 = vpop.f32.mrb[0].mxu0
      %v2354 = vadd.f32 %v2257, %v2353
      %v2355 = vpop.f32.mrb[0].mxu0
      %v2356 = vpop.f32.mrb[0].mxu0
      %v2357 = vadd.f32 %v2260, %v2356
      %v2358 = vpop.f32.mrb[0].mxu0
      %2359 = vmatprep.mubr.bf16.mxu0 %v1419
      %2360 = vmatmul.mubr.bf16.gmra.mrb[0].mxu0 %v1418
      %v2361 = vpop.f32.mrb[0].mxu0
      %v2362 = vadd.f32 %v2265, %v2361
      %v2363 = vpop.f32.mrb[0].mxu0
      %v2364 = vpop.f32.mrb[0].mxu0
      %v2365 = vadd.f32 %v2268, %v2364
      %v2366 = vpop.f32.mrb[0].mxu0
      %2367 = vmatprep.mubr.bf16.mxu0 %v1429
      %2368 = vmatmul.mubr.bf16.gmra.mrb[0].mxu0 %v1428
      %v2369 = vpop.f32.mrb[0].mxu0
      %v2370 = vadd.f32 %v2273, %v2369
      %v2371 = vpop.f32.mrb[0].mxu0
      %v2372 = vpop.f32.mrb[0].mxu0
      %v2373 = vadd.f32 %v2276, %v2372
      %v2374 = vpop.f32.mrb[0].mxu0
      %2375 = vmatprep.mubr.bf16.mxu0 %v1439
      %2376 = vmatmul.mubr.bf16.gmra.mrb[0].mxu0 %v1438
      %v2377 = vpop.f32.mrb[0].mxu0
      %v2378 = vadd.f32 %v2281, %v2377
      %v2379 = vpop.f32.mrb[0].mxu0
      %v2380 = vpop.f32.mrb[0].mxu0
      %v2381 = vadd.f32 %v2284, %v2380
      %v2382 = vpop.f32.mrb[0].mxu0
      %2383 = vmatprep.mubr.bf16.mxu0 %v1449
      %2384 = vmatmul.mubr.bf16.gmra.mrb[0].mxu0 %v1448
      %v2385 = vpop.f32.mrb[0].mxu0
      %v2386 = vadd.f32 %v2289, %v2385
      %v2387 = vpop.f32.mrb[0].mxu0
      %v2388 = vpop.f32.mrb[0].mxu0
      %v2389 = vadd.f32 %v2292, %v2388
      %v2390 = vpop.f32.mrb[0].mxu0
      %2391 = vdwg.mxu0
      %2392 = vmatprep.subr.bf16.mxu0 0
      %2393 = vmatpush1.bf16.msra.mxu0 %v1989
      %2394 = vmatprep.subr.bf16.mxu0 0
      %2395 = vmatpush1.bf16.msra.mxu0 %v1990
      %2396 = vmatprep.subr.bf16.mxu0 0
      %2397 = vmatpush1.bf16.msra.mxu0 %v1991
      %2398 = vmatprep.subr.bf16.mxu0 0
      %2399 = vmatpush1.bf16.msra.mxu0 %v1992
      %2400 = vmatprep.subr.bf16.mxu0 0
      %2401 = vmatpush1.bf16.msra.mxu0 %v1993
      %2402 = vmatprep.subr.bf16.mxu0 0
      %2403 = vmatpush1.bf16.msra.mxu0 %v1994
      %2404 = vmatprep.subr.bf16.mxu0 0
      %2405 = vmatpush1.bf16.msra.mxu0 %v1995
      %2406 = vmatprep.subr.bf16.mxu0 0
      %2407 = vmatpush1.bf16.msra.mxu0 %v1996
      %2408 = vmatprep.subr.bf16.mxu0 0
      %2409 = vmatpush1.bf16.msra.mxu0 %v1997
      %2410 = vmatprep.subr.bf16.mxu0 0
      %2411 = vmatpush1.bf16.msra.mxu0 %v1998
      %2412 = vmatprep.subr.bf16.mxu0 0
      %2413 = vmatpush1.bf16.msra.mxu0 %v1999
      %2414 = vmatprep.subr.bf16.mxu0 0
      %2415 = vmatpush1.bf16.msra.mxu0 %v2000
      %2416 = vmatprep.subr.bf16.mxu0 0
      %2417 = vmatpush1.bf16.msra.mxu0 %v2001
      %2418 = vmatprep.subr.bf16.mxu0 0
      %2419 = vmatpush1.bf16.msra.mxu0 %v2002
      %2420 = vmatprep.subr.bf16.mxu0 0
      %2421 = vmatpush1.bf16.msra.mxu0 %v2003
      %2422 = vmatprep.subr.bf16.mxu0 0
      %2423 = vmatpush1.bf16.msra.mxu0 %v2004
      %2424 = vmatprep.mubr.bf16.mxu0 %v1381
      %2425 = vmatmul.mubr.bf16.gmra.mrb[0].mxu0 %v1380
      %v2426 = vpop.f32.mrb[0].mxu0
      %v2427 = vadd.f32 %v2330, %v2426
      %v2428 = vpop.f32.mrb[0].mxu0
      %v2429 = vpop.f32.mrb[0].mxu0
      %v2430 = vadd.f32 %v2333, %v2429
      %v2431 = vpop.f32.mrb[0].mxu0
      %2432 = vmatprep.mubr.bf16.mxu0 %v1391
      %2433 = vmatmul.mubr.bf16.gmra.mrb[0].mxu0 %v1390
      %v2434 = vpop.f32.mrb[0].mxu0
      %v2435 = vadd.f32 %v2338, %v2434
      %v2436 = vpop.f32.mrb[0].mxu0
      %v2437 = vpop.f32.mrb[0].mxu0
      %v2438 = vadd.f32 %v2341, %v2437
      %v2439 = vpop.f32.mrb[0].mxu0
      %2440 = vmatprep.mubr.bf16.mxu0 %v1401
      %2441 = vmatmul.mubr.bf16.gmra.mrb[0].mxu0 %v1400
      %v2442 = vpop.f32.mrb[0].mxu0
      %v2443 = vadd.f32 %v2346, %v2442
      %v2444 = vpop.f32.mrb[0].mxu0
      %v2445 = vpop.f32.mrb[0].mxu0
      %v2446 = vadd.f32 %v2349, %v2445
      %v2447 = vpop.f32.mrb[0].mxu0
      %2448 = vmatprep.mubr.bf16.mxu0 %v1411
      %2449 = vmatmul.mubr.bf16.gmra.mrb[0].mxu0 %v1410
      %v2450 = vpop.f32.mrb[0].mxu0
      %v2451 = vadd.f32 %v2354, %v2450
      %v2452 = vpop.f32.mrb[0].mxu0
      %v2453 = vpop.f32.mrb[0].mxu0
      %v2454 = vadd.f32 %v2357, %v2453
      %v2455 = vpop.f32.mrb[0].mxu0
      %2456 = vmatprep.mubr.bf16.mxu0 %v1421
      %2457 = vmatmul.mubr.bf16.gmra.mrb[0].mxu0 %v1420
      %v2458 = vpop.f32.mrb[0].mxu0
      %v2459 = vadd.f32 %v2362, %v2458
      %v2460 = vpop.f32.mrb[0].mxu0
      %v2461 = vpop.f32.mrb[0].mxu0
      %v2462 = vadd.f32 %v2365, %v2461
      %v2463 = vpop.f32.mrb[0].mxu0
      %2464 = vmatprep.mubr.bf16.mxu0 %v1431
      %2465 = vmatmul.mubr.bf16.gmra.mrb[0].mxu0 %v1430
      %v2466 = vpop.f32.mrb[0].mxu0
      %v2467 = vadd.f32 %v2370, %v2466
      %v2468 = vpop.f32.mrb[0].mxu0
      %v2469 = vpop.f32.mrb[0].mxu0
      %v2470 = vadd.f32 %v2373, %v2469
      %v2471 = vpop.f32.mrb[0].mxu0
      %2472 = vmatprep.mubr.bf16.mxu0 %v1441
      %2473 = vmatmul.mubr.bf16.gmra.mrb[0].mxu0 %v1440
      %v2474 = vpop.f32.mrb[0].mxu0
      %v2475 = vadd.f32 %v2378, %v2474
      %v2476 = vpop.f32.mrb[0].mxu0
      %v2477 = vpop.f32.mrb[0].mxu0
      %v2478 = vadd.f32 %v2381, %v2477
      %v2479 = vpop.f32.mrb[0].mxu0
      %2480 = vmatprep.mubr.bf16.mxu0 %v1451
      %2481 = vmatmul.mubr.bf16.gmra.mrb[0].mxu0 %v1450
      %v2482 = vpop.f32.mrb[0].mxu0
      %v2483 = vadd.f32 %v2386, %v2482
      %v2484 = vpop.f32.mrb[0].mxu0
      %v2485 = vpop.f32.mrb[0].mxu0
      %v2486 = vadd.f32 %v2389, %v2485
      %v2487 = vpop.f32.mrb[0].mxu0
      %2488 = vdwg.mxu0
      %2489 = vmatprep.subr.bf16.mxu0 0
      %2490 = vmatpush1.bf16.msra.mxu0 %v2005
      %2491 = vmatprep.subr.bf16.mxu0 0
      %2492 = vmatpush1.bf16.msra.mxu0 %v2006
      %2493 = vmatprep.subr.bf16.mxu0 0
      %2494 = vmatpush1.bf16.msra.mxu0 %v2007
      %2495 = vmatprep.subr.bf16.mxu0 0
      %2496 = vmatpush1.bf16.msra.mxu0 %v2008
      %2497 = vmatprep.subr.bf16.mxu0 0
      %2498 = vmatpush1.bf16.msra.mxu0 %v2009
      %2499 = vmatprep.subr.bf16.mxu0 0
      %2500 = vmatpush1.bf16.msra.mxu0 %v2010
      %2501 = vmatprep.subr.bf16.mxu0 0
      %2502 = vmatpush1.bf16.msra.mxu0 %v2011
      %2503 = vmatprep.subr.bf16.mxu0 0
      %2504 = vmatpush1.bf16.msra.mxu0 %v2012
      %2505 = vmatprep.subr.bf16.mxu0 0
      %2506 = vmatpush1.bf16.msra.mxu0 %v2013
      %2507 = vmatprep.subr.bf16.mxu0 0
      %2508 = vmatpush1.bf16.msra.mxu0 %v2014
      %2509 = vmatprep.subr.bf16.mxu0 0
      %2510 = vmatpush1.bf16.msra.mxu0 %v2015
      %2511 = vmatprep.subr.bf16.mxu0 0
      %2512 = vmatpush1.bf16.msra.mxu0 %v2016
      %2513 = vmatprep.subr.bf16.mxu0 0
      %2514 = vmatpush1.bf16.msra.mxu0 %v2017
      %2515 = vmatprep.subr.bf16.mxu0 0
      %2516 = vmatpush1.bf16.msra.mxu0 %v2018
      %2517 = vmatprep.subr.bf16.mxu0 0
      %2518 = vmatpush1.bf16.msra.mxu0 %v2019
      %2519 = vmatprep.subr.bf16.mxu0 0
      %2520 = vmatpush1.bf16.msra.mxu0 %v2020
      %2521 = vmatprep.mubr.bf16.mxu0 %v1383
      %2522 = vmatmul.mubr.bf16.gmra.mrb[0].mxu0 %v1382
      %v2523 = vpop.f32.mrb[0].mxu0
      %v2524 = vadd.f32 %v2427, %v2523
      %v2525 = vpop.f32.mrb[0].mxu0
      %v2526 = vpop.f32.mrb[0].mxu0
      %v2527 = vadd.f32 %v2430, %v2526
      %v2528 = vpop.f32.mrb[0].mxu0
      %2529 = vmatprep.mubr.bf16.mxu0 %v1393
      %2530 = vmatmul.mubr.bf16.gmra.mrb[0].mxu0 %v1392
      %v2531 = vpop.f32.mrb[0].mxu0
      %v2532 = vadd.f32 %v2435, %v2531
      %v2533 = vpop.f32.mrb[0].mxu0
      %v2534 = vpop.f32.mrb[0].mxu0
      %v2535 = vadd.f32 %v2438, %v2534
      %v2536 = vpop.f32.mrb[0].mxu0
      %2537 = vmatprep.mubr.bf16.mxu0 %v1403
      %2538 = vmatmul.mubr.bf16.gmra.mrb[0].mxu0 %v1402
      %v2539 = vpop.f32.mrb[0].mxu0
      %v2540 = vadd.f32 %v2443, %v2539
      %v2541 = vpop.f32.mrb[0].mxu0
      %v2542 = vpop.f32.mrb[0].mxu0
      %v2543 = vadd.f32 %v2446, %v2542
      %v2544 = vpop.f32.mrb[0].mxu0
      %2545 = vmatprep.mubr.bf16.mxu0 %v1413
      %2546 = vmatmul.mubr.bf16.gmra.mrb[0].mxu0 %v1412
      %v2547 = vpop.f32.mrb[0].mxu0
      %v2548 = vadd.f32 %v2451, %v2547
      %v2549 = vpop.f32.mrb[0].mxu0
      %v2550 = vpop.f32.mrb[0].mxu0
      %v2551 = vadd.f32 %v2454, %v2550
      %v2552 = vpop.f32.mrb[0].mxu0
      %2553 = vmatprep.mubr.bf16.mxu0 %v1423
      %2554 = vmatmul.mubr.bf16.gmra.mrb[0].mxu0 %v1422
      %v2555 = vpop.f32.mrb[0].mxu0
      %v2556 = vadd.f32 %v2459, %v2555
      %v2557 = vpop.f32.mrb[0].mxu0
      %v2558 = vpop.f32.mrb[0].mxu0
      %v2559 = vadd.f32 %v2462, %v2558
      %v2560 = vpop.f32.mrb[0].mxu0
      %2561 = vmatprep.mubr.bf16.mxu0 %v1433
      %2562 = vmatmul.mubr.bf16.gmra.mrb[0].mxu0 %v1432
      %v2563 = vpop.f32.mrb[0].mxu0
      %v2564 = vadd.f32 %v2467, %v2563
      %v2565 = vpop.f32.mrb[0].mxu0
      %v2566 = vpop.f32.mrb[0].mxu0
      %v2567 = vadd.f32 %v2470, %v2566
      %v2568 = vpop.f32.mrb[0].mxu0
      %2569 = vmatprep.mubr.bf16.mxu0 %v1443
      %2570 = vmatmul.mubr.bf16.gmra.mrb[0].mxu0 %v1442
      %v2571 = vpop.f32.mrb[0].mxu0
      %v2572 = vadd.f32 %v2475, %v2571
      %v2573 = vpop.f32.mrb[0].mxu0
      %v2574 = vpop.f32.mrb[0].mxu0
      %v2575 = vadd.f32 %v2478, %v2574
      %v2576 = vpop.f32.mrb[0].mxu0
      %2577 = vmatprep.mubr.bf16.mxu0 %v1453
      %2578 = vmatmul.mubr.bf16.gmra.mrb[0].mxu0 %v1452
      %v2579 = vpop.f32.mrb[0].mxu0
      %v2580 = vadd.f32 %v2483, %v2579
      %v2581 = vpop.f32.mrb[0].mxu0
      %v2582 = vpop.f32.mrb[0].mxu0
      %v2583 = vadd.f32 %v2486, %v2582
      %v2584 = vpop.f32.mrb[0].mxu0
      %2585 = vdwg.mxu0
      %2586 = vst [vmem:[%s295] sm:$0xff] %v2524
      %2587 = vst [vmem:[%s295 + $0x8] sm:$0xff] %v2527
      %2588 = vst [vmem:[%s295 + $0x10] sm:$0xff] %v2532
      %2589 = vst [vmem:[%s295 + $0x18] sm:$0xff] %v2535
      %2590 = vst [vmem:[%s295 + $0x20] sm:$0xff] %v2540
      %2591 = vst [vmem:[%s295 + $0x28] sm:$0xff] %v2543
      %2592 = vst [vmem:[%s295 + $0x30] sm:$0xff] %v2548
      %2593 = vst [vmem:[%s295 + $0x38] sm:$0xff] %v2551
      %2594 = vst [vmem:[%s295 + $0x40] sm:$0xff] %v2556
      %2595 = vst [vmem:[%s295 + $0x48] sm:$0xff] %v2559
      %2596 = vst [vmem:[%s295 + $0x50] sm:$0xff] %v2564
      %2597 = vst [vmem:[%s295 + $0x58] sm:$0xff] %v2567
      %2598 = vst [vmem:[%s295 + $0x60] sm:$0xff] %v2572
      %2599 = vst [vmem:[%s295 + $0x68] sm:$0xff] %v2575
      %2600 = vst [vmem:[%s295 + $0x70] sm:$0xff] %v2580
      %2601 = vst [vmem:[%s295 + $0x78] sm:$0xff] %v2583
      %s2602 = smul.u32 8, %s22
      %p2603 = scmp.lt.s32.totalorder %s21, 1
      %s2604 = scalar_select %p2603, %s21, 1
      %p2605 = scmp.lt.s32.totalorder %s2602, 15
      %s2606 = scalar_select %p2605, %s2602, 15
      %s2607 = smul.addr %s2606, 2
      %s2608 = smul.addr %s2604, 32
      %s2609 = sadd.s32 %s2607, %s2608
      %s2610 = smul.addr %s2609, 8
      %s2611 = scalar_lea.vmem %s6, %s2610
      // Predicated region
      $region45: #{up_block_forward.3} parent=43 // pred_check
        %p2612 = pneg %p185
      $region46: #{up_block_forward.3} parent=43 // pred_check_branch
        %2614 = sbr.rel (%p2612) target = $region48
      $region47: #{up_block_forward.3} parent=43 // pred_region
        %s2615 = smul.u32 8, %s22
      $region48: #{up_block_forward.3} parent=43 // pred_fallthru
        _
    $region44: #{up_block_forward.3} parent=5 // pred_fallthru
      _
    %p2616 = scmp.le.s32.totalorder 2, %s12
    // Predicated region
    $region49: #{up_block_forward.3} parent=5 // pred_check
      %p2617 = pneg %p2616
    $region50: #{up_block_forward.3} parent=5 // pred_check_branch
      %2619 = sbr.rel (%p2617) target = $region52
    $region51: #{up_block_forward.3} parent=5 // pred_region
      %s2620 = ssub.s32 %s12, 2
      // Predicated region
      $region53: #{up_block_forward.3} parent=51 // pred_check
        %p2621 = pneg %p191
      $region54: #{up_block_forward.3} parent=51 // pred_check_branch
        %2623 = sbr.rel (%p2621) target = $region56
      $region55: #{up_block_forward.3} parent=51 // pred_region
        %s2624 = smul.u32 8, %s24
        %p2625 = scmp.lt.s32.totalorder %s23, 1
        %s2626 = scalar_select %p2625, %s23, 1
        %p2627 = scmp.lt.s32.totalorder %s2624, 15
        %s2628 = scalar_select %p2627, %s2624, 15
        %s2629 = smul.addr %s2628, 2
        %s2630 = smul.addr %s2626, 32
        %s2631 = sadd.s32 %s2629, %s2630
        %s2632 = smul.addr %s2631, 8
        %s2633 = scalar_lea.vmem %s6, %s2632
      $region56: #{up_block_forward.3} parent=51 // pred_fallthru
        _
    $region52: #{up_block_forward.3} parent=5 // pred_fallthru
      _
  $region6: #{up_block_forward.3} parent=0 // loop_footer
    %s16 = sadd.s32 1, %s12
  $region7: #{up_block_forward.3} parent=0 // loop_footer_branch
    %11 = sbr.rel target = $region3
  $region8: #{up_block_forward.3} parent=0 // loop_exit
    _

</llo_original>
